<compile_context>
chip_gen: v7x
topology: tpu7x:2x2x1
jax: 0.10.0
libtpu: 0.0.40
codegen_flags: <defaults>
</compile_context>

<pallas_src>
import jax
import jax.numpy as jnp
import numpy as np
from jax import lax
from jax.experimental import pallas as pl
from jax.experimental.pallas import tpu as pltpu

LANE = 128


def _round_up(x, m):
    return (x + m - 1) // m * m


def _shift_w(x, direction):
    """Zero-filled shift of a (R, W, C) array along W (axis=1) by +-1.

    direction=+1: out[:, w] = x[:, w-1]; direction=-1: out[:, w] = x[:, w+1].
    Implemented with a slice + concat of a zero column (unambiguous semantics).
    # NOTE: could be moved to the XLU via pltpu.roll + mask as a further opt.
    """
    R, W, C = x.shape
    zcol = jnp.zeros((R, 1, C), x.dtype)
    if direction > 0:
        return jnp.concatenate([zcol, x[:, :W - 1, :]], axis=1)
    else:
        return jnp.concatenate([x[:, 1:, :], zcol], axis=1)


def _double_conv_kernel(xc_ref, xt_ref, xb_ref, w1_ref, s1_ref, t1_ref,
                        w2_ref, s2_ref, t2_ref, o_ref):
    """One (batch, row-tile) per grid step.

    xc_ref : (1, TH, W, CP_IN)      centre rows of the input tile
    xt_ref : (1, 2,  W, CP_IN)      2-row top halo (clamped at image border)
    xb_ref : (1, 2,  W, CP_IN)      2-row bottom halo (clamped at image border)
    w1_ref : (3, 3*CP_IN, CP_OUT)   conv1 weights, kw folded into K (bf16)
    s1/t1  : (1, CP_OUT)            folded BN1 scale / shift (includes bias)
    w2_ref : (3, 3*CP_OUT, CP_OUT)  conv2 weights, kw folded into K (bf16)
    s2/t2  : (1, CP_OUT)            folded BN2 scale / shift
    o_ref  : (1, TH, W, CP_OUT)     output tile
    """
    TH = o_ref.shape[1]
    W = o_ref.shape[2]
    CP_IN = xc_ref.shape[3]
    CP_OUT = o_ref.shape[3]

    i = pl.program_id(1)
    is_first = i == 0
    is_last = i == pl.num_programs(1) - 1

    # ---- assemble (TH+4, W, CP_IN) row window; zero halo rows outside image.
    x_full = jnp.concatenate([xt_ref[0], xc_ref[0], xb_ref[0]], axis=0)
    rx = lax.broadcasted_iota(jnp.int32, x_full.shape, 0)
    x_full = jnp.where(jnp.logical_and(is_first, rx < 2), 0.0, x_full)
    x_full = jnp.where(jnp.logical_and(is_last, rx >= TH + 2), 0.0, x_full)

    # ---- fold the 3 kw taps into channels: (TH+4, W, 3*CP_IN), bf16 for MXU.
    x_aug = jnp.concatenate(
        [_shift_w(x_full, 1), x_full, _shift_w(x_full, -1)], axis=-1
    ).astype(jnp.bfloat16)

    # ---- conv1 on TH+2 output rows (gives conv2 its 1-row halo), K = 3*CP_IN.
    M1 = (TH + 2) * W
    acc1 = jnp.zeros((M1, CP_OUT), jnp.float32)
    for kh in range(3):
        lhs = x_aug[kh:kh + TH + 2].reshape(M1, 3 * CP_IN)
        acc1 = acc1 + jnp.dot(lhs, w1_ref[kh], preferred_element_type=jnp.float32)
    y1 = jnp.maximum(acc1 * s1_ref[...] + t1_ref[...], 0.0)   # folded BN1 + ReLU
    y1 = y1.reshape(TH + 2, W, CP_OUT)

    # conv2's SAME padding: y1 halo rows outside the image must be exactly zero.
    ry = lax.broadcasted_iota(jnp.int32, y1.shape, 0)
    y1 = jnp.where(jnp.logical_and(is_first, ry == 0), 0.0, y1)
    y1 = jnp.where(jnp.logical_and(is_last, ry == TH + 1), 0.0, y1)

    # ---- conv2, same structure, K = 3*CP_OUT.
    y1_aug = jnp.concatenate(
        [_shift_w(y1, 1), y1, _shift_w(y1, -1)], axis=-1
    ).astype(jnp.bfloat16)
    M2 = TH * W
    acc2 = jnp.zeros((M2, CP_OUT), jnp.float32)
    for kh in range(3):
        lhs = y1_aug[kh:kh + TH].reshape(M2, 3 * CP_OUT)
        acc2 = acc2 + jnp.dot(lhs, w2_ref[kh], preferred_element_type=jnp.float32)
    y2 = jnp.maximum(acc2 * s2_ref[...] + t2_ref[...], 0.0)   # folded BN2 + ReLU

    o_ref[...] = y2.reshape(1, TH, W, CP_OUT).astype(o_ref.dtype)


@jax.jit
def double_conv_pallas(x_nchw, w1, s1, t1, w2, s2, t2):
    N, Cin, H, W = x_nchw.shape
    Cout = w1.shape[-1]
    if H % 2 != 0 or W % 8 != 0:
        raise NotImplementedError("kernel assumes even H and W % 8 == 0")

    CP_IN = _round_up(Cin, LANE)
    CP_OUT = _round_up(Cout, LANE)
    TH = 8 if (H % 8 == 0 and H > 8) else H          # row tile, H % TH == 0
    n_tiles = H // TH
    th2 = TH // 2

    # NCHW -> NHWC + lane-dense channel pad (no spatial pad; halo is in-kernel).
    x = jnp.transpose(x_nchw, (0, 2, 3, 1))
    x = jnp.pad(x, ((0, 0), (0, 0), (0, 0), (0, CP_IN - Cin)))

    # Weights: pad channels, fold kw into K, cast bf16 (f32 accumulation in-kernel).
    w1p = jnp.pad(w1, ((0, 0), (0, 0), (0, CP_IN - Cin), (0, CP_OUT - Cout)))
    w1p = w1p.reshape(3, 3 * CP_IN, CP_OUT).astype(jnp.bfloat16)
    w2p = jnp.pad(w2, ((0, 0), (0, 0), (0, CP_OUT - Cout), (0, CP_OUT - Cout)))
    w2p = w2p.reshape(3, 3 * CP_OUT, CP_OUT).astype(jnp.bfloat16)

    def pad_c(v):
        return jnp.pad(v.reshape(1, Cout).astype(jnp.float32),
                       ((0, 0), (0, CP_OUT - Cout)))

    s1p, t1p, s2p, t2p = pad_c(s1), pad_c(t1), pad_c(s2), pad_c(t2)

    out = pl.pallas_call(
        _double_conv_kernel,
        out_shape=jax.ShapeDtypeStruct((N, H, W, CP_OUT), jnp.float32),
        grid_spec=pltpu.PrefetchScalarGridSpec(
            num_scalar_prefetch=0,
            grid=(N, n_tiles),
            in_specs=[
                # centre rows [i*TH, i*TH+TH)
                pl.BlockSpec((1, TH, W, CP_IN), lambda n, i: (n, i, 0, 0)),
                # 2-row top halo [i*TH-2, i*TH), clamped; zeroed in-kernel at i==0
                pl.BlockSpec((1, 2, W, CP_IN),
                             lambda n, i: (n, jnp.maximum(i * th2 - 1, 0), 0, 0)),
                # 2-row bottom halo [i*TH+TH, i*TH+TH+2), clamped; zeroed at last i
                pl.BlockSpec((1, 2, W, CP_IN),
                             lambda n, i: (n, jnp.minimum((i + 1) * th2, H // 2 - 1), 0, 0)),
                pl.BlockSpec((3, 3 * CP_IN, CP_OUT), lambda n, i: (0, 0, 0)),
                pl.BlockSpec((1, CP_OUT), lambda n, i: (0, 0)),
                pl.BlockSpec((1, CP_OUT), lambda n, i: (0, 0)),
                pl.BlockSpec((3, 3 * CP_OUT, CP_OUT), lambda n, i: (0, 0, 0)),
                pl.BlockSpec((1, CP_OUT), lambda n, i: (0, 0)),
                pl.BlockSpec((1, CP_OUT), lambda n, i: (0, 0)),
            ],
            out_specs=pl.BlockSpec((1, TH, W, CP_OUT), lambda n, i: (n, i, 0, 0)),
        ),
        compiler_params=pltpu.CompilerParams(
            dimension_semantics=("parallel", "parallel")),
    )(x, x, x, w1p, s1p, t1p, w2p, s2p, t2p)

    return jnp.transpose(out[..., :Cout], (0, 3, 1, 2))   # back to NCHW


def _ref_double_conv(x_nchw, w1, s1, t1, w2, s2, t2):
    """Plain-JAX reference (bf16 matmul inputs, f32 accumulation, folded BN)."""
    x = jnp.transpose(x_nchw, (0, 2, 3, 1)).astype(jnp.bfloat16)
    dn = lax.conv_dimension_numbers(x.shape, w1.shape, ("NHWC", "HWIO", "NHWC"))
    y = lax.conv_general_dilated(x, w1.astype(jnp.bfloat16), (1, 1), "SAME",
                                 dimension_numbers=dn,
                                 preferred_element_type=jnp.float32)
    y = jnp.maximum(y * s1 + t1, 0.0).astype(jnp.bfloat16)
    dn2 = lax.conv_dimension_numbers(y.shape, w2.shape, ("NHWC", "HWIO", "NHWC"))
    y = lax.conv_general_dilated(y, w2.astype(jnp.bfloat16), (1, 1), "SAME",
                                 dimension_numbers=dn2,
                                 preferred_element_type=jnp.float32)
    y = jnp.maximum(y * s2 + t2, 0.0)
    return jnp.transpose(y, (0, 3, 1, 2))


def _fold_bn(bias, gamma, beta, mean, var, eps=1e-5):
    scale = gamma / jnp.sqrt(var + eps)
    shift = (bias - mean) * scale + beta
    return scale.astype(jnp.float32), shift.astype(jnp.float32)


if __name__ == "__main__":
    key = jax.random.PRNGKey(0)
    N, Cin, Cout, H, W = 2, 4, 8, 16, 16

    ks = jax.random.split(key, 12)
    x = jax.random.normal(ks[0], (N, Cin, H, W), jnp.float32)

    # Conv1 / BN1 parameters (deterministic synthetic init, HWIO weights)
    w1 = 0.1 * jax.random.normal(ks[1], (3, 3, Cin, Cout), jnp.float32)
    b1 = 0.1 * jax.random.normal(ks[2], (Cout,), jnp.float32)
    g1 = 1.0 + 0.1 * jax.random.normal(ks[3], (Cout,), jnp.float32)
    be1 = 0.1 * jax.random.normal(ks[4], (Cout,), jnp.float32)
    m1 = 0.1 * jax.random.normal(ks[5], (Cout,), jnp.float32)
    v1 = 1.0 + jnp.abs(0.1 * jax.random.normal(ks[6], (Cout,), jnp.float32))

    # Conv2 / BN2 parameters
    w2 = 0.1 * jax.random.normal(ks[7], (3, 3, Cout, Cout), jnp.float32)
    b2 = 0.1 * jax.random.normal(ks[8], (Cout,), jnp.float32)
    g2 = 1.0 + 0.1 * jax.random.normal(ks[9], (Cout,), jnp.float32)
    be2 = 0.1 * jax.random.normal(ks[10], (Cout,), jnp.float32)
    m2 = 0.1 * jax.random.normal(ks[11], (Cout,), jnp.float32)
    v2 = jnp.ones((Cout,), jnp.float32)

    s1, t1 = _fold_bn(b1, g1, be1, m1, v1)
    s2, t2 = _fold_bn(b2, g2, be2, m2, v2)

    out = double_conv_pallas(x, w1, s1, t1, w2, s2, t2)
    out = jax.block_until_ready(out)

    ref = jax.block_until_ready(_ref_double_conv(x, w1, s1, t1, w2, s2, t2))
    assert out.shape == (N, Cout, H, W)
    assert np.allclose(np.asarray(out), np.asarray(ref), atol=1e-2, rtol=1e-2)

    print("KERNEL_OK")
</pallas_src>

<mosaic_0001>
module attributes {stable_mosaic.version = 11 : i64} {
  func.func @_double_conv_kernel(%arg0: i32, %arg1: i32, %arg2: memref<1x8x16x128xf32, #tpu.memory_space<vmem>>, %arg3: memref<1x2x16x128xf32, #tpu.memory_space<vmem>>, %arg4: memref<1x2x16x128xf32, #tpu.memory_space<vmem>>, %arg5: memref<3x384x128xbf16, #tpu.memory_space<vmem>>, %arg6: memref<1x128xf32, #tpu.memory_space<vmem>>, %arg7: memref<1x128xf32, #tpu.memory_space<vmem>>, %arg8: memref<3x384x128xbf16, #tpu.memory_space<vmem>>, %arg9: memref<1x128xf32, #tpu.memory_space<vmem>>, %arg10: memref<1x128xf32, #tpu.memory_space<vmem>>, %arg11: memref<1x8x16x128xf32, #tpu.memory_space<vmem>>) attributes {dimension_semantics = [#tpu.dimension_semantics<parallel>, #tpu.dimension_semantics<parallel>], iteration_bounds = array<i64: 2, 2>, scalar_prefetch = 0 : i64, scratch_operands = 0 : i64, tpu.core_type = #tpu.core_type<tc>, window_params = [{transform_indices = @transform_0, window_bounds = array<i64: 1, 8, 16, 128>}, {transform_indices = @transform_1, window_bounds = array<i64: 1, 2, 16, 128>}, {transform_indices = @transform_2, window_bounds = array<i64: 1, 2, 16, 128>}, {pipeline_mode = #tpu.pipeline_mode<synchronous>, transform_indices = @transform_3, window_bounds = array<i64: 3, 384, 128>}, {pipeline_mode = #tpu.pipeline_mode<synchronous>, transform_indices = @transform_4, window_bounds = array<i64: 1, 128>}, {pipeline_mode = #tpu.pipeline_mode<synchronous>, transform_indices = @transform_5, window_bounds = array<i64: 1, 128>}, {pipeline_mode = #tpu.pipeline_mode<synchronous>, transform_indices = @transform_6, window_bounds = array<i64: 3, 384, 128>}, {pipeline_mode = #tpu.pipeline_mode<synchronous>, transform_indices = @transform_7, window_bounds = array<i64: 1, 128>}, {pipeline_mode = #tpu.pipeline_mode<synchronous>, transform_indices = @transform_8, window_bounds = array<i64: 1, 128>}, {transform_indices = @transform_9, window_bounds = array<i64: 1, 8, 16, 128>}]} {
    %c0_i32 = arith.constant 0 : i32
    %0 = arith.cmpi eq, %arg1, %c0_i32 : i32
    %c1_i32 = arith.constant 1 : i32
    %1 = arith.cmpi eq, %arg1, %c1_i32 : i32
    %c0 = arith.constant 0 : index
    %c0_0 = arith.constant 0 : index
    %c0_1 = arith.constant 0 : index
    %c0_2 = arith.constant 0 : index
    %2 = vector.load %arg3[%c0, %c0_0, %c0_1, %c0_2] : memref<1x2x16x128xf32, #tpu.memory_space<vmem>>, vector<1x2x16x128xf32>
    %3 = vector.shape_cast %2 : vector<1x2x16x128xf32> to vector<2x16x128xf32>
    %c0_3 = arith.constant 0 : index
    %c0_4 = arith.constant 0 : index
    %c0_5 = arith.constant 0 : index
    %c0_6 = arith.constant 0 : index
    %4 = vector.load %arg2[%c0_3, %c0_4, %c0_5, %c0_6] : memref<1x8x16x128xf32, #tpu.memory_space<vmem>>, vector<1x8x16x128xf32>
    %5 = vector.shape_cast %4 : vector<1x8x16x128xf32> to vector<8x16x128xf32>
    %c0_7 = arith.constant 0 : index
    %c0_8 = arith.constant 0 : index
    %c0_9 = arith.constant 0 : index
    %c0_10 = arith.constant 0 : index
    %6 = vector.load %arg4[%c0_7, %c0_8, %c0_9, %c0_10] : memref<1x2x16x128xf32, #tpu.memory_space<vmem>>, vector<1x2x16x128xf32>
    %7 = vector.shape_cast %6 : vector<1x2x16x128xf32> to vector<2x16x128xf32>
    %8 = tpu.concatenate %3, %5, %7 in 0 : vector<2x16x128xf32>, vector<8x16x128xf32>, vector<2x16x128xf32> -> vector<12x16x128xf32>
    %9 = tpu.iota {dimensions = array<i32: 0>} : vector<12x16x128xi32>
    %c2_i32 = arith.constant 2 : i32
    %10 = vector.broadcast %c2_i32 : i32 to vector<12x16x128xi32>
    %11 = arith.cmpi slt, %9, %10 : vector<12x16x128xi32>
    %12 = vector.broadcast %0 : i1 to vector<12x16x128xi1>
    %13 = arith.andi %12, %11 : vector<12x16x128xi1>
    %cst = arith.constant 0.000000e+00 : f32
    %14 = vector.broadcast %cst : f32 to vector<12x16x128xf32>
    %15 = arith.select %13, %14, %8 : vector<12x16x128xi1>, vector<12x16x128xf32>
    %c10_i32 = arith.constant 10 : i32
    %16 = vector.broadcast %c10_i32 : i32 to vector<12x16x128xi32>
    %17 = arith.cmpi sge, %9, %16 : vector<12x16x128xi32>
    %18 = vector.broadcast %1 : i1 to vector<12x16x128xi1>
    %19 = arith.andi %18, %17 : vector<12x16x128xi1>
    %cst_11 = arith.constant 0.000000e+00 : f32
    %20 = vector.broadcast %cst_11 : f32 to vector<12x16x128xf32>
    %21 = arith.select %19, %20, %15 : vector<12x16x128xi1>, vector<12x16x128xf32>
    %cst_12 = arith.constant 0.000000e+00 : f32
    %22 = vector.broadcast %cst_12 : f32 to vector<12x1x128xf32>
    %23 = vector.extract_strided_slice %21 {offsets = [0, 0, 0], sizes = [12, 15, 128], strides = [1, 1, 1]} : vector<12x16x128xf32> to vector<12x15x128xf32>
    %24 = tpu.concatenate %22, %23 in 1 : vector<12x1x128xf32>, vector<12x15x128xf32> -> vector<12x16x128xf32>
    %cst_13 = arith.constant 0.000000e+00 : f32
    %25 = vector.broadcast %cst_13 : f32 to vector<12x1x128xf32>
    %26 = vector.extract_strided_slice %21 {offsets = [0, 1, 0], sizes = [12, 15, 128], strides = [1, 1, 1]} : vector<12x16x128xf32> to vector<12x15x128xf32>
    %27 = tpu.concatenate %26, %25 in 1 : vector<12x15x128xf32>, vector<12x1x128xf32> -> vector<12x16x128xf32>
    %28 = tpu.concatenate %24, %21, %27 in 2 : vector<12x16x128xf32>, vector<12x16x128xf32>, vector<12x16x128xf32> -> vector<12x16x384xf32>
    %29 = arith.truncf %28 : vector<12x16x384xf32> to vector<12x16x384xbf16>
    %cst_14 = arith.constant 0.000000e+00 : f32
    %30 = vector.broadcast %cst_14 : f32 to vector<160x128xf32>
    %31 = vector.extract_strided_slice %29 {offsets = [0, 0, 0], sizes = [10, 16, 384], strides = [1, 1, 1]} : vector<12x16x384xbf16> to vector<10x16x384xbf16>
    %32 = vector.shape_cast %31 : vector<10x16x384xbf16> to vector<160x384xbf16>
    %c0_15 = arith.constant 0 : index
    %c0_16 = arith.constant 0 : index
    %c0_17 = arith.constant 0 : index
    %33 = vector.load %arg5[%c0_15, %c0_16, %c0_17] : memref<3x384x128xbf16, #tpu.memory_space<vmem>>, vector<1x384x128xbf16>
    %34 = vector.shape_cast %33 : vector<1x384x128xbf16> to vector<384x128xbf16>
    %cst_18 = arith.constant dense<0.000000e+00> : vector<160x128xf32>
    %35 = tpu.matmul %32, %34, %cst_18 {dimension_numbers = #tpu.dot_dimension_numbers<[1], [0], [0], [1], [0, 0, 1, 1], [], []>} : vector<160x384xbf16>, vector<384x128xbf16>, vector<160x128xf32> -> vector<160x128xf32>
    %36 = arith.addf %30, %35 : vector<160x128xf32>
    %37 = vector.extract_strided_slice %29 {offsets = [1, 0, 0], sizes = [10, 16, 384], strides = [1, 1, 1]} : vector<12x16x384xbf16> to vector<10x16x384xbf16>
    %38 = vector.shape_cast %37 : vector<10x16x384xbf16> to vector<160x384xbf16>
    %c1 = arith.constant 1 : index
    %c0_19 = arith.constant 0 : index
    %c0_20 = arith.constant 0 : index
    %39 = vector.load %arg5[%c1, %c0_19, %c0_20] : memref<3x384x128xbf16, #tpu.memory_space<vmem>>, vector<1x384x128xbf16>
    %40 = vector.shape_cast %39 : vector<1x384x128xbf16> to vector<384x128xbf16>
    %cst_21 = arith.constant dense<0.000000e+00> : vector<160x128xf32>
    %41 = tpu.matmul %38, %40, %cst_21 {dimension_numbers = #tpu.dot_dimension_numbers<[1], [0], [0], [1], [0, 0, 1, 1], [], []>} : vector<160x384xbf16>, vector<384x128xbf16>, vector<160x128xf32> -> vector<160x128xf32>
    %42 = arith.addf %36, %41 : vector<160x128xf32>
    %43 = vector.extract_strided_slice %29 {offsets = [2, 0, 0], sizes = [10, 16, 384], strides = [1, 1, 1]} : vector<12x16x384xbf16> to vector<10x16x384xbf16>
    %44 = vector.shape_cast %43 : vector<10x16x384xbf16> to vector<160x384xbf16>
    %c2 = arith.constant 2 : index
    %c0_22 = arith.constant 0 : index
    %c0_23 = arith.constant 0 : index
    %45 = vector.load %arg5[%c2, %c0_22, %c0_23] : memref<3x384x128xbf16, #tpu.memory_space<vmem>>, vector<1x384x128xbf16>
    %46 = vector.shape_cast %45 : vector<1x384x128xbf16> to vector<384x128xbf16>
    %cst_24 = arith.constant dense<0.000000e+00> : vector<160x128xf32>
    %47 = tpu.matmul %44, %46, %cst_24 {dimension_numbers = #tpu.dot_dimension_numbers<[1], [0], [0], [1], [0, 0, 1, 1], [], []>} : vector<160x384xbf16>, vector<384x128xbf16>, vector<160x128xf32> -> vector<160x128xf32>
    %48 = arith.addf %42, %47 : vector<160x128xf32>
    %c0_25 = arith.constant 0 : index
    %c0_26 = arith.constant 0 : index
    %49 = vector.load %arg6[%c0_25, %c0_26] : memref<1x128xf32, #tpu.memory_space<vmem>>, vector<1x128xf32>
    %50 = vector.broadcast %49 : vector<1x128xf32> to vector<160x128xf32>
    %51 = arith.mulf %48, %50 : vector<160x128xf32>
    %c0_27 = arith.constant 0 : index
    %c0_28 = arith.constant 0 : index
    %52 = vector.load %arg7[%c0_27, %c0_28] : memref<1x128xf32, #tpu.memory_space<vmem>>, vector<1x128xf32>
    %53 = vector.broadcast %52 : vector<1x128xf32> to vector<160x128xf32>
    %54 = arith.addf %51, %53 : vector<160x128xf32>
    %cst_29 = arith.constant 0.000000e+00 : f32
    %55 = vector.broadcast %cst_29 : f32 to vector<160x128xf32>
    %56 = arith.maximumf %54, %55 : vector<160x128xf32>
    %57 = vector.shape_cast %56 : vector<160x128xf32> to vector<10x16x128xf32>
    %58 = tpu.iota {dimensions = array<i32: 0>} : vector<10x16x128xi32>
    %c0_i32_30 = arith.constant 0 : i32
    %59 = vector.broadcast %c0_i32_30 : i32 to vector<10x16x128xi32>
    %60 = arith.cmpi eq, %58, %59 : vector<10x16x128xi32>
    %61 = vector.broadcast %0 : i1 to vector<10x16x128xi1>
    %62 = arith.andi %61, %60 : vector<10x16x128xi1>
    %cst_31 = arith.constant 0.000000e+00 : f32
    %63 = vector.broadcast %cst_31 : f32 to vector<10x16x128xf32>
    %64 = arith.select %62, %63, %57 : vector<10x16x128xi1>, vector<10x16x128xf32>
    %c9_i32 = arith.constant 9 : i32
    %65 = vector.broadcast %c9_i32 : i32 to vector<10x16x128xi32>
    %66 = arith.cmpi eq, %58, %65 : vector<10x16x128xi32>
    %67 = vector.broadcast %1 : i1 to vector<10x16x128xi1>
    %68 = arith.andi %67, %66 : vector<10x16x128xi1>
    %cst_32 = arith.constant 0.000000e+00 : f32
    %69 = vector.broadcast %cst_32 : f32 to vector<10x16x128xf32>
    %70 = arith.select %68, %69, %64 : vector<10x16x128xi1>, vector<10x16x128xf32>
    %cst_33 = arith.constant 0.000000e+00 : f32
    %71 = vector.broadcast %cst_33 : f32 to vector<10x1x128xf32>
    %72 = vector.extract_strided_slice %70 {offsets = [0, 0, 0], sizes = [10, 15, 128], strides = [1, 1, 1]} : vector<10x16x128xf32> to vector<10x15x128xf32>
    %73 = tpu.concatenate %71, %72 in 1 : vector<10x1x128xf32>, vector<10x15x128xf32> -> vector<10x16x128xf32>
    %cst_34 = arith.constant 0.000000e+00 : f32
    %74 = vector.broadcast %cst_34 : f32 to vector<10x1x128xf32>
    %75 = vector.extract_strided_slice %70 {offsets = [0, 1, 0], sizes = [10, 15, 128], strides = [1, 1, 1]} : vector<10x16x128xf32> to vector<10x15x128xf32>
    %76 = tpu.concatenate %75, %74 in 1 : vector<10x15x128xf32>, vector<10x1x128xf32> -> vector<10x16x128xf32>
    %77 = tpu.concatenate %73, %70, %76 in 2 : vector<10x16x128xf32>, vector<10x16x128xf32>, vector<10x16x128xf32> -> vector<10x16x384xf32>
    %78 = arith.truncf %77 : vector<10x16x384xf32> to vector<10x16x384xbf16>
    %cst_35 = arith.constant 0.000000e+00 : f32
    %79 = vector.broadcast %cst_35 : f32 to vector<128x128xf32>
    %80 = vector.extract_strided_slice %78 {offsets = [0, 0, 0], sizes = [8, 16, 384], strides = [1, 1, 1]} : vector<10x16x384xbf16> to vector<8x16x384xbf16>
    %81 = vector.shape_cast %80 : vector<8x16x384xbf16> to vector<128x384xbf16>
    %c0_36 = arith.constant 0 : index
    %c0_37 = arith.constant 0 : index
    %c0_38 = arith.constant 0 : index
    %82 = vector.load %arg8[%c0_36, %c0_37, %c0_38] : memref<3x384x128xbf16, #tpu.memory_space<vmem>>, vector<1x384x128xbf16>
    %83 = vector.shape_cast %82 : vector<1x384x128xbf16> to vector<384x128xbf16>
    %cst_39 = arith.constant dense<0.000000e+00> : vector<128x128xf32>
    %84 = tpu.matmul %81, %83, %cst_39 {dimension_numbers = #tpu.dot_dimension_numbers<[1], [0], [0], [1], [0, 0, 1, 1], [], []>} : vector<128x384xbf16>, vector<384x128xbf16>, vector<128x128xf32> -> vector<128x128xf32>
    %85 = arith.addf %79, %84 : vector<128x128xf32>
    %86 = vector.extract_strided_slice %78 {offsets = [1, 0, 0], sizes = [8, 16, 384], strides = [1, 1, 1]} : vector<10x16x384xbf16> to vector<8x16x384xbf16>
    %87 = vector.shape_cast %86 : vector<8x16x384xbf16> to vector<128x384xbf16>
    %c1_40 = arith.constant 1 : index
    %c0_41 = arith.constant 0 : index
    %c0_42 = arith.constant 0 : index
    %88 = vector.load %arg8[%c1_40, %c0_41, %c0_42] : memref<3x384x128xbf16, #tpu.memory_space<vmem>>, vector<1x384x128xbf16>
    %89 = vector.shape_cast %88 : vector<1x384x128xbf16> to vector<384x128xbf16>
    %cst_43 = arith.constant dense<0.000000e+00> : vector<128x128xf32>
    %90 = tpu.matmul %87, %89, %cst_43 {dimension_numbers = #tpu.dot_dimension_numbers<[1], [0], [0], [1], [0, 0, 1, 1], [], []>} : vector<128x384xbf16>, vector<384x128xbf16>, vector<128x128xf32> -> vector<128x128xf32>
    %91 = arith.addf %85, %90 : vector<128x128xf32>
    %92 = vector.extract_strided_slice %78 {offsets = [2, 0, 0], sizes = [8, 16, 384], strides = [1, 1, 1]} : vector<10x16x384xbf16> to vector<8x16x384xbf16>
    %93 = vector.shape_cast %92 : vector<8x16x384xbf16> to vector<128x384xbf16>
    %c2_44 = arith.constant 2 : index
    %c0_45 = arith.constant 0 : index
    %c0_46 = arith.constant 0 : index
    %94 = vector.load %arg8[%c2_44, %c0_45, %c0_46] : memref<3x384x128xbf16, #tpu.memory_space<vmem>>, vector<1x384x128xbf16>
    %95 = vector.shape_cast %94 : vector<1x384x128xbf16> to vector<384x128xbf16>
    %cst_47 = arith.constant dense<0.000000e+00> : vector<128x128xf32>
    %96 = tpu.matmul %93, %95, %cst_47 {dimension_numbers = #tpu.dot_dimension_numbers<[1], [0], [0], [1], [0, 0, 1, 1], [], []>} : vector<128x384xbf16>, vector<384x128xbf16>, vector<128x128xf32> -> vector<128x128xf32>
    %97 = arith.addf %91, %96 : vector<128x128xf32>
    %c0_48 = arith.constant 0 : index
    %c0_49 = arith.constant 0 : index
    %98 = vector.load %arg9[%c0_48, %c0_49] : memref<1x128xf32, #tpu.memory_space<vmem>>, vector<1x128xf32>
    %99 = vector.broadcast %98 : vector<1x128xf32> to vector<128x128xf32>
    %100 = arith.mulf %97, %99 : vector<128x128xf32>
    %c0_50 = arith.constant 0 : index
    %c0_51 = arith.constant 0 : index
    %101 = vector.load %arg10[%c0_50, %c0_51] : memref<1x128xf32, #tpu.memory_space<vmem>>, vector<1x128xf32>
    %102 = vector.broadcast %101 : vector<1x128xf32> to vector<128x128xf32>
    %103 = arith.addf %100, %102 : vector<128x128xf32>
    %cst_52 = arith.constant 0.000000e+00 : f32
    %104 = vector.broadcast %cst_52 : f32 to vector<128x128xf32>
    %105 = arith.maximumf %103, %104 : vector<128x128xf32>
    %106 = vector.shape_cast %105 : vector<128x128xf32> to vector<1x8x16x128xf32>
    %c0_53 = arith.constant 0 : index
    %c0_54 = arith.constant 0 : index
    %c0_55 = arith.constant 0 : index
    %c0_56 = arith.constant 0 : index
    %107 = vector.load %arg11[%c0_53, %c0_54, %c0_55, %c0_56] : memref<1x8x16x128xf32, #tpu.memory_space<vmem>>, vector<1x8x16x128xf32>
    tpu.vector_store %arg11[%c0_53, %c0_54, %c0_55, %c0_56], %106 {strides = array<i32>} : memref<1x8x16x128xf32, #tpu.memory_space<vmem>>, vector<1x8x16x128xf32>,
    return
  }
  func.func @transform_0(%arg0: i32, %arg1: i32) -> (i32, i32, i32, i32) {
    %c0_i32 = arith.constant 0 : i32
    %c0_i32_0 = arith.constant 0 : i32
    %c0_i32_1 = arith.constant 0 : i32
    return %arg0, %arg1, %c0_i32, %c0_i32_0 : i32, i32, i32, i32
  }
  func.func @transform_1(%arg0: i32, %arg1: i32) -> (i32, i32, i32, i32) {
    %c4_i32 = arith.constant 4 : i32
    %0 = arith.muli %arg1, %c4_i32 : i32
    %c1_i32 = arith.constant 1 : i32
    %1 = arith.subi %0, %c1_i32 : i32
    %c0_i32 = arith.constant 0 : i32
    %2 = arith.maxsi %1, %c0_i32 : i32
    %c0_i32_0 = arith.constant 0 : i32
    %c0_i32_1 = arith.constant 0 : i32
    %c0_i32_2 = arith.constant 0 : i32
    return %arg0, %2, %c0_i32_0, %c0_i32_1 : i32, i32, i32, i32
  }
  func.func @transform_2(%arg0: i32, %arg1: i32) -> (i32, i32, i32, i32) {
    %c1_i32 = arith.constant 1 : i32
    %0 = arith.addi %arg1, %c1_i32 : i32
    %c4_i32 = arith.constant 4 : i32
    %1 = arith.muli %0, %c4_i32 : i32
    %c7_i32 = arith.constant 7 : i32
    %2 = arith.minsi %1, %c7_i32 : i32
    %c0_i32 = arith.constant 0 : i32
    %c0_i32_0 = arith.constant 0 : i32
    %c0_i32_1 = arith.constant 0 : i32
    return %arg0, %2, %c0_i32, %c0_i32_0 : i32, i32, i32, i32
  }
  func.func @transform_3(%arg0: i32, %arg1: i32) -> (i32, i32, i32) {
    %c0_i32 = arith.constant 0 : i32
    %c0_i32_0 = arith.constant 0 : i32
    %c0_i32_1 = arith.constant 0 : i32
    %c0_i32_2 = arith.constant 0 : i32
    return %c0_i32, %c0_i32_0, %c0_i32_1 : i32, i32, i32
  }
  func.func @transform_4(%arg0: i32, %arg1: i32) -> (i32, i32) {
    %c0_i32 = arith.constant 0 : i32
    %c0_i32_0 = arith.constant 0 : i32
    %c0_i32_1 = arith.constant 0 : i32
    return %c0_i32, %c0_i32_0 : i32, i32
  }
  func.func @transform_5(%arg0: i32, %arg1: i32) -> (i32, i32) {
    %c0_i32 = arith.constant 0 : i32
    %c0_i32_0 = arith.constant 0 : i32
    %c0_i32_1 = arith.constant 0 : i32
    return %c0_i32, %c0_i32_0 : i32, i32
  }
  func.func @transform_6(%arg0: i32, %arg1: i32) -> (i32, i32, i32) {
    %c0_i32 = arith.constant 0 : i32
    %c0_i32_0 = arith.constant 0 : i32
    %c0_i32_1 = arith.constant 0 : i32
    %c0_i32_2 = arith.constant 0 : i32
    return %c0_i32, %c0_i32_0, %c0_i32_1 : i32, i32, i32
  }
  func.func @transform_7(%arg0: i32, %arg1: i32) -> (i32, i32) {
    %c0_i32 = arith.constant 0 : i32
    %c0_i32_0 = arith.constant 0 : i32
    %c0_i32_1 = arith.constant 0 : i32
    return %c0_i32, %c0_i32_0 : i32, i32
  }
  func.func @transform_8(%arg0: i32, %arg1: i32) -> (i32, i32) {
    %c0_i32 = arith.constant 0 : i32
    %c0_i32_0 = arith.constant 0 : i32
    %c0_i32_1 = arith.constant 0 : i32
    return %c0_i32, %c0_i32_0 : i32, i32
  }
  func.func @transform_9(%arg0: i32, %arg1: i32) -> (i32, i32, i32, i32) {
    %c0_i32 = arith.constant 0 : i32
    %c0_i32_0 = arith.constant 0 : i32
    %c0_i32_1 = arith.constant 0 : i32
    return %arg0, %arg1, %c0_i32, %c0_i32_0 : i32, i32, i32, i32
  }
}

</mosaic_0001>

<llo_original>
// kernel: double_conv_pallas.1
$region0: #{double_conv_pallas.1}
  #allocation0 [shape = 'u32[]', space=smem, size = 0x4, offset = 0x4, fixed_abs, tag = 'smem constant byte address 0x4 - core index']
  #allocation1 [shape = 'u32[144,128]{1,0:T(1,128)}', space=vmem, size = 0x12000, scoped, tag = 'internal scratch']
  %s0 = inlined_call_operand.vmem [shape: f32[2,16,16,128], index: 0, kind: input, shape index: {}, may-alias: {0,1,2}]
  %s1 = inlined_call_operand.vmem [shape: f32[2,16,16,128], index: 1, kind: input, shape index: {}, may-alias: {0,1,2}]
  %s2 = inlined_call_operand.vmem [shape: f32[2,16,16,128], index: 2, kind: input, shape index: {}, may-alias: {0,1,2}]
  %s3 = inlined_call_operand.vmem [shape: bf16[3,384,128], index: 3, kind: input, shape index: {}]
  %s4 = inlined_call_operand.vmem [shape: f32[1,128], index: 4, kind: input, shape index: {}]
  %s5 = inlined_call_operand.vmem [shape: f32[1,128], index: 5, kind: input, shape index: {}]
  %s6 = inlined_call_operand.vmem [shape: bf16[3,384,128], index: 6, kind: input, shape index: {}]
  %s7 = inlined_call_operand.vmem [shape: f32[1,128], index: 7, kind: input, shape index: {}]
  %s8 = inlined_call_operand.vmem [shape: f32[1,128], index: 8, kind: input, shape index: {}]
  %s9 = inlined_call_operand.vmem [shape: f32[2,16,16,128], index: 9, kind: output, shape index: {}]
  %s10 = sld [smem:[#allocation0]]
  $region69: #{double_conv_pallas.1} parent=0
    _
  %s12 = ssub.s32 1, %s10
  %s13 = scalar_select 0, %s12, %s10
  loop: start=0, step=1, limit=6
  $region2: #{double_conv_pallas.1} parent=0 // loop_pre_header
    _
  $region3: #{double_conv_pallas.1} parent=0 // loop_header
    %s15 = sphi 0, %s19
    %p16 = scmp.ge.s32.totalorder %s15, 6
    %s22 = sphi 0, %s34
    %s23 = sphi 0, %s30
    %s24 = sphi 0, %s22
    %s25 = sphi 0, %s23
    %s26 = sphi 0, %s24
    %s27 = sphi 0, %s25
    %s39 = sphi 0, %s41
    %s42 = sphi 0, %s39
    %s43 = sphi 0, %s42
    %s59 = sphi 0, %s43
    %s75 = sphi 0, %s77
    %s78 = sphi 0, %s75
    %s79 = sphi 0, %s78
    %s95 = sphi 0, %s79
    %s111 = sphi 0, %s113
    %s114 = sphi 0, %s111
    %s115 = sphi 0, %s114
    %s131 = sphi 0, %s115
    %s135 = sphi 0, %s135
    %s137 = sphi 0, %s135
    %s138 = sphi 0, %s137
    %s152 = sphi 0, %s138
    %s156 = sphi 0, %s156
    %s158 = sphi 0, %s156
    %s159 = sphi 0, %s158
    %s173 = sphi 0, %s159
    %s177 = sphi 0, %s177
    %s179 = sphi 0, %s177
    %s180 = sphi 0, %s179
    %s194 = sphi 0, %s180
    %s198 = sphi 0, %s198
    %s200 = sphi 0, %s198
    %s201 = sphi 0, %s200
    %s215 = sphi 0, %s201
    %s219 = sphi 0, %s219
    %s221 = sphi 0, %s219
    %s222 = sphi 0, %s221
    %s236 = sphi 0, %s222
    %s240 = sphi 0, %s240
    %s242 = sphi 0, %s240
    %s243 = sphi 0, %s242
    %s257 = sphi 0, %s243
    %s265 = sphi 0, %s267
    %s268 = sphi 0, %s265
    %s269 = sphi 0, %s268
    %s285 = sphi 0, %s269
  $region4: #{double_conv_pallas.1} parent=0 // loop_header_branch
    %18 = sbr.rel (%p16) target = $region8
  $region5: #{double_conv_pallas.1} parent=0 // loop_body
    %s20 = ssub.s32 %s15, 1
    %s21 = ssub.s32 %s15, 2
    %s28 = sadd.s32 1, %s23
    %p29 = scmp.ge.s32.totalorder %s28, 2
    %s30 = scalar_select %p29, 0, %s28
    %s31 = sadd.s32 1, %s22
    %s32 = scalar_select %p29, %s31, %s22
    %p33 = scmp.ge.s32.totalorder %s32, 2
    %s34 = scalar_select %p33, 0, %s32
    %s35 = ssub.s32 %s22, %s34
    %s36 = ssub.s32 %s23, %s30
    %s37 = sor.u32 %s35, %s36
    %p38 = scmp.eq.s32.totalorder %s37, 0
    %s40 = sadd.s32 %s39, 1
    %s41 = scalar_select %p38, %s39, %s40
    %p44 = pneg %p38
    %p45 = scmp.eq.s32.totalorder %s15, 3
    %p46 = por %p44, %p45
    %p47 = scmp.ne.s32.totalorder %s39, %s42
    %p48 = scmp.eq.s32.totalorder %s15, 0
    %p49 = por %p47, %p48
    %p50 = scmp.ne.s32.totalorder %s39, %s42
    %p51 = scmp.eq.s32.totalorder %s20, 3
    %p52 = por %p50, %p51
    %p53 = scmp.ne.s32.totalorder %s42, %s43
    %p54 = scmp.eq.s32.totalorder %s20, 0
    %p55 = por %p53, %p54
    %p56 = scmp.ne.s32.totalorder %s42, %s43
    %p57 = scmp.eq.s32.totalorder %s21, 3
    %p58 = por %p56, %p57
    %p60 = scmp.ne.s32.totalorder %s43, %s59
    %p61 = scmp.eq.s32.totalorder %s21, 0
    %p62 = por %p60, %p61
    %s63 = smul.u32 %s23, 4
    %s64 = ssub.s32 %s63, 1
    %p65 = scmp.gt.s32.totalorder %s64, 0
    %s66 = scalar_select %p65, %s64, 0
    %s67 = smul.u32 %s30, 4
    %s68 = ssub.s32 %s67, 1
    %p69 = scmp.gt.s32.totalorder %s68, 0
    %s70 = scalar_select %p69, %s68, 0
    %s71 = ssub.s32 %s22, %s34
    %s72 = ssub.s32 %s66, %s70
    %s73 = sor.u32 %s71, %s72
    %p74 = scmp.eq.s32.totalorder %s73, 0
    %s76 = sadd.s32 %s75, 1
    %s77 = scalar_select %p74, %s75, %s76
    %p80 = pneg %p74
    %p81 = scmp.eq.s32.totalorder %s15, 3
    %p82 = por %p80, %p81
    %p83 = scmp.ne.s32.totalorder %s75, %s78
    %p84 = scmp.eq.s32.totalorder %s15, 0
    %p85 = por %p83, %p84
    %p86 = scmp.ne.s32.totalorder %s75, %s78
    %p87 = scmp.eq.s32.totalorder %s20, 3
    %p88 = por %p86, %p87
    %p89 = scmp.ne.s32.totalorder %s78, %s79
    %p90 = scmp.eq.s32.totalorder %s20, 0
    %p91 = por %p89, %p90
    %p92 = scmp.ne.s32.totalorder %s78, %s79
    %p93 = scmp.eq.s32.totalorder %s21, 3
    %p94 = por %p92, %p93
    %p96 = scmp.ne.s32.totalorder %s79, %s95
    %p97 = scmp.eq.s32.totalorder %s21, 0
    %p98 = por %p96, %p97
    %s99 = sadd.s32 %s23, 1
    %s100 = smul.u32 %s99, 4
    %p101 = scmp.lt.s32.totalorder %s100, 7
    %s102 = scalar_select %p101, %s100, 7
    %s103 = sadd.s32 %s30, 1
    %s104 = smul.u32 %s103, 4
    %p105 = scmp.lt.s32.totalorder %s104, 7
    %s106 = scalar_select %p105, %s104, 7
    %s107 = ssub.s32 %s22, %s34
    %s108 = ssub.s32 %s102, %s106
    %s109 = sor.u32 %s107, %s108
    %p110 = scmp.eq.s32.totalorder %s109, 0
    %s112 = sadd.s32 %s111, 1
    %s113 = scalar_select %p110, %s111, %s112
    %p116 = pneg %p110
    %p117 = scmp.eq.s32.totalorder %s15, 3
    %p118 = por %p116, %p117
    %p119 = scmp.ne.s32.totalorder %s111, %s114
    %p120 = scmp.eq.s32.totalorder %s15, 0
    %p121 = por %p119, %p120
    %p122 = scmp.ne.s32.totalorder %s111, %s114
    %p123 = scmp.eq.s32.totalorder %s20, 3
    %p124 = por %p122, %p123
    %p125 = scmp.ne.s32.totalorder %s114, %s115
    %p126 = scmp.eq.s32.totalorder %s20, 0
    %p127 = por %p125, %p126
    %p128 = scmp.ne.s32.totalorder %s114, %s115
    %p129 = scmp.eq.s32.totalorder %s21, 3
    %p130 = por %p128, %p129
    %p132 = scmp.ne.s32.totalorder %s115, %s131
    %p133 = scmp.eq.s32.totalorder %s21, 0
    %p134 = por %p132, %p133
    %s136 = sadd.s32 %s135, 1
    %p139 = scmp.eq.s32.totalorder %s15, 3
    %p140 = scmp.ne.s32.totalorder %s135, %s137
    %p141 = scmp.eq.s32.totalorder %s15, 0
    %p142 = por %p140, %p141
    %p143 = scmp.ne.s32.totalorder %s135, %s137
    %p144 = scmp.eq.s32.totalorder %s20, 3
    %p145 = por %p143, %p144
    %p146 = scmp.ne.s32.totalorder %s137, %s138
    %p147 = scmp.eq.s32.totalorder %s20, 0
    %p148 = por %p146, %p147
    %p149 = scmp.ne.s32.totalorder %s137, %s138
    %p150 = scmp.eq.s32.totalorder %s21, 3
    %p151 = por %p149, %p150
    %p153 = scmp.ne.s32.totalorder %s138, %s152
    %p154 = scmp.eq.s32.totalorder %s21, 0
    %p155 = por %p153, %p154
    %s157 = sadd.s32 %s156, 1
    %p160 = scmp.eq.s32.totalorder %s15, 3
    %p161 = scmp.ne.s32.totalorder %s156, %s158
    %p162 = scmp.eq.s32.totalorder %s15, 0
    %p163 = por %p161, %p162
    %p164 = scmp.ne.s32.totalorder %s156, %s158
    %p165 = scmp.eq.s32.totalorder %s20, 3
    %p166 = por %p164, %p165
    %p167 = scmp.ne.s32.totalorder %s158, %s159
    %p168 = scmp.eq.s32.totalorder %s20, 0
    %p169 = por %p167, %p168
    %p170 = scmp.ne.s32.totalorder %s158, %s159
    %p171 = scmp.eq.s32.totalorder %s21, 3
    %p172 = por %p170, %p171
    %p174 = scmp.ne.s32.totalorder %s159, %s173
    %p175 = scmp.eq.s32.totalorder %s21, 0
    %p176 = por %p174, %p175
    %s178 = sadd.s32 %s177, 1
    %p181 = scmp.eq.s32.totalorder %s15, 3
    %p182 = scmp.ne.s32.totalorder %s177, %s179
    %p183 = scmp.eq.s32.totalorder %s15, 0
    %p184 = por %p182, %p183
    %p185 = scmp.ne.s32.totalorder %s177, %s179
    %p186 = scmp.eq.s32.totalorder %s20, 3
    %p187 = por %p185, %p186
    %p188 = scmp.ne.s32.totalorder %s179, %s180
    %p189 = scmp.eq.s32.totalorder %s20, 0
    %p190 = por %p188, %p189
    %p191 = scmp.ne.s32.totalorder %s179, %s180
    %p192 = scmp.eq.s32.totalorder %s21, 3
    %p193 = por %p191, %p192
    %p195 = scmp.ne.s32.totalorder %s180, %s194
    %p196 = scmp.eq.s32.totalorder %s21, 0
    %p197 = por %p195, %p196
    %s199 = sadd.s32 %s198, 1
    %p202 = scmp.eq.s32.totalorder %s15, 3
    %p203 = scmp.ne.s32.totalorder %s198, %s200
    %p204 = scmp.eq.s32.totalorder %s15, 0
    %p205 = por %p203, %p204
    %p206 = scmp.ne.s32.totalorder %s198, %s200
    %p207 = scmp.eq.s32.totalorder %s20, 3
    %p208 = por %p206, %p207
    %p209 = scmp.ne.s32.totalorder %s200, %s201
    %p210 = scmp.eq.s32.totalorder %s20, 0
    %p211 = por %p209, %p210
    %p212 = scmp.ne.s32.totalorder %s200, %s201
    %p213 = scmp.eq.s32.totalorder %s21, 3
    %p214 = por %p212, %p213
    %p216 = scmp.ne.s32.totalorder %s201, %s215
    %p217 = scmp.eq.s32.totalorder %s21, 0
    %p218 = por %p216, %p217
    %s220 = sadd.s32 %s219, 1
    %p223 = scmp.eq.s32.totalorder %s15, 3
    %p224 = scmp.ne.s32.totalorder %s219, %s221
    %p225 = scmp.eq.s32.totalorder %s15, 0
    %p226 = por %p224, %p225
    %p227 = scmp.ne.s32.totalorder %s219, %s221
    %p228 = scmp.eq.s32.totalorder %s20, 3
    %p229 = por %p227, %p228
    %p230 = scmp.ne.s32.totalorder %s221, %s222
    %p231 = scmp.eq.s32.totalorder %s20, 0
    %p232 = por %p230, %p231
    %p233 = scmp.ne.s32.totalorder %s221, %s222
    %p234 = scmp.eq.s32.totalorder %s21, 3
    %p235 = por %p233, %p234
    %p237 = scmp.ne.s32.totalorder %s222, %s236
    %p238 = scmp.eq.s32.totalorder %s21, 0
    %p239 = por %p237, %p238
    %s241 = sadd.s32 %s240, 1
    %p244 = scmp.eq.s32.totalorder %s15, 3
    %p245 = scmp.ne.s32.totalorder %s240, %s242
    %p246 = scmp.eq.s32.totalorder %s15, 0
    %p247 = por %p245, %p246
    %p248 = scmp.ne.s32.totalorder %s240, %s242
    %p249 = scmp.eq.s32.totalorder %s20, 3
    %p250 = por %p248, %p249
    %p251 = scmp.ne.s32.totalorder %s242, %s243
    %p252 = scmp.eq.s32.totalorder %s20, 0
    %p253 = por %p251, %p252
    %p254 = scmp.ne.s32.totalorder %s242, %s243
    %p255 = scmp.eq.s32.totalorder %s21, 3
    %p256 = por %p254, %p255
    %p258 = scmp.ne.s32.totalorder %s243, %s257
    %p259 = scmp.eq.s32.totalorder %s21, 0
    %p260 = por %p258, %p259
    %s261 = ssub.s32 %s22, %s34
    %s262 = ssub.s32 %s23, %s30
    %s263 = sor.u32 %s261, %s262
    %p264 = scmp.eq.s32.totalorder %s263, 0
    %s266 = sadd.s32 %s265, 1
    %s267 = scalar_select %p264, %s265, %s266
    %p270 = pneg %p264
    %p271 = scmp.eq.s32.totalorder %s15, 3
    %p272 = por %p270, %p271
    %p273 = scmp.ne.s32.totalorder %s265, %s268
    %p274 = scmp.eq.s32.totalorder %s15, 0
    %p275 = por %p273, %p274
    %p276 = scmp.ne.s32.totalorder %s265, %s268
    %p277 = scmp.eq.s32.totalorder %s20, 3
    %p278 = por %p276, %p277
    %p279 = scmp.ne.s32.totalorder %s268, %s269
    %p280 = scmp.eq.s32.totalorder %s20, 0
    %p281 = por %p279, %p280
    %p282 = scmp.ne.s32.totalorder %s268, %s269
    %p283 = scmp.eq.s32.totalorder %s21, 3
    %p284 = por %p282, %p283
    %p286 = scmp.ne.s32.totalorder %s269, %s285
    %p287 = scmp.eq.s32.totalorder %s21, 0
    %p288 = por %p286, %p287
    %p289 = scmp.le.s32.totalorder 1, %s15
    %p290 = scmp.lt.s32.totalorder %s15, 5
    %p291 = pnand %p289, %p290
    %p292 = pneg %p291
    // Predicated region
    $region9: #{double_conv_pallas.1} parent=5 // pred_check
      _
    $region10: #{double_conv_pallas.1} parent=5 // pred_check_branch
      %294 = sbr.rel (%p291) target = $region12
    $region11: #{double_conv_pallas.1} parent=5 // pred_region
      %s295 = ssub.s32 %s15, 1
      // Predicated region
      $region13: #{double_conv_pallas.1} parent=11 // pred_check
        %p296 = pneg %p148
      $region14: #{double_conv_pallas.1} parent=11 // pred_check_branch
        %298 = sbr.rel (%p296) target = $region16
      $region15: #{double_conv_pallas.1} parent=11 // pred_region
        _
      $region16: #{double_conv_pallas.1} parent=11 // pred_fallthru
        _
      // Predicated region
      $region17: #{double_conv_pallas.1} parent=11 // pred_check
        %p299 = pneg %p169
      $region18: #{double_conv_pallas.1} parent=11 // pred_check_branch
        %301 = sbr.rel (%p299) target = $region20
      $region19: #{double_conv_pallas.1} parent=11 // pred_region
        _
      $region20: #{double_conv_pallas.1} parent=11 // pred_fallthru
        _
      // Predicated region
      $region21: #{double_conv_pallas.1} parent=11 // pred_check
        %p302 = pneg %p190
      $region22: #{double_conv_pallas.1} parent=11 // pred_check_branch
        %304 = sbr.rel (%p302) target = $region24
      $region23: #{double_conv_pallas.1} parent=11 // pred_region
        _
      $region24: #{double_conv_pallas.1} parent=11 // pred_fallthru
        _
      // Predicated region
      $region25: #{double_conv_pallas.1} parent=11 // pred_check
        %p305 = pneg %p211
      $region26: #{double_conv_pallas.1} parent=11 // pred_check_branch
        %307 = sbr.rel (%p305) target = $region28
      $region27: #{double_conv_pallas.1} parent=11 // pred_region
        _
      $region28: #{double_conv_pallas.1} parent=11 // pred_fallthru
        _
      // Predicated region
      $region29: #{double_conv_pallas.1} parent=11 // pred_check
        %p308 = pneg %p232
      $region30: #{double_conv_pallas.1} parent=11 // pred_check_branch
        %310 = sbr.rel (%p308) target = $region32
      $region31: #{double_conv_pallas.1} parent=11 // pred_region
        _
      $region32: #{double_conv_pallas.1} parent=11 // pred_fallthru
        _
      // Predicated region
      $region33: #{double_conv_pallas.1} parent=11 // pred_check
        %p311 = pneg %p253
      $region34: #{double_conv_pallas.1} parent=11 // pred_check_branch
        %313 = sbr.rel (%p311) target = $region36
      $region35: #{double_conv_pallas.1} parent=11 // pred_region
        _
      $region36: #{double_conv_pallas.1} parent=11 // pred_fallthru
        _
    $region12: #{double_conv_pallas.1} parent=5 // pred_fallthru
      _
    %p314 = scmp.lt.s32.totalorder %s15, 4
    // Predicated region
    $region37: #{double_conv_pallas.1} parent=5 // pred_check
      %p315 = pneg %p314
    $region38: #{double_conv_pallas.1} parent=5 // pred_check_branch
      %317 = sbr.rel (%p315) target = $region40
    $region39: #{double_conv_pallas.1} parent=5 // pred_region
      // Predicated region
      $region41: #{double_conv_pallas.1} parent=39 // pred_check
        %p318 = pneg %p49
      $region42: #{double_conv_pallas.1} parent=39 // pred_check_branch
        %320 = sbr.rel (%p318) target = $region44
      $region43: #{double_conv_pallas.1} parent=39 // pred_region
        %s321 = smul.u32 8, %s23
        %p322 = scmp.lt.s32.totalorder %s22, 1
        %s323 = scalar_select %p322, %s22, 1
        %p324 = scmp.lt.s32.totalorder %s321, 15
        %s325 = scalar_select %p324, %s321, 15
        %s326 = smul.addr %s325, 2
        %s327 = smul.addr %s323, 32
        %s328 = sadd.s32 %s326, %s327
        %s329 = smul.addr %s328, 8
        %s330 = scalar_lea.vmem %s0, %s329
        %s331 = smul.u32 8, %s23
      $region44: #{double_conv_pallas.1} parent=39 // pred_fallthru
        _
      // Predicated region
      $region45: #{double_conv_pallas.1} parent=39 // pred_check
        %p332 = pneg %p85
      $region46: #{double_conv_pallas.1} parent=39 // pred_check_branch
        %334 = sbr.rel (%p332) target = $region48
      $region47: #{double_conv_pallas.1} parent=39 // pred_region
        %s335 = smul.u32 %s23, 4
        %s336 = ssub.s32 %s335, 1
        %p337 = scmp.gt.s32.totalorder %s336, 0
        %s338 = scalar_select %p337, %s336, 0
        %s339 = smul.u32 2, %s338
        %p340 = scmp.lt.s32.totalorder %s22, 1
        %s341 = scalar_select %p340, %s22, 1
        %p342 = scmp.lt.s32.totalorder %s339, 15
        %s343 = scalar_select %p342, %s339, 15
        %s344 = smul.addr %s343, 2
        %s345 = smul.addr %s341, 32
        %s346 = sadd.s32 %s344, %s345
        %s347 = smul.addr %s346, 8
        %s348 = scalar_lea.vmem %s1, %s347
        %s349 = smul.u32 %s23, 4
        %s350 = ssub.s32 %s349, 1
        %p351 = scmp.gt.s32.totalorder %s350, 0
        %s352 = scalar_select %p351, %s350, 0
        %s353 = smul.u32 2, %s352
      $region48: #{double_conv_pallas.1} parent=39 // pred_fallthru
        _
      // Predicated region
      $region49: #{double_conv_pallas.1} parent=39 // pred_check
        %p354 = pneg %p121
      $region50: #{double_conv_pallas.1} parent=39 // pred_check_branch
        %356 = sbr.rel (%p354) target = $region52
      $region51: #{double_conv_pallas.1} parent=39 // pred_region
        %s357 = sadd.s32 %s23, 1
        %s358 = smul.u32 %s357, 4
        %p359 = scmp.lt.s32.totalorder %s358, 7
        %s360 = scalar_select %p359, %s358, 7
        %s361 = smul.u32 2, %s360
        %p362 = scmp.lt.s32.totalorder %s22, 1
        %s363 = scalar_select %p362, %s22, 1
        %p364 = scmp.lt.s32.totalorder %s361, 15
        %s365 = scalar_select %p364, %s361, 15
        %s366 = smul.addr %s365, 2
        %s367 = smul.addr %s363, 32
        %s368 = sadd.s32 %s366, %s367
        %s369 = smul.addr %s368, 8
        %s370 = scalar_lea.vmem %s2, %s369
        %s371 = sadd.s32 %s23, 1
        %s372 = smul.u32 %s371, 4
        %p373 = scmp.lt.s32.totalorder %s372, 7
        %s374 = scalar_select %p373, %s372, 7
        %s375 = smul.u32 2, %s374
      $region52: #{double_conv_pallas.1} parent=39 // pred_fallthru
        _
    $region40: #{double_conv_pallas.1} parent=5 // pred_fallthru
      _
    %p376 = scmp.le.s32.totalorder 1, %s15
    %p377 = scmp.lt.s32.totalorder %s15, 5
    %p378 = pnand %p376, %p377
    %p379 = pneg %p378
    // Predicated region
    $region53: #{double_conv_pallas.1} parent=5 // pred_check
      _
    $region54: #{double_conv_pallas.1} parent=5 // pred_check_branch
      %381 = sbr.rel (%p378) target = $region56
    $region55: #{double_conv_pallas.1} parent=5 // pred_region
      %s382 = ssub.s32 %s15, 1
      %s383 = smul.u32 8, %s25
      %p384 = scmp.lt.s32.totalorder %s24, 1
      %s385 = scalar_select %p384, %s24, 1
      %p386 = scmp.lt.s32.totalorder %s383, 15
      %s387 = scalar_select %p386, %s383, 15
      %s388 = smul.addr %s387, 2
      %s389 = smul.addr %s385, 32
      %s390 = sadd.s32 %s388, %s389
      %s391 = smul.addr %s390, 8
      %s392 = scalar_lea.vmem %s0, %s391
      %p393 = pneg %p55
      %p394 = pneg %p52
      %s395 = smul.u32 %s25, 4
      %s396 = ssub.s32 %s395, 1
      %p397 = scmp.gt.s32.totalorder %s396, 0
      %s398 = scalar_select %p397, %s396, 0
      %s399 = smul.u32 2, %s398
      %p400 = scmp.lt.s32.totalorder %s24, 1
      %s401 = scalar_select %p400, %s24, 1
      %p402 = scmp.lt.s32.totalorder %s399, 15
      %s403 = scalar_select %p402, %s399, 15
      %s404 = smul.addr %s403, 2
      %s405 = smul.addr %s401, 32
      %s406 = sadd.s32 %s404, %s405
      %s407 = smul.addr %s406, 8
      %s408 = scalar_lea.vmem %s1, %s407
      %p409 = pneg %p91
      %p410 = pneg %p88
      %s411 = sadd.s32 %s25, 1
      %s412 = smul.u32 %s411, 4
      %p413 = scmp.lt.s32.totalorder %s412, 7
      %s414 = scalar_select %p413, %s412, 7
      %s415 = smul.u32 2, %s414
      %p416 = scmp.lt.s32.totalorder %s24, 1
      %s417 = scalar_select %p416, %s24, 1
      %p418 = scmp.lt.s32.totalorder %s415, 15
      %s419 = scalar_select %p418, %s415, 15
      %s420 = smul.addr %s419, 2
      %s421 = smul.addr %s417, 32
      %s422 = sadd.s32 %s420, %s421
      %s423 = smul.addr %s422, 8
      %s424 = scalar_lea.vmem %s2, %s423
      %p425 = pneg %p127
      %p426 = pneg %p124
      %p427 = pneg %p148
      %p428 = pneg %p145
      %p429 = pneg %p169
      %p430 = pneg %p166
      %p431 = pneg %p190
      %p432 = pneg %p187
      %p433 = pneg %p211
      %p434 = pneg %p208
      %p435 = pneg %p232
      %p436 = pneg %p229
      %p437 = pneg %p253
      %p438 = pneg %p250
      %p439 = pneg %p281
      %p440 = pneg %p278
      %s441 = smul.u32 8, %s25
      %p442 = scmp.lt.s32.totalorder %s24, 1
      %s443 = scalar_select %p442, %s24, 1
      %p444 = scmp.lt.s32.totalorder %s441, 15
      %s445 = scalar_select %p444, %s441, 15
      %s446 = smul.addr %s445, 2
      %s447 = smul.addr %s443, 32
      %s448 = sadd.s32 %s446, %s447
      %s449 = smul.addr %s448, 8
      %s450 = scalar_lea.vmem %s9, %s449
      %s451 = smul.u32 8, %s25
      %p452 = scmp.lt.s32.totalorder %s24, 1
      %s453 = scalar_select %p452, %s24, 1
      %p454 = scmp.lt.s32.totalorder %s451, 15
      %s455 = scalar_select %p454, %s451, 15
      %s456 = smul.addr %s455, 2
      %s457 = smul.addr %s453, 32
      %s458 = sadd.s32 %s456, %s457
      %s459 = smul.addr %s458, 8
      %s460 = scalar_lea.vmem %s0, %s459
      %s461 = smul.u32 8, %s25
      %s462 = smul.u32 %s25, 4
      %s463 = ssub.s32 %s462, 1
      %p464 = scmp.gt.s32.totalorder %s463, 0
      %s465 = scalar_select %p464, %s463, 0
      %s466 = smul.u32 2, %s465
      %p467 = scmp.lt.s32.totalorder %s24, 1
      %s468 = scalar_select %p467, %s24, 1
      %p469 = scmp.lt.s32.totalorder %s466, 15
      %s470 = scalar_select %p469, %s466, 15
      %s471 = smul.addr %s470, 2
      %s472 = smul.addr %s468, 32
      %s473 = sadd.s32 %s471, %s472
      %s474 = smul.addr %s473, 8
      %s475 = scalar_lea.vmem %s1, %s474
      %s476 = smul.u32 %s25, 4
      %s477 = ssub.s32 %s476, 1
      %p478 = scmp.gt.s32.totalorder %s477, 0
      %s479 = scalar_select %p478, %s477, 0
      %s480 = smul.u32 2, %s479
      %s481 = sadd.s32 %s25, 1
      %s482 = smul.u32 %s481, 4
      %p483 = scmp.lt.s32.totalorder %s482, 7
      %s484 = scalar_select %p483, %s482, 7
      %s485 = smul.u32 2, %s484
      %p486 = scmp.lt.s32.totalorder %s24, 1
      %s487 = scalar_select %p486, %s24, 1
      %p488 = scmp.lt.s32.totalorder %s485, 15
      %s489 = scalar_select %p488, %s485, 15
      %s490 = smul.addr %s489, 2
      %s491 = smul.addr %s487, 32
      %s492 = sadd.s32 %s490, %s491
      %s493 = smul.addr %s492, 8
      %s494 = scalar_lea.vmem %s2, %s493
      %s495 = sadd.s32 %s25, 1
      %s496 = smul.u32 %s495, 4
      %p497 = scmp.lt.s32.totalorder %s496, 7
      %s498 = scalar_select %p497, %s496, 7
      %s499 = smul.u32 2, %s498
      %s500 = smul.u32 8, %s25
      %p501 = scmp.lt.s32.totalorder %s24, 1
      %s502 = scalar_select %p501, %s24, 1
      %p503 = scmp.lt.s32.totalorder %s500, 15
      %s504 = scalar_select %p503, %s500, 15
      %s505 = smul.addr %s504, 2
      %s506 = smul.addr %s502, 32
      %s507 = sadd.s32 %s505, %s506
      %s508 = smul.addr %s507, 8
      %s509 = scalar_lea.vmem %s9, %s508
      %s510 = smul.u32 8, %s25
      %p512 = scmp.eq.s32.totalorder %s25, 0
      %p513 = scmp.eq.s32.totalorder %s25, 1
      %v514 = vld [vmem:[%s475] sm:$0xff]
      %v515 = vld [vmem:[%s475 + $0x8] sm:$0xff]
      %v516 = vld [vmem:[%s475 + $0x10] sm:$0xff]
      %v517 = vld [vmem:[%s475 + $0x18] sm:$0xff]
      %v518 = vld [vmem:[%s460] sm:$0xff]
      %v519 = vld [vmem:[%s460 + $0x8] sm:$0xff]
      %v520 = vld [vmem:[%s460 + $0x10] sm:$0xff]
      %v521 = vld [vmem:[%s460 + $0x18] sm:$0xff]
      %v522 = vld [vmem:[%s460 + $0x20] sm:$0xff]
      %v523 = vld [vmem:[%s460 + $0x28] sm:$0xff]
      %v524 = vld [vmem:[%s460 + $0x30] sm:$0xff]
      %v525 = vld [vmem:[%s460 + $0x38] sm:$0xff]
      %v526 = vld [vmem:[%s460 + $0x40] sm:$0xff]
      %v527 = vld [vmem:[%s460 + $0x48] sm:$0xff]
      %v528 = vld [vmem:[%s460 + $0x50] sm:$0xff]
      %v529 = vld [vmem:[%s460 + $0x58] sm:$0xff]
      %v530 = vld [vmem:[%s460 + $0x60] sm:$0xff]
      %v531 = vld [vmem:[%s460 + $0x68] sm:$0xff]
      %v532 = vld [vmem:[%s460 + $0x70] sm:$0xff]
      %v533 = vld [vmem:[%s460 + $0x78] sm:$0xff]
      %v534 = vld [vmem:[%s494] sm:$0xff]
      %v535 = vld [vmem:[%s494 + $0x8] sm:$0xff]
      %v536 = vld [vmem:[%s494 + $0x10] sm:$0xff]
      %v537 = vld [vmem:[%s494 + $0x18] sm:$0xff]
      %s538 = scalar_select %p512, 1, 0
      %v539 = vstv %s538
      %vm540 = vcmp.eq.s32.totalorder %v539, 1
      %v541 = vsel %vm540, 0.0, %v514
      %v542 = vsel %vm540, 0.0, %v515
      %v543 = vsel %vm540, 0.0, %v516
      %v544 = vsel %vm540, 0.0, %v517
      %v545 = vsel 0, 0.0, %v518
      %v546 = vsel 0, 0.0, %v519
      %v547 = vsel 0, 0.0, %v520
      %v548 = vsel 0, 0.0, %v521
      %v549 = vsel 0, 0.0, %v522
      %v550 = vsel 0, 0.0, %v523
      %v551 = vsel 0, 0.0, %v524
      %v552 = vsel 0, 0.0, %v525
      %v553 = vsel 0, 0.0, %v526
      %v554 = vsel 0, 0.0, %v527
      %v555 = vsel 0, 0.0, %v528
      %v556 = vsel 0, 0.0, %v529
      %v557 = vsel 0, 0.0, %v530
      %v558 = vsel 0, 0.0, %v531
      %v559 = vsel 0, 0.0, %v532
      %v560 = vsel 0, 0.0, %v533
      %v561 = vsel 0, 0.0, %v534
      %v562 = vsel 0, 0.0, %v535
      %v563 = vsel 0, 0.0, %v536
      %v564 = vsel 0, 0.0, %v537
      %s565 = scalar_select %p513, 1, 0
      %v566 = vstv %s565
      %vm567 = vcmp.eq.s32.totalorder %v566, 1
      %v568 = vsel 0, 0.0, %v541
      %v569 = vsel 0, 0.0, %v542
      %v570 = vsel 0, 0.0, %v543
      %v571 = vsel 0, 0.0, %v544
      %v572 = vsel 0, 0.0, %v545
      %v573 = vsel 0, 0.0, %v546
      %v574 = vsel 0, 0.0, %v547
      %v575 = vsel 0, 0.0, %v548
      %v576 = vsel 0, 0.0, %v549
      %v577 = vsel 0, 0.0, %v550
      %v578 = vsel 0, 0.0, %v551
      %v579 = vsel 0, 0.0, %v552
      %v580 = vsel 0, 0.0, %v553
      %v581 = vsel 0, 0.0, %v554
      %v582 = vsel 0, 0.0, %v555
      %v583 = vsel 0, 0.0, %v556
      %v584 = vsel 0, 0.0, %v557
      %v585 = vsel 0, 0.0, %v558
      %v586 = vsel 0, 0.0, %v559
      %v587 = vsel 0, 0.0, %v560
      %v588 = vsel %vm567, 0.0, %v561
      %v589 = vsel %vm567, 0.0, %v562
      %v590 = vsel %vm567, 0.0, %v563
      %v591 = vsel %vm567, 0.0, %v564
      %vm616 = vcmask 1040384
      %v617 = vrot.slane %v568, 7
      %v618 = vrot.slane %v569, 7
      %v619 = vsel %vm616, %v617, %v618
      %v620 = vrot.slane %v570, 7
      %v621 = vrot.slane %v571, 7
      %v622 = vsel %vm616, %v620, %v621
      %v623 = vrot.slane %v572, 7
      %v624 = vrot.slane %v573, 7
      %v625 = vsel %vm616, %v623, %v624
      %v626 = vrot.slane %v574, 7
      %v627 = vrot.slane %v575, 7
      %v628 = vsel %vm616, %v626, %v627
      %v629 = vrot.slane %v576, 7
      %v630 = vrot.slane %v577, 7
      %v631 = vsel %vm616, %v629, %v630
      %v632 = vrot.slane %v578, 7
      %v633 = vrot.slane %v579, 7
      %v634 = vsel %vm616, %v632, %v633
      %v635 = vrot.slane %v580, 7
      %v636 = vrot.slane %v581, 7
      %v637 = vsel %vm616, %v635, %v636
      %v638 = vrot.slane %v582, 7
      %v639 = vrot.slane %v583, 7
      %v640 = vsel %vm616, %v638, %v639
      %v641 = vrot.slane %v584, 7
      %v642 = vrot.slane %v585, 7
      %v643 = vsel %vm616, %v641, %v642
      %v644 = vrot.slane %v586, 7
      %v645 = vrot.slane %v587, 7
      %v646 = vsel %vm616, %v644, %v645
      %v647 = vrot.slane %v588, 7
      %v648 = vrot.slane %v589, 7
      %v649 = vsel %vm616, %v647, %v648
      %v650 = vrot.slane %v590, 7
      %v651 = vrot.slane %v591, 7
      %v652 = vsel %vm616, %v650, %v651
      %v677 = vsel %vm616, 0.0, %v617
      %v678 = vsel %vm616, 0.0, %v620
      %v679 = vsel %vm616, 0.0, %v623
      %v680 = vsel %vm616, 0.0, %v626
      %v681 = vsel %vm616, 0.0, %v629
      %v682 = vsel %vm616, 0.0, %v632
      %v683 = vsel %vm616, 0.0, %v635
      %v684 = vsel %vm616, 0.0, %v638
      %v685 = vsel %vm616, 0.0, %v641
      %v686 = vsel %vm616, 0.0, %v644
      %v687 = vsel %vm616, 0.0, %v647
      %v688 = vsel %vm616, 0.0, %v650
      %vm689 = vcmask 1046528
      %v690 = vrot.slane %v568, 1
      %v691 = vrot.slane %v569, 1
      %v692 = vsel %vm689, %v690, %v691
      %v693 = vrot.slane %v570, 1
      %v694 = vrot.slane %v571, 1
      %v695 = vsel %vm689, %v693, %v694
      %v696 = vrot.slane %v572, 1
      %v697 = vrot.slane %v573, 1
      %v698 = vsel %vm689, %v696, %v697
      %v699 = vrot.slane %v574, 1
      %v700 = vrot.slane %v575, 1
      %v701 = vsel %vm689, %v699, %v700
      %v702 = vrot.slane %v576, 1
      %v703 = vrot.slane %v577, 1
      %v704 = vsel %vm689, %v702, %v703
      %v705 = vrot.slane %v578, 1
      %v706 = vrot.slane %v579, 1
      %v707 = vsel %vm689, %v705, %v706
      %v708 = vrot.slane %v580, 1
      %v709 = vrot.slane %v581, 1
      %v710 = vsel %vm689, %v708, %v709
      %v711 = vrot.slane %v582, 1
      %v712 = vrot.slane %v583, 1
      %v713 = vsel %vm689, %v711, %v712
      %v714 = vrot.slane %v584, 1
      %v715 = vrot.slane %v585, 1
      %v716 = vsel %vm689, %v714, %v715
      %v717 = vrot.slane %v586, 1
      %v718 = vrot.slane %v587, 1
      %v719 = vsel %vm689, %v717, %v718
      %v720 = vrot.slane %v588, 1
      %v721 = vrot.slane %v589, 1
      %v722 = vsel %vm689, %v720, %v721
      %v723 = vrot.slane %v590, 1
      %v724 = vrot.slane %v591, 1
      %v725 = vsel %vm689, %v723, %v724
      %v750 = vsel %vm689, %v691, 0.0
      %v751 = vsel %vm689, %v694, 0.0
      %v752 = vsel %vm689, %v697, 0.0
      %v753 = vsel %vm689, %v700, 0.0
      %v754 = vsel %vm689, %v703, 0.0
      %v755 = vsel %vm689, %v706, 0.0
      %v756 = vsel %vm689, %v709, 0.0
      %v757 = vsel %vm689, %v712, 0.0
      %v758 = vsel %vm689, %v715, 0.0
      %v759 = vsel %vm689, %v718, 0.0
      %v760 = vsel %vm689, %v721, 0.0
      %v761 = vsel %vm689, %v724, 0.0
      %v762 = vpack.c.bf16 %v619, %v677
      %v763 = vpack.c.bf16 %v569, %v568
      %v764 = vpack.c.bf16 %v750, %v692
      %v765 = vpack.c.bf16 %v622, %v678
      %v766 = vpack.c.bf16 %v571, %v570
      %v767 = vpack.c.bf16 %v751, %v695
      %v768 = vpack.c.bf16 %v625, %v679
      %v769 = vpack.c.bf16 %v573, %v572
      %v770 = vpack.c.bf16 %v752, %v698
      %v771 = vpack.c.bf16 %v628, %v680
      %v772 = vpack.c.bf16 %v575, %v574
      %v773 = vpack.c.bf16 %v753, %v701
      %v774 = vpack.c.bf16 %v631, %v681
      %v775 = vpack.c.bf16 %v577, %v576
      %v776 = vpack.c.bf16 %v754, %v704
      %v777 = vpack.c.bf16 %v634, %v682
      %v778 = vpack.c.bf16 %v579, %v578
      %v779 = vpack.c.bf16 %v755, %v707
      %v780 = vpack.c.bf16 %v637, %v683
      %v781 = vpack.c.bf16 %v581, %v580
      %v782 = vpack.c.bf16 %v756, %v710
      %v783 = vpack.c.bf16 %v640, %v684
      %v784 = vpack.c.bf16 %v583, %v582
      %v785 = vpack.c.bf16 %v757, %v713
      %v786 = vpack.c.bf16 %v643, %v685
      %v787 = vpack.c.bf16 %v585, %v584
      %v788 = vpack.c.bf16 %v758, %v716
      %v789 = vpack.c.bf16 %v646, %v686
      %v790 = vpack.c.bf16 %v587, %v586
      %v791 = vpack.c.bf16 %v759, %v719
      %v792 = vpack.c.bf16 %v649, %v687
      %v793 = vpack.c.bf16 %v589, %v588
      %v794 = vpack.c.bf16 %v760, %v722
      %v795 = vpack.c.bf16 %v652, %v688
      %v796 = vpack.c.bf16 %v591, %v590
      %v797 = vpack.c.bf16 %v761, %v725
      %v798 = vld [vmem:[%s3] sm:$0xf]
      %v799 = vld [vmem:[%s3 + $0x4] sm:$0xf]
      %v800 = vld [vmem:[%s3 + $0x8] sm:$0xf]
      %v801 = vld [vmem:[%s3 + $0xc] sm:$0xf]
      %v802 = vld [vmem:[%s3 + $0x10] sm:$0xf]
      %v803 = vld [vmem:[%s3 + $0x14] sm:$0xf]
      %v804 = vld [vmem:[%s3 + $0x18] sm:$0xf]
      %v805 = vld [vmem:[%s3 + $0x1c] sm:$0xf]
      %v806 = vld [vmem:[%s3 + $0x20] sm:$0xf]
      %v807 = vld [vmem:[%s3 + $0x24] sm:$0xf]
      %v808 = vld [vmem:[%s3 + $0x28] sm:$0xf]
      %v809 = vld [vmem:[%s3 + $0x2c] sm:$0xf]
      %v810 = vld [vmem:[%s3 + $0x30] sm:$0xf]
      %v811 = vld [vmem:[%s3 + $0x34] sm:$0xf]
      %v812 = vld [vmem:[%s3 + $0x38] sm:$0xf]
      %v813 = vld [vmem:[%s3 + $0x3c] sm:$0xf]
      %v814 = vld [vmem:[%s3 + $0x40] sm:$0xf]
      %v815 = vld [vmem:[%s3 + $0x44] sm:$0xf]
      %v816 = vld [vmem:[%s3 + $0x48] sm:$0xf]
      %v817 = vld [vmem:[%s3 + $0x4c] sm:$0xf]
      %v818 = vld [vmem:[%s3 + $0x50] sm:$0xf]
      %v819 = vld [vmem:[%s3 + $0x54] sm:$0xf]
      %v820 = vld [vmem:[%s3 + $0x58] sm:$0xf]
      %v821 = vld [vmem:[%s3 + $0x5c] sm:$0xf]
      %v822 = vld [vmem:[%s3 + $0x60] sm:$0xf]
      %v823 = vld [vmem:[%s3 + $0x64] sm:$0xf]
      %v824 = vld [vmem:[%s3 + $0x68] sm:$0xf]
      %v825 = vld [vmem:[%s3 + $0x6c] sm:$0xf]
      %v826 = vld [vmem:[%s3 + $0x70] sm:$0xf]
      %v827 = vld [vmem:[%s3 + $0x74] sm:$0xf]
      %v828 = vld [vmem:[%s3 + $0x78] sm:$0xf]
      %v829 = vld [vmem:[%s3 + $0x7c] sm:$0xf]
      %v830 = vld [vmem:[%s3 + $0x80] sm:$0xf]
      %v831 = vld [vmem:[%s3 + $0x84] sm:$0xf]
      %v832 = vld [vmem:[%s3 + $0x88] sm:$0xf]
      %v833 = vld [vmem:[%s3 + $0x8c] sm:$0xf]
      %v834 = vld [vmem:[%s3 + $0x90] sm:$0xf]
      %v835 = vld [vmem:[%s3 + $0x94] sm:$0xf]
      %v836 = vld [vmem:[%s3 + $0x98] sm:$0xf]
      %v837 = vld [vmem:[%s3 + $0x9c] sm:$0xf]
      %v838 = vld [vmem:[%s3 + $0xa0] sm:$0xf]
      %v839 = vld [vmem:[%s3 + $0xa4] sm:$0xf]
      %v840 = vld [vmem:[%s3 + $0xa8] sm:$0xf]
      %v841 = vld [vmem:[%s3 + $0xac] sm:$0xf]
      %v842 = vld [vmem:[%s3 + $0xb0] sm:$0xf]
      %v843 = vld [vmem:[%s3 + $0xb4] sm:$0xf]
      %v844 = vld [vmem:[%s3 + $0xb8] sm:$0xf]
      %v845 = vld [vmem:[%s3 + $0xbc] sm:$0xf]
      %s846 = scalar_lea.vmem %s3, 192
      %v847 = vld [vmem:[%s846] sm:$0xf]
      %v848 = vld [vmem:[%s846 + $0x4] sm:$0xf]
      %v849 = vld [vmem:[%s846 + $0x8] sm:$0xf]
      %v850 = vld [vmem:[%s846 + $0xc] sm:$0xf]
      %v851 = vld [vmem:[%s846 + $0x10] sm:$0xf]
      %v852 = vld [vmem:[%s846 + $0x14] sm:$0xf]
      %v853 = vld [vmem:[%s846 + $0x18] sm:$0xf]
      %v854 = vld [vmem:[%s846 + $0x1c] sm:$0xf]
      %v855 = vld [vmem:[%s846 + $0x20] sm:$0xf]
      %v856 = vld [vmem:[%s846 + $0x24] sm:$0xf]
      %v857 = vld [vmem:[%s846 + $0x28] sm:$0xf]
      %v858 = vld [vmem:[%s846 + $0x2c] sm:$0xf]
      %v859 = vld [vmem:[%s846 + $0x30] sm:$0xf]
      %v860 = vld [vmem:[%s846 + $0x34] sm:$0xf]
      %v861 = vld [vmem:[%s846 + $0x38] sm:$0xf]
      %v862 = vld [vmem:[%s846 + $0x3c] sm:$0xf]
      %v863 = vld [vmem:[%s846 + $0x40] sm:$0xf]
      %v864 = vld [vmem:[%s846 + $0x44] sm:$0xf]
      %v865 = vld [vmem:[%s846 + $0x48] sm:$0xf]
      %v866 = vld [vmem:[%s846 + $0x4c] sm:$0xf]
      %v867 = vld [vmem:[%s846 + $0x50] sm:$0xf]
      %v868 = vld [vmem:[%s846 + $0x54] sm:$0xf]
      %v869 = vld [vmem:[%s846 + $0x58] sm:$0xf]
      %v870 = vld [vmem:[%s846 + $0x5c] sm:$0xf]
      %v871 = vld [vmem:[%s846 + $0x60] sm:$0xf]
      %v872 = vld [vmem:[%s846 + $0x64] sm:$0xf]
      %v873 = vld [vmem:[%s846 + $0x68] sm:$0xf]
      %v874 = vld [vmem:[%s846 + $0x6c] sm:$0xf]
      %v875 = vld [vmem:[%s846 + $0x70] sm:$0xf]
      %v876 = vld [vmem:[%s846 + $0x74] sm:$0xf]
      %v877 = vld [vmem:[%s846 + $0x78] sm:$0xf]
      %v878 = vld [vmem:[%s846 + $0x7c] sm:$0xf]
      %v879 = vld [vmem:[%s846 + $0x80] sm:$0xf]
      %v880 = vld [vmem:[%s846 + $0x84] sm:$0xf]
      %v881 = vld [vmem:[%s846 + $0x88] sm:$0xf]
      %v882 = vld [vmem:[%s846 + $0x8c] sm:$0xf]
      %v883 = vld [vmem:[%s846 + $0x90] sm:$0xf]
      %v884 = vld [vmem:[%s846 + $0x94] sm:$0xf]
      %v885 = vld [vmem:[%s846 + $0x98] sm:$0xf]
      %v886 = vld [vmem:[%s846 + $0x9c] sm:$0xf]
      %v887 = vld [vmem:[%s846 + $0xa0] sm:$0xf]
      %v888 = vld [vmem:[%s846 + $0xa4] sm:$0xf]
      %v889 = vld [vmem:[%s846 + $0xa8] sm:$0xf]
      %v890 = vld [vmem:[%s846 + $0xac] sm:$0xf]
      %v891 = vld [vmem:[%s846 + $0xb0] sm:$0xf]
      %v892 = vld [vmem:[%s846 + $0xb4] sm:$0xf]
      %v893 = vld [vmem:[%s846 + $0xb8] sm:$0xf]
      %v894 = vld [vmem:[%s846 + $0xbc] sm:$0xf]
      %v943 = vunpack.c.l.b16 %v847
      %v944 = vunpack.c.l.b16 %v848
      %v945 = vunpack.c.l.b16 %v849
      %v946 = vunpack.c.l.b16 %v850
      %v947 = vunpack.c.l.b16 %v851
      %v948 = vunpack.c.l.b16 %v852
      %v949 = vunpack.c.l.b16 %v853
      %v950 = vunpack.c.l.b16 %v854
      %v951 = vunpack.c.l.b16 %v855
      %v952 = vunpack.c.l.b16 %v856
      %v953 = vunpack.c.l.b16 %v857
      %v954 = vunpack.c.l.b16 %v858
      %v955 = vunpack.c.l.b16 %v859
      %v956 = vunpack.c.l.b16 %v860
      %v957 = vunpack.c.l.b16 %v861
      %v958 = vunpack.c.l.b16 %v862
      %v959 = vunpack.c.l.b16 %v863
      %v960 = vunpack.c.l.b16 %v864
      %v961 = vunpack.c.l.b16 %v865
      %v962 = vunpack.c.l.b16 %v866
      %v963 = vunpack.c.l.b16 %v867
      %v964 = vunpack.c.l.b16 %v868
      %v965 = vunpack.c.l.b16 %v869
      %v966 = vunpack.c.l.b16 %v870
      %v967 = vunpack.c.l.b16 %v871
      %v968 = vunpack.c.l.b16 %v872
      %v969 = vunpack.c.l.b16 %v873
      %v970 = vunpack.c.l.b16 %v874
      %v971 = vunpack.c.l.b16 %v875
      %v972 = vunpack.c.l.b16 %v876
      %v973 = vunpack.c.l.b16 %v877
      %v974 = vunpack.c.l.b16 %v878
      %v975 = vunpack.c.l.b16 %v879
      %v976 = vunpack.c.l.b16 %v880
      %v977 = vunpack.c.l.b16 %v881
      %v978 = vunpack.c.l.b16 %v882
      %v979 = vunpack.c.l.b16 %v883
      %v980 = vunpack.c.l.b16 %v884
      %v981 = vunpack.c.l.b16 %v885
      %v982 = vunpack.c.l.b16 %v886
      %v983 = vunpack.c.l.b16 %v887
      %v984 = vunpack.c.l.b16 %v888
      %v985 = vunpack.c.l.b16 %v889
      %v986 = vunpack.c.l.b16 %v890
      %v987 = vunpack.c.l.b16 %v891
      %v988 = vunpack.c.l.b16 %v892
      %v989 = vunpack.c.l.b16 %v893
      %v990 = vunpack.c.l.b16 %v894
      %v991 = vpack.c.b16 %v944, %v943
      %v992 = vpack.c.b16 %v946, %v945
      %v993 = vpack.c.b16 %v948, %v947
      %v994 = vpack.c.b16 %v950, %v949
      %v995 = vpack.c.b16 %v952, %v951
      %v996 = vpack.c.b16 %v954, %v953
      %v997 = vpack.c.b16 %v956, %v955
      %v998 = vpack.c.b16 %v958, %v957
      %v999 = vpack.c.b16 %v960, %v959
      %v1000 = vpack.c.b16 %v962, %v961
      %v1001 = vpack.c.b16 %v964, %v963
      %v1002 = vpack.c.b16 %v966, %v965
      %v1003 = vpack.c.b16 %v968, %v967
      %v1004 = vpack.c.b16 %v970, %v969
      %v1005 = vpack.c.b16 %v972, %v971
      %v1006 = vpack.c.b16 %v974, %v973
      %v1007 = vpack.c.b16 %v976, %v975
      %v1008 = vpack.c.b16 %v978, %v977
      %v1009 = vpack.c.b16 %v980, %v979
      %v1010 = vpack.c.b16 %v982, %v981
      %v1011 = vpack.c.b16 %v984, %v983
      %v1012 = vpack.c.b16 %v986, %v985
      %v1013 = vpack.c.b16 %v988, %v987
      %v1014 = vpack.c.b16 %v990, %v989
      %1039 = vmatprep.subr.bf16.mxu0 0
      %1040 = vmatpush1.bf16.msra.mxu0 %v991
      %1041 = vmatprep.subr.bf16.mxu0 0
      %1042 = vmatpush1.bf16.msra.mxu0 %v992
      %1043 = vmatprep.subr.bf16.mxu0 0
      %1044 = vmatpush1.bf16.msra.mxu0 %v993
      %1045 = vmatprep.subr.bf16.mxu0 0
      %1046 = vmatpush1.bf16.msra.mxu0 %v994
      %1047 = vmatprep.subr.bf16.mxu0 0
      %1048 = vmatpush1.bf16.msra.mxu0 %v995
      %1049 = vmatprep.subr.bf16.mxu0 0
      %1050 = vmatpush1.bf16.msra.mxu0 %v996
      %1051 = vmatprep.subr.bf16.mxu0 0
      %1052 = vmatpush1.bf16.msra.mxu0 %v997
      %1053 = vmatprep.subr.bf16.mxu0 0
      %1054 = vmatpush1.bf16.msra.mxu0 %v998
      %1055 = vmatprep.subr.bf16.mxu0 0
      %1056 = vmatpush1.bf16.msra.mxu0 %v999
      %1057 = vmatprep.subr.bf16.mxu0 0
      %1058 = vmatpush1.bf16.msra.mxu0 %v1000
      %1059 = vmatprep.subr.bf16.mxu0 0
      %1060 = vmatpush1.bf16.msra.mxu0 %v1001
      %1061 = vmatprep.subr.bf16.mxu0 0
      %1062 = vmatpush1.bf16.msra.mxu0 %v1002
      %1063 = vmatprep.subr.bf16.mxu0 0
      %1064 = vmatpush1.bf16.msra.mxu0 %v1003
      %1065 = vmatprep.subr.bf16.mxu0 0
      %1066 = vmatpush1.bf16.msra.mxu0 %v1004
      %1067 = vmatprep.subr.bf16.mxu0 0
      %1068 = vmatpush1.bf16.msra.mxu0 %v1005
      %1069 = vmatprep.subr.bf16.mxu0 0
      %1070 = vmatpush1.bf16.msra.mxu0 %v1006
      %1071 = vmatprep.mubr.bf16.mxu0 %v766
      %1072 = vmatmul.mubr.bf16.gmra.mrb[0].mxu0 %v765
      %v1073 = vpop.f32.mrb[0].mxu0
      %v1074 = vadd.f32 0.0, %v1073
      %v1075 = vpop.f32.mrb[0].mxu0
      %v1076 = vpop.f32.mrb[0].mxu0
      %v1077 = vadd.f32 0.0, %v1076
      %v1078 = vpop.f32.mrb[0].mxu0
      %1079 = vmatprep.mubr.bf16.mxu0 %v769
      %1080 = vmatmul.mubr.bf16.gmra.mrb[0].mxu0 %v768
      %v1081 = vpop.f32.mrb[0].mxu0
      %v1082 = vadd.f32 0.0, %v1081
      %v1083 = vpop.f32.mrb[0].mxu0
      %v1084 = vpop.f32.mrb[0].mxu0
      %v1085 = vadd.f32 0.0, %v1084
      %v1086 = vpop.f32.mrb[0].mxu0
      %1087 = vmatprep.mubr.bf16.mxu0 %v772
      %1088 = vmatmul.mubr.bf16.gmra.mrb[0].mxu0 %v771
      %v1089 = vpop.f32.mrb[0].mxu0
      %v1090 = vadd.f32 0.0, %v1089
      %v1091 = vpop.f32.mrb[0].mxu0
      %v1092 = vpop.f32.mrb[0].mxu0
      %v1093 = vadd.f32 0.0, %v1092
      %v1094 = vpop.f32.mrb[0].mxu0
      %1095 = vmatprep.mubr.bf16.mxu0 %v775
      %1096 = vmatmul.mubr.bf16.gmra.mrb[0].mxu0 %v774
      %v1097 = vpop.f32.mrb[0].mxu0
      %v1098 = vadd.f32 0.0, %v1097
      %v1099 = vpop.f32.mrb[0].mxu0
      %v1100 = vpop.f32.mrb[0].mxu0
      %v1101 = vadd.f32 0.0, %v1100
      %v1102 = vpop.f32.mrb[0].mxu0
      %1103 = vmatprep.mubr.bf16.mxu0 %v778
      %1104 = vmatmul.mubr.bf16.gmra.mrb[0].mxu0 %v777
      %v1105 = vpop.f32.mrb[0].mxu0
      %v1106 = vadd.f32 0.0, %v1105
      %v1107 = vpop.f32.mrb[0].mxu0
      %v1108 = vpop.f32.mrb[0].mxu0
      %v1109 = vadd.f32 0.0, %v1108
      %v1110 = vpop.f32.mrb[0].mxu0
      %1111 = vmatprep.mubr.bf16.mxu0 %v781
      %1112 = vmatmul.mubr.bf16.gmra.mrb[0].mxu0 %v780
      %v1113 = vpop.f32.mrb[0].mxu0
      %v1114 = vadd.f32 0.0, %v1113
      %v1115 = vpop.f32.mrb[0].mxu0
      %v1116 = vpop.f32.mrb[0].mxu0
      %v1117 = vadd.f32 0.0, %v1116
      %v1118 = vpop.f32.mrb[0].mxu0
      %1119 = vmatprep.mubr.bf16.mxu0 %v784
      %1120 = vmatmul.mubr.bf16.gmra.mrb[0].mxu0 %v783
      %v1121 = vpop.f32.mrb[0].mxu0
      %v1122 = vadd.f32 0.0, %v1121
      %v1123 = vpop.f32.mrb[0].mxu0
      %v1124 = vpop.f32.mrb[0].mxu0
      %v1125 = vadd.f32 0.0, %v1124
      %v1126 = vpop.f32.mrb[0].mxu0
      %1127 = vmatprep.mubr.bf16.mxu0 %v787
      %1128 = vmatmul.mubr.bf16.gmra.mrb[0].mxu0 %v786
      %v1129 = vpop.f32.mrb[0].mxu0
      %v1130 = vadd.f32 0.0, %v1129
      %v1131 = vpop.f32.mrb[0].mxu0
      %v1132 = vpop.f32.mrb[0].mxu0
      %v1133 = vadd.f32 0.0, %v1132
      %v1134 = vpop.f32.mrb[0].mxu0
      %1135 = vmatprep.mubr.bf16.mxu0 %v790
      %1136 = vmatmul.mubr.bf16.gmra.mrb[0].mxu0 %v789
      %v1137 = vpop.f32.mrb[0].mxu0
      %v1138 = vadd.f32 0.0, %v1137
      %v1139 = vpop.f32.mrb[0].mxu0
      %v1140 = vpop.f32.mrb[0].mxu0
      %v1141 = vadd.f32 0.0, %v1140
      %v1142 = vpop.f32.mrb[0].mxu0
      %1143 = vmatprep.mubr.bf16.mxu0 %v793
      %1144 = vmatmul.mubr.bf16.gmra.mrb[0].mxu0 %v792
      %v1145 = vpop.f32.mrb[0].mxu0
      %v1146 = vadd.f32 0.0, %v1145
      %v1147 = vpop.f32.mrb[0].mxu0
      %v1148 = vpop.f32.mrb[0].mxu0
      %v1149 = vadd.f32 0.0, %v1148
      %v1150 = vpop.f32.mrb[0].mxu0
      %1151 = vdwg.mxu0
      %1152 = vmatprep.subr.bf16.mxu0 0
      %1153 = vmatpush1.bf16.msra.mxu0 %v1007
      %1154 = vmatprep.subr.bf16.mxu0 0
      %1155 = vmatpush1.bf16.msra.mxu0 %v1008
      %1156 = vmatprep.subr.bf16.mxu0 0
      %1157 = vmatpush1.bf16.msra.mxu0 %v1009
      %1158 = vmatprep.subr.bf16.mxu0 0
      %1159 = vmatpush1.bf16.msra.mxu0 %v1010
      %1160 = vmatprep.subr.bf16.mxu0 0
      %1161 = vmatpush1.bf16.msra.mxu0 %v1011
      %1162 = vmatprep.subr.bf16.mxu0 0
      %1163 = vmatpush1.bf16.msra.mxu0 %v1012
      %1164 = vmatprep.subr.bf16.mxu0 0
      %1165 = vmatpush1.bf16.msra.mxu0 %v1013
      %1166 = vmatprep.subr.bf16.mxu0 0
      %1167 = vmatpush1.bf16.msra.mxu0 %v1014
      %1168 = vmatprep.subr.bf16.mxu0 0
      %1169 = vmatpush1.bf16.msra.mxu0 0
      %1170 = vmatprep.subr.bf16.mxu0 0
      %1171 = vmatpush1.bf16.msra.mxu0 0
      %1172 = vmatprep.subr.bf16.mxu0 0
      %1173 = vmatpush1.bf16.msra.mxu0 0
      %1174 = vmatprep.subr.bf16.mxu0 0
      %1175 = vmatpush1.bf16.msra.mxu0 0
      %1176 = vmatprep.subr.bf16.mxu0 0
      %1177 = vmatpush1.bf16.msra.mxu0 0
      %1178 = vmatprep.subr.bf16.mxu0 0
      %1179 = vmatpush1.bf16.msra.mxu0 0
      %1180 = vmatprep.subr.bf16.mxu0 0
      %1181 = vmatpush1.bf16.msra.mxu0 0
      %1182 = vmatprep.subr.bf16.mxu0 0
      %1183 = vmatpush1.bf16.msra.mxu0 0
      %1184 = vmatprep.mubr.bf16.mxu0 0
      %1185 = vmatmul.mubr.bf16.gmra.mrb[0].mxu0 %v767
      %v1186 = vpop.f32.mrb[0].mxu0
      %v1187 = vadd.f32 %v1074, %v1186
      %v1188 = vpop.f32.mrb[0].mxu0
      %v1189 = vpop.f32.mrb[0].mxu0
      %v1190 = vadd.f32 %v1077, %v1189
      %v1191 = vpop.f32.mrb[0].mxu0
      %1192 = vmatprep.mubr.bf16.mxu0 0
      %1193 = vmatmul.mubr.bf16.gmra.mrb[0].mxu0 %v770
      %v1194 = vpop.f32.mrb[0].mxu0
      %v1195 = vadd.f32 %v1082, %v1194
      %v1196 = vpop.f32.mrb[0].mxu0
      %v1197 = vpop.f32.mrb[0].mxu0
      %v1198 = vadd.f32 %v1085, %v1197
      %v1199 = vpop.f32.mrb[0].mxu0
      %1200 = vmatprep.mubr.bf16.mxu0 0
      %1201 = vmatmul.mubr.bf16.gmra.mrb[0].mxu0 %v773
      %v1202 = vpop.f32.mrb[0].mxu0
      %v1203 = vadd.f32 %v1090, %v1202
      %v1204 = vpop.f32.mrb[0].mxu0
      %v1205 = vpop.f32.mrb[0].mxu0
      %v1206 = vadd.f32 %v1093, %v1205
      %v1207 = vpop.f32.mrb[0].mxu0
      %1208 = vmatprep.mubr.bf16.mxu0 0
      %1209 = vmatmul.mubr.bf16.gmra.mrb[0].mxu0 %v776
      %v1210 = vpop.f32.mrb[0].mxu0
      %v1211 = vadd.f32 %v1098, %v1210
      %v1212 = vpop.f32.mrb[0].mxu0
      %v1213 = vpop.f32.mrb[0].mxu0
      %v1214 = vadd.f32 %v1101, %v1213
      %v1215 = vpop.f32.mrb[0].mxu0
      %1216 = vmatprep.mubr.bf16.mxu0 0
      %1217 = vmatmul.mubr.bf16.gmra.mrb[0].mxu0 %v779
      %v1218 = vpop.f32.mrb[0].mxu0
      %v1219 = vadd.f32 %v1106, %v1218
      %v1220 = vpop.f32.mrb[0].mxu0
      %v1221 = vpop.f32.mrb[0].mxu0
      %v1222 = vadd.f32 %v1109, %v1221
      %v1223 = vpop.f32.mrb[0].mxu0
      %1224 = vmatprep.mubr.bf16.mxu0 0
      %1225 = vmatmul.mubr.bf16.gmra.mrb[0].mxu0 %v782
      %v1226 = vpop.f32.mrb[0].mxu0
      %v1227 = vadd.f32 %v1114, %v1226
      %v1228 = vpop.f32.mrb[0].mxu0
      %v1229 = vpop.f32.mrb[0].mxu0
      %v1230 = vadd.f32 %v1117, %v1229
      %v1231 = vpop.f32.mrb[0].mxu0
      %1232 = vmatprep.mubr.bf16.mxu0 0
      %1233 = vmatmul.mubr.bf16.gmra.mrb[0].mxu0 %v785
      %v1234 = vpop.f32.mrb[0].mxu0
      %v1235 = vadd.f32 %v1122, %v1234
      %v1236 = vpop.f32.mrb[0].mxu0
      %v1237 = vpop.f32.mrb[0].mxu0
      %v1238 = vadd.f32 %v1125, %v1237
      %v1239 = vpop.f32.mrb[0].mxu0
      %1240 = vmatprep.mubr.bf16.mxu0 0
      %1241 = vmatmul.mubr.bf16.gmra.mrb[0].mxu0 %v788
      %v1242 = vpop.f32.mrb[0].mxu0
      %v1243 = vadd.f32 %v1130, %v1242
      %v1244 = vpop.f32.mrb[0].mxu0
      %v1245 = vpop.f32.mrb[0].mxu0
      %v1246 = vadd.f32 %v1133, %v1245
      %v1247 = vpop.f32.mrb[0].mxu0
      %1248 = vmatprep.mubr.bf16.mxu0 0
      %1249 = vmatmul.mubr.bf16.gmra.mrb[0].mxu0 %v791
      %v1250 = vpop.f32.mrb[0].mxu0
      %v1251 = vadd.f32 %v1138, %v1250
      %v1252 = vpop.f32.mrb[0].mxu0
      %v1253 = vpop.f32.mrb[0].mxu0
      %v1254 = vadd.f32 %v1141, %v1253
      %v1255 = vpop.f32.mrb[0].mxu0
      %1256 = vmatprep.mubr.bf16.mxu0 0
      %1257 = vmatmul.mubr.bf16.gmra.mrb[0].mxu0 %v794
      %v1258 = vpop.f32.mrb[0].mxu0
      %v1259 = vadd.f32 %v1146, %v1258
      %v1260 = vpop.f32.mrb[0].mxu0
      %v1261 = vpop.f32.mrb[0].mxu0
      %v1262 = vadd.f32 %v1149, %v1261
      %v1263 = vpop.f32.mrb[0].mxu0
      %1264 = vdwg.mxu0
      %v1313 = vunpack.c.l.b16 %v798
      %v1314 = vunpack.c.l.b16 %v799
      %v1315 = vunpack.c.l.b16 %v800
      %v1316 = vunpack.c.l.b16 %v801
      %v1317 = vunpack.c.l.b16 %v802
      %v1318 = vunpack.c.l.b16 %v803
      %v1319 = vunpack.c.l.b16 %v804
      %v1320 = vunpack.c.l.b16 %v805
      %v1321 = vunpack.c.l.b16 %v806
      %v1322 = vunpack.c.l.b16 %v807
      %v1323 = vunpack.c.l.b16 %v808
      %v1324 = vunpack.c.l.b16 %v809
      %v1325 = vunpack.c.l.b16 %v810
      %v1326 = vunpack.c.l.b16 %v811
      %v1327 = vunpack.c.l.b16 %v812
      %v1328 = vunpack.c.l.b16 %v813
      %v1329 = vunpack.c.l.b16 %v814
      %v1330 = vunpack.c.l.b16 %v815
      %v1331 = vunpack.c.l.b16 %v816
      %v1332 = vunpack.c.l.b16 %v817
      %v1333 = vunpack.c.l.b16 %v818
      %v1334 = vunpack.c.l.b16 %v819
      %v1335 = vunpack.c.l.b16 %v820
      %v1336 = vunpack.c.l.b16 %v821
      %v1337 = vunpack.c.l.b16 %v822
      %v1338 = vunpack.c.l.b16 %v823
      %v1339 = vunpack.c.l.b16 %v824
      %v1340 = vunpack.c.l.b16 %v825
      %v1341 = vunpack.c.l.b16 %v826
      %v1342 = vunpack.c.l.b16 %v827
      %v1343 = vunpack.c.l.b16 %v828
      %v1344 = vunpack.c.l.b16 %v829
      %v1345 = vunpack.c.l.b16 %v830
      %v1346 = vunpack.c.l.b16 %v831
      %v1347 = vunpack.c.l.b16 %v832
      %v1348 = vunpack.c.l.b16 %v833
      %v1349 = vunpack.c.l.b16 %v834
      %v1350 = vunpack.c.l.b16 %v835
      %v1351 = vunpack.c.l.b16 %v836
      %v1352 = vunpack.c.l.b16 %v837
      %v1353 = vunpack.c.l.b16 %v838
      %v1354 = vunpack.c.l.b16 %v839
      %v1355 = vunpack.c.l.b16 %v840
      %v1356 = vunpack.c.l.b16 %v841
      %v1357 = vunpack.c.l.b16 %v842
      %v1358 = vunpack.c.l.b16 %v843
      %v1359 = vunpack.c.l.b16 %v844
      %v1360 = vunpack.c.l.b16 %v845
      %v1361 = vpack.c.b16 %v1314, %v1313
      %v1362 = vpack.c.b16 %v1316, %v1315
      %v1363 = vpack.c.b16 %v1318, %v1317
      %v1364 = vpack.c.b16 %v1320, %v1319
      %v1365 = vpack.c.b16 %v1322, %v1321
      %v1366 = vpack.c.b16 %v1324, %v1323
      %v1367 = vpack.c.b16 %v1326, %v1325
      %v1368 = vpack.c.b16 %v1328, %v1327
      %v1369 = vpack.c.b16 %v1330, %v1329
      %v1370 = vpack.c.b16 %v1332, %v1331
      %v1371 = vpack.c.b16 %v1334, %v1333
      %v1372 = vpack.c.b16 %v1336, %v1335
      %v1373 = vpack.c.b16 %v1338, %v1337
      %v1374 = vpack.c.b16 %v1340, %v1339
      %v1375 = vpack.c.b16 %v1342, %v1341
      %v1376 = vpack.c.b16 %v1344, %v1343
      %v1377 = vpack.c.b16 %v1346, %v1345
      %v1378 = vpack.c.b16 %v1348, %v1347
      %v1379 = vpack.c.b16 %v1350, %v1349
      %v1380 = vpack.c.b16 %v1352, %v1351
      %v1381 = vpack.c.b16 %v1354, %v1353
      %v1382 = vpack.c.b16 %v1356, %v1355
      %v1383 = vpack.c.b16 %v1358, %v1357
      %v1384 = vpack.c.b16 %v1360, %v1359
      %1409 = vmatprep.subr.bf16.mxu0 0
      %1410 = vmatpush1.bf16.msra.mxu0 %v1361
      %1411 = vmatprep.subr.bf16.mxu0 0
      %1412 = vmatpush1.bf16.msra.mxu0 %v1362
      %1413 = vmatprep.subr.bf16.mxu0 0
      %1414 = vmatpush1.bf16.msra.mxu0 %v1363
      %1415 = vmatprep.subr.bf16.mxu0 0
      %1416 = vmatpush1.bf16.msra.mxu0 %v1364
      %1417 = vmatprep.subr.bf16.mxu0 0
      %1418 = vmatpush1.bf16.msra.mxu0 %v1365
      %1419 = vmatprep.subr.bf16.mxu0 0
      %1420 = vmatpush1.bf16.msra.mxu0 %v1366
      %1421 = vmatprep.subr.bf16.mxu0 0
      %1422 = vmatpush1.bf16.msra.mxu0 %v1367
      %1423 = vmatprep.subr.bf16.mxu0 0
      %1424 = vmatpush1.bf16.msra.mxu0 %v1368
      %1425 = vmatprep.subr.bf16.mxu0 0
      %1426 = vmatpush1.bf16.msra.mxu0 %v1369
      %1427 = vmatprep.subr.bf16.mxu0 0
      %1428 = vmatpush1.bf16.msra.mxu0 %v1370
      %1429 = vmatprep.subr.bf16.mxu0 0
      %1430 = vmatpush1.bf16.msra.mxu0 %v1371
      %1431 = vmatprep.subr.bf16.mxu0 0
      %1432 = vmatpush1.bf16.msra.mxu0 %v1372
      %1433 = vmatprep.subr.bf16.mxu0 0
      %1434 = vmatpush1.bf16.msra.mxu0 %v1373
      %1435 = vmatprep.subr.bf16.mxu0 0
      %1436 = vmatpush1.bf16.msra.mxu0 %v1374
      %1437 = vmatprep.subr.bf16.mxu0 0
      %1438 = vmatpush1.bf16.msra.mxu0 %v1375
      %1439 = vmatprep.subr.bf16.mxu0 0
      %1440 = vmatpush1.bf16.msra.mxu0 %v1376
      %1441 = vmatprep.mubr.bf16.mxu0 %v763
      %1442 = vmatmul.mubr.bf16.gmra.mrb[0].mxu0 %v762
      %v1443 = vpop.f32.mrb[0].mxu0
      %v1444 = vadd.f32 %v1187, %v1443
      %v1445 = vpop.f32.mrb[0].mxu0
      %v1446 = vpop.f32.mrb[0].mxu0
      %v1447 = vadd.f32 %v1190, %v1446
      %v1448 = vpop.f32.mrb[0].mxu0
      %1449 = vmatprep.mubr.bf16.mxu0 %v766
      %1450 = vmatmul.mubr.bf16.gmra.mrb[0].mxu0 %v765
      %v1451 = vpop.f32.mrb[0].mxu0
      %v1452 = vadd.f32 %v1195, %v1451
      %v1453 = vpop.f32.mrb[0].mxu0
      %v1454 = vpop.f32.mrb[0].mxu0
      %v1455 = vadd.f32 %v1198, %v1454
      %v1456 = vpop.f32.mrb[0].mxu0
      %1457 = vmatprep.mubr.bf16.mxu0 %v769
      %1458 = vmatmul.mubr.bf16.gmra.mrb[0].mxu0 %v768
      %v1459 = vpop.f32.mrb[0].mxu0
      %v1460 = vadd.f32 %v1203, %v1459
      %v1461 = vpop.f32.mrb[0].mxu0
      %v1462 = vpop.f32.mrb[0].mxu0
      %v1463 = vadd.f32 %v1206, %v1462
      %v1464 = vpop.f32.mrb[0].mxu0
      %1465 = vmatprep.mubr.bf16.mxu0 %v772
      %1466 = vmatmul.mubr.bf16.gmra.mrb[0].mxu0 %v771
      %v1467 = vpop.f32.mrb[0].mxu0
      %v1468 = vadd.f32 %v1211, %v1467
      %v1469 = vpop.f32.mrb[0].mxu0
      %v1470 = vpop.f32.mrb[0].mxu0
      %v1471 = vadd.f32 %v1214, %v1470
      %v1472 = vpop.f32.mrb[0].mxu0
      %1473 = vmatprep.mubr.bf16.mxu0 %v775
      %1474 = vmatmul.mubr.bf16.gmra.mrb[0].mxu0 %v774
      %v1475 = vpop.f32.mrb[0].mxu0
      %v1476 = vadd.f32 %v1219, %v1475
      %v1477 = vpop.f32.mrb[0].mxu0
      %v1478 = vpop.f32.mrb[0].mxu0
      %v1479 = vadd.f32 %v1222, %v1478
      %v1480 = vpop.f32.mrb[0].mxu0
      %1481 = vmatprep.mubr.bf16.mxu0 %v778
      %1482 = vmatmul.mubr.bf16.gmra.mrb[0].mxu0 %v777
      %v1483 = vpop.f32.mrb[0].mxu0
      %v1484 = vadd.f32 %v1227, %v1483
      %v1485 = vpop.f32.mrb[0].mxu0
      %v1486 = vpop.f32.mrb[0].mxu0
      %v1487 = vadd.f32 %v1230, %v1486
      %v1488 = vpop.f32.mrb[0].mxu0
      %1489 = vmatprep.mubr.bf16.mxu0 %v781
      %1490 = vmatmul.mubr.bf16.gmra.mrb[0].mxu0 %v780
      %v1491 = vpop.f32.mrb[0].mxu0
      %v1492 = vadd.f32 %v1235, %v1491
      %v1493 = vpop.f32.mrb[0].mxu0
      %v1494 = vpop.f32.mrb[0].mxu0
      %v1495 = vadd.f32 %v1238, %v1494
      %v1496 = vpop.f32.mrb[0].mxu0
      %1497 = vmatprep.mubr.bf16.mxu0 %v784
      %1498 = vmatmul.mubr.bf16.gmra.mrb[0].mxu0 %v783
      %v1499 = vpop.f32.mrb[0].mxu0
      %v1500 = vadd.f32 %v1243, %v1499
      %v1501 = vpop.f32.mrb[0].mxu0
      %v1502 = vpop.f32.mrb[0].mxu0
      %v1503 = vadd.f32 %v1246, %v1502
      %v1504 = vpop.f32.mrb[0].mxu0
      %1505 = vmatprep.mubr.bf16.mxu0 %v787
      %1506 = vmatmul.mubr.bf16.gmra.mrb[0].mxu0 %v786
      %v1507 = vpop.f32.mrb[0].mxu0
      %v1508 = vadd.f32 %v1251, %v1507
      %v1509 = vpop.f32.mrb[0].mxu0
      %v1510 = vpop.f32.mrb[0].mxu0
      %v1511 = vadd.f32 %v1254, %v1510
      %v1512 = vpop.f32.mrb[0].mxu0
      %1513 = vmatprep.mubr.bf16.mxu0 %v790
      %1514 = vmatmul.mubr.bf16.gmra.mrb[0].mxu0 %v789
      %v1515 = vpop.f32.mrb[0].mxu0
      %v1516 = vadd.f32 %v1259, %v1515
      %v1517 = vpop.f32.mrb[0].mxu0
      %v1518 = vpop.f32.mrb[0].mxu0
      %v1519 = vadd.f32 %v1262, %v1518
      %v1520 = vpop.f32.mrb[0].mxu0
      %1521 = vdwg.mxu0
      %1522 = vmatprep.subr.bf16.mxu0 0
      %1523 = vmatpush1.bf16.msra.mxu0 %v1377
      %1524 = vmatprep.subr.bf16.mxu0 0
      %1525 = vmatpush1.bf16.msra.mxu0 %v1378
      %1526 = vmatprep.subr.bf16.mxu0 0
      %1527 = vmatpush1.bf16.msra.mxu0 %v1379
      %1528 = vmatprep.subr.bf16.mxu0 0
      %1529 = vmatpush1.bf16.msra.mxu0 %v1380
      %1530 = vmatprep.subr.bf16.mxu0 0
      %1531 = vmatpush1.bf16.msra.mxu0 %v1381
      %1532 = vmatprep.subr.bf16.mxu0 0
      %1533 = vmatpush1.bf16.msra.mxu0 %v1382
      %1534 = vmatprep.subr.bf16.mxu0 0
      %1535 = vmatpush1.bf16.msra.mxu0 %v1383
      %1536 = vmatprep.subr.bf16.mxu0 0
      %1537 = vmatpush1.bf16.msra.mxu0 %v1384
      %1538 = vmatprep.subr.bf16.mxu0 0
      %1539 = vmatpush1.bf16.msra.mxu0 0
      %1540 = vmatprep.subr.bf16.mxu0 0
      %1541 = vmatpush1.bf16.msra.mxu0 0
      %1542 = vmatprep.subr.bf16.mxu0 0
      %1543 = vmatpush1.bf16.msra.mxu0 0
      %1544 = vmatprep.subr.bf16.mxu0 0
      %1545 = vmatpush1.bf16.msra.mxu0 0
      %1546 = vmatprep.subr.bf16.mxu0 0
      %1547 = vmatpush1.bf16.msra.mxu0 0
      %1548 = vmatprep.subr.bf16.mxu0 0
      %1549 = vmatpush1.bf16.msra.mxu0 0
      %1550 = vmatprep.subr.bf16.mxu0 0
      %1551 = vmatpush1.bf16.msra.mxu0 0
      %1552 = vmatprep.subr.bf16.mxu0 0
      %1553 = vmatpush1.bf16.msra.mxu0 0
      %1554 = vmatprep.mubr.bf16.mxu0 0
      %1555 = vmatmul.mubr.bf16.gmra.mrb[0].mxu0 %v764
      %v1556 = vpop.f32.mrb[0].mxu0
      %v1557 = vadd.f32 %v1444, %v1556
      %v1558 = vpop.f32.mrb[0].mxu0
      %v1559 = vpop.f32.mrb[0].mxu0
      %v1560 = vadd.f32 %v1447, %v1559
      %v1561 = vpop.f32.mrb[0].mxu0
      %1562 = vmatprep.mubr.bf16.mxu0 0
      %1563 = vmatmul.mubr.bf16.gmra.mrb[0].mxu0 %v767
      %v1564 = vpop.f32.mrb[0].mxu0
      %v1565 = vadd.f32 %v1452, %v1564
      %v1566 = vpop.f32.mrb[0].mxu0
      %v1567 = vpop.f32.mrb[0].mxu0
      %v1568 = vadd.f32 %v1455, %v1567
      %v1569 = vpop.f32.mrb[0].mxu0
      %1570 = vmatprep.mubr.bf16.mxu0 0
      %1571 = vmatmul.mubr.bf16.gmra.mrb[0].mxu0 %v770
      %v1572 = vpop.f32.mrb[0].mxu0
      %v1573 = vadd.f32 %v1460, %v1572
      %v1574 = vpop.f32.mrb[0].mxu0
      %v1575 = vpop.f32.mrb[0].mxu0
      %v1576 = vadd.f32 %v1463, %v1575
      %v1577 = vpop.f32.mrb[0].mxu0
      %1578 = vmatprep.mubr.bf16.mxu0 0
      %1579 = vmatmul.mubr.bf16.gmra.mrb[0].mxu0 %v773
      %v1580 = vpop.f32.mrb[0].mxu0
      %v1581 = vadd.f32 %v1468, %v1580
      %v1582 = vpop.f32.mrb[0].mxu0
      %v1583 = vpop.f32.mrb[0].mxu0
      %v1584 = vadd.f32 %v1471, %v1583
      %v1585 = vpop.f32.mrb[0].mxu0
      %1586 = vmatprep.mubr.bf16.mxu0 0
      %1587 = vmatmul.mubr.bf16.gmra.mrb[0].mxu0 %v776
      %v1588 = vpop.f32.mrb[0].mxu0
      %v1589 = vadd.f32 %v1476, %v1588
      %v1590 = vpop.f32.mrb[0].mxu0
      %v1591 = vpop.f32.mrb[0].mxu0
      %v1592 = vadd.f32 %v1479, %v1591
      %v1593 = vpop.f32.mrb[0].mxu0
      %1594 = vmatprep.mubr.bf16.mxu0 0
      %1595 = vmatmul.mubr.bf16.gmra.mrb[0].mxu0 %v779
      %v1596 = vpop.f32.mrb[0].mxu0
      %v1597 = vadd.f32 %v1484, %v1596
      %v1598 = vpop.f32.mrb[0].mxu0
      %v1599 = vpop.f32.mrb[0].mxu0
      %v1600 = vadd.f32 %v1487, %v1599
      %v1601 = vpop.f32.mrb[0].mxu0
      %1602 = vmatprep.mubr.bf16.mxu0 0
      %1603 = vmatmul.mubr.bf16.gmra.mrb[0].mxu0 %v782
      %v1604 = vpop.f32.mrb[0].mxu0
      %v1605 = vadd.f32 %v1492, %v1604
      %v1606 = vpop.f32.mrb[0].mxu0
      %v1607 = vpop.f32.mrb[0].mxu0
      %v1608 = vadd.f32 %v1495, %v1607
      %v1609 = vpop.f32.mrb[0].mxu0
      %1610 = vmatprep.mubr.bf16.mxu0 0
      %1611 = vmatmul.mubr.bf16.gmra.mrb[0].mxu0 %v785
      %v1612 = vpop.f32.mrb[0].mxu0
      %v1613 = vadd.f32 %v1500, %v1612
      %v1614 = vpop.f32.mrb[0].mxu0
      %v1615 = vpop.f32.mrb[0].mxu0
      %v1616 = vadd.f32 %v1503, %v1615
      %v1617 = vpop.f32.mrb[0].mxu0
      %1618 = vmatprep.mubr.bf16.mxu0 0
      %1619 = vmatmul.mubr.bf16.gmra.mrb[0].mxu0 %v788
      %v1620 = vpop.f32.mrb[0].mxu0
      %v1621 = vadd.f32 %v1508, %v1620
      %v1622 = vpop.f32.mrb[0].mxu0
      %v1623 = vpop.f32.mrb[0].mxu0
      %v1624 = vadd.f32 %v1511, %v1623
      %v1625 = vpop.f32.mrb[0].mxu0
      %1626 = vmatprep.mubr.bf16.mxu0 0
      %1627 = vmatmul.mubr.bf16.gmra.mrb[0].mxu0 %v791
      %v1628 = vpop.f32.mrb[0].mxu0
      %v1629 = vadd.f32 %v1516, %v1628
      %v1630 = vpop.f32.mrb[0].mxu0
      %v1631 = vpop.f32.mrb[0].mxu0
      %v1632 = vadd.f32 %v1519, %v1631
      %v1633 = vpop.f32.mrb[0].mxu0
      %1634 = vdwg.mxu0
      %s1635 = scalar_lea.vmem %s3, 384
      %v1636 = vld [vmem:[%s1635] sm:$0xf]
      %v1637 = vld [vmem:[%s1635 + $0x4] sm:$0xf]
      %v1638 = vld [vmem:[%s1635 + $0x8] sm:$0xf]
      %v1639 = vld [vmem:[%s1635 + $0xc] sm:$0xf]
      %v1640 = vld [vmem:[%s1635 + $0x10] sm:$0xf]
      %v1641 = vld [vmem:[%s1635 + $0x14] sm:$0xf]
      %v1642 = vld [vmem:[%s1635 + $0x18] sm:$0xf]
      %v1643 = vld [vmem:[%s1635 + $0x1c] sm:$0xf]
      %v1644 = vld [vmem:[%s1635 + $0x20] sm:$0xf]
      %v1645 = vld [vmem:[%s1635 + $0x24] sm:$0xf]
      %v1646 = vld [vmem:[%s1635 + $0x28] sm:$0xf]
      %v1647 = vld [vmem:[%s1635 + $0x2c] sm:$0xf]
      %v1648 = vld [vmem:[%s1635 + $0x30] sm:$0xf]
      %v1649 = vld [vmem:[%s1635 + $0x34] sm:$0xf]
      %v1650 = vld [vmem:[%s1635 + $0x38] sm:$0xf]
      %v1651 = vld [vmem:[%s1635 + $0x3c] sm:$0xf]
      %v1652 = vld [vmem:[%s1635 + $0x40] sm:$0xf]
      %v1653 = vld [vmem:[%s1635 + $0x44] sm:$0xf]
      %v1654 = vld [vmem:[%s1635 + $0x48] sm:$0xf]
      %v1655 = vld [vmem:[%s1635 + $0x4c] sm:$0xf]
      %v1656 = vld [vmem:[%s1635 + $0x50] sm:$0xf]
      %v1657 = vld [vmem:[%s1635 + $0x54] sm:$0xf]
      %v1658 = vld [vmem:[%s1635 + $0x58] sm:$0xf]
      %v1659 = vld [vmem:[%s1635 + $0x5c] sm:$0xf]
      %v1660 = vld [vmem:[%s1635 + $0x60] sm:$0xf]
      %v1661 = vld [vmem:[%s1635 + $0x64] sm:$0xf]
      %v1662 = vld [vmem:[%s1635 + $0x68] sm:$0xf]
      %v1663 = vld [vmem:[%s1635 + $0x6c] sm:$0xf]
      %v1664 = vld [vmem:[%s1635 + $0x70] sm:$0xf]
      %v1665 = vld [vmem:[%s1635 + $0x74] sm:$0xf]
      %v1666 = vld [vmem:[%s1635 + $0x78] sm:$0xf]
      %v1667 = vld [vmem:[%s1635 + $0x7c] sm:$0xf]
      %v1668 = vld [vmem:[%s1635 + $0x80] sm:$0xf]
      %v1669 = vld [vmem:[%s1635 + $0x84] sm:$0xf]
      %v1670 = vld [vmem:[%s1635 + $0x88] sm:$0xf]
      %v1671 = vld [vmem:[%s1635 + $0x8c] sm:$0xf]
      %v1672 = vld [vmem:[%s1635 + $0x90] sm:$0xf]
      %v1673 = vld [vmem:[%s1635 + $0x94] sm:$0xf]
      %v1674 = vld [vmem:[%s1635 + $0x98] sm:$0xf]
      %v1675 = vld [vmem:[%s1635 + $0x9c] sm:$0xf]
      %v1676 = vld [vmem:[%s1635 + $0xa0] sm:$0xf]
      %v1677 = vld [vmem:[%s1635 + $0xa4] sm:$0xf]
      %v1678 = vld [vmem:[%s1635 + $0xa8] sm:$0xf]
      %v1679 = vld [vmem:[%s1635 + $0xac] sm:$0xf]
      %v1680 = vld [vmem:[%s1635 + $0xb0] sm:$0xf]
      %v1681 = vld [vmem:[%s1635 + $0xb4] sm:$0xf]
      %v1682 = vld [vmem:[%s1635 + $0xb8] sm:$0xf]
      %v1683 = vld [vmem:[%s1635 + $0xbc] sm:$0xf]
      %v1732 = vunpack.c.l.b16 %v1636
      %v1733 = vunpack.c.l.b16 %v1637
      %v1734 = vunpack.c.l.b16 %v1638
      %v1735 = vunpack.c.l.b16 %v1639
      %v1736 = vunpack.c.l.b16 %v1640
      %v1737 = vunpack.c.l.b16 %v1641
      %v1738 = vunpack.c.l.b16 %v1642
      %v1739 = vunpack.c.l.b16 %v1643
      %v1740 = vunpack.c.l.b16 %v1644
      %v1741 = vunpack.c.l.b16 %v1645
      %v1742 = vunpack.c.l.b16 %v1646
      %v1743 = vunpack.c.l.b16 %v1647
      %v1744 = vunpack.c.l.b16 %v1648
      %v1745 = vunpack.c.l.b16 %v1649
      %v1746 = vunpack.c.l.b16 %v1650
      %v1747 = vunpack.c.l.b16 %v1651
      %v1748 = vunpack.c.l.b16 %v1652
      %v1749 = vunpack.c.l.b16 %v1653
      %v1750 = vunpack.c.l.b16 %v1654
      %v1751 = vunpack.c.l.b16 %v1655
      %v1752 = vunpack.c.l.b16 %v1656
      %v1753 = vunpack.c.l.b16 %v1657
      %v1754 = vunpack.c.l.b16 %v1658
      %v1755 = vunpack.c.l.b16 %v1659
      %v1756 = vunpack.c.l.b16 %v1660
      %v1757 = vunpack.c.l.b16 %v1661
      %v1758 = vunpack.c.l.b16 %v1662
      %v1759 = vunpack.c.l.b16 %v1663
      %v1760 = vunpack.c.l.b16 %v1664
      %v1761 = vunpack.c.l.b16 %v1665
      %v1762 = vunpack.c.l.b16 %v1666
      %v1763 = vunpack.c.l.b16 %v1667
      %v1764 = vunpack.c.l.b16 %v1668
      %v1765 = vunpack.c.l.b16 %v1669
      %v1766 = vunpack.c.l.b16 %v1670
      %v1767 = vunpack.c.l.b16 %v1671
      %v1768 = vunpack.c.l.b16 %v1672
      %v1769 = vunpack.c.l.b16 %v1673
      %v1770 = vunpack.c.l.b16 %v1674
      %v1771 = vunpack.c.l.b16 %v1675
      %v1772 = vunpack.c.l.b16 %v1676
      %v1773 = vunpack.c.l.b16 %v1677
      %v1774 = vunpack.c.l.b16 %v1678
      %v1775 = vunpack.c.l.b16 %v1679
      %v1776 = vunpack.c.l.b16 %v1680
      %v1777 = vunpack.c.l.b16 %v1681
      %v1778 = vunpack.c.l.b16 %v1682
      %v1779 = vunpack.c.l.b16 %v1683
      %v1780 = vpack.c.b16 %v1733, %v1732
      %v1781 = vpack.c.b16 %v1735, %v1734
      %v1782 = vpack.c.b16 %v1737, %v1736
      %v1783 = vpack.c.b16 %v1739, %v1738
      %v1784 = vpack.c.b16 %v1741, %v1740
      %v1785 = vpack.c.b16 %v1743, %v1742
      %v1786 = vpack.c.b16 %v1745, %v1744
      %v1787 = vpack.c.b16 %v1747, %v1746
      %v1788 = vpack.c.b16 %v1749, %v1748
      %v1789 = vpack.c.b16 %v1751, %v1750
      %v1790 = vpack.c.b16 %v1753, %v1752
      %v1791 = vpack.c.b16 %v1755, %v1754
      %v1792 = vpack.c.b16 %v1757, %v1756
      %v1793 = vpack.c.b16 %v1759, %v1758
      %v1794 = vpack.c.b16 %v1761, %v1760
      %v1795 = vpack.c.b16 %v1763, %v1762
      %v1796 = vpack.c.b16 %v1765, %v1764
      %v1797 = vpack.c.b16 %v1767, %v1766
      %v1798 = vpack.c.b16 %v1769, %v1768
      %v1799 = vpack.c.b16 %v1771, %v1770
      %v1800 = vpack.c.b16 %v1773, %v1772
      %v1801 = vpack.c.b16 %v1775, %v1774
      %v1802 = vpack.c.b16 %v1777, %v1776
      %v1803 = vpack.c.b16 %v1779, %v1778
      %1828 = vmatprep.subr.bf16.mxu0 0
      %1829 = vmatpush1.bf16.msra.mxu0 %v1780
      %1830 = vmatprep.subr.bf16.mxu0 0
      %1831 = vmatpush1.bf16.msra.mxu0 %v1781
      %1832 = vmatprep.subr.bf16.mxu0 0
      %1833 = vmatpush1.bf16.msra.mxu0 %v1782
      %1834 = vmatprep.subr.bf16.mxu0 0
      %1835 = vmatpush1.bf16.msra.mxu0 %v1783
      %1836 = vmatprep.subr.bf16.mxu0 0
      %1837 = vmatpush1.bf16.msra.mxu0 %v1784
      %1838 = vmatprep.subr.bf16.mxu0 0
      %1839 = vmatpush1.bf16.msra.mxu0 %v1785
      %1840 = vmatprep.subr.bf16.mxu0 0
      %1841 = vmatpush1.bf16.msra.mxu0 %v1786
      %1842 = vmatprep.subr.bf16.mxu0 0
      %1843 = vmatpush1.bf16.msra.mxu0 %v1787
      %1844 = vmatprep.subr.bf16.mxu0 0
      %1845 = vmatpush1.bf16.msra.mxu0 %v1788
      %1846 = vmatprep.subr.bf16.mxu0 0
      %1847 = vmatpush1.bf16.msra.mxu0 %v1789
      %1848 = vmatprep.subr.bf16.mxu0 0
      %1849 = vmatpush1.bf16.msra.mxu0 %v1790
      %1850 = vmatprep.subr.bf16.mxu0 0
      %1851 = vmatpush1.bf16.msra.mxu0 %v1791
      %1852 = vmatprep.subr.bf16.mxu0 0
      %1853 = vmatpush1.bf16.msra.mxu0 %v1792
      %1854 = vmatprep.subr.bf16.mxu0 0
      %1855 = vmatpush1.bf16.msra.mxu0 %v1793
      %1856 = vmatprep.subr.bf16.mxu0 0
      %1857 = vmatpush1.bf16.msra.mxu0 %v1794
      %1858 = vmatprep.subr.bf16.mxu0 0
      %1859 = vmatpush1.bf16.msra.mxu0 %v1795
      %1860 = vmatprep.mubr.bf16.mxu0 %v769
      %1861 = vmatmul.mubr.bf16.gmra.mrb[0].mxu0 %v768
      %v1862 = vpop.f32.mrb[0].mxu0
      %v1863 = vadd.f32 0.0, %v1862
      %v1864 = vpop.f32.mrb[0].mxu0
      %v1865 = vpop.f32.mrb[0].mxu0
      %v1866 = vadd.f32 0.0, %v1865
      %v1867 = vpop.f32.mrb[0].mxu0
      %1868 = vmatprep.mubr.bf16.mxu0 %v772
      %1869 = vmatmul.mubr.bf16.gmra.mrb[0].mxu0 %v771
      %v1870 = vpop.f32.mrb[0].mxu0
      %v1871 = vadd.f32 0.0, %v1870
      %v1872 = vpop.f32.mrb[0].mxu0
      %v1873 = vpop.f32.mrb[0].mxu0
      %v1874 = vadd.f32 0.0, %v1873
      %v1875 = vpop.f32.mrb[0].mxu0
      %1876 = vmatprep.mubr.bf16.mxu0 %v775
      %1877 = vmatmul.mubr.bf16.gmra.mrb[0].mxu0 %v774
      %v1878 = vpop.f32.mrb[0].mxu0
      %v1879 = vadd.f32 0.0, %v1878
      %v1880 = vpop.f32.mrb[0].mxu0
      %v1881 = vpop.f32.mrb[0].mxu0
      %v1882 = vadd.f32 0.0, %v1881
      %v1883 = vpop.f32.mrb[0].mxu0
      %1884 = vmatprep.mubr.bf16.mxu0 %v778
      %1885 = vmatmul.mubr.bf16.gmra.mrb[0].mxu0 %v777
      %v1886 = vpop.f32.mrb[0].mxu0
      %v1887 = vadd.f32 0.0, %v1886
      %v1888 = vpop.f32.mrb[0].mxu0
      %v1889 = vpop.f32.mrb[0].mxu0
      %v1890 = vadd.f32 0.0, %v1889
      %v1891 = vpop.f32.mrb[0].mxu0
      %1892 = vmatprep.mubr.bf16.mxu0 %v781
      %1893 = vmatmul.mubr.bf16.gmra.mrb[0].mxu0 %v780
      %v1894 = vpop.f32.mrb[0].mxu0
      %v1895 = vadd.f32 0.0, %v1894
      %v1896 = vpop.f32.mrb[0].mxu0
      %v1897 = vpop.f32.mrb[0].mxu0
      %v1898 = vadd.f32 0.0, %v1897
      %v1899 = vpop.f32.mrb[0].mxu0
      %1900 = vmatprep.mubr.bf16.mxu0 %v784
      %1901 = vmatmul.mubr.bf16.gmra.mrb[0].mxu0 %v783
      %v1902 = vpop.f32.mrb[0].mxu0
      %v1903 = vadd.f32 0.0, %v1902
      %v1904 = vpop.f32.mrb[0].mxu0
      %v1905 = vpop.f32.mrb[0].mxu0
      %v1906 = vadd.f32 0.0, %v1905
      %v1907 = vpop.f32.mrb[0].mxu0
      %1908 = vmatprep.mubr.bf16.mxu0 %v787
      %1909 = vmatmul.mubr.bf16.gmra.mrb[0].mxu0 %v786
      %v1910 = vpop.f32.mrb[0].mxu0
      %v1911 = vadd.f32 0.0, %v1910
      %v1912 = vpop.f32.mrb[0].mxu0
      %v1913 = vpop.f32.mrb[0].mxu0
      %v1914 = vadd.f32 0.0, %v1913
      %v1915 = vpop.f32.mrb[0].mxu0
      %1916 = vmatprep.mubr.bf16.mxu0 %v790
      %1917 = vmatmul.mubr.bf16.gmra.mrb[0].mxu0 %v789
      %v1918 = vpop.f32.mrb[0].mxu0
      %v1919 = vadd.f32 0.0, %v1918
      %v1920 = vpop.f32.mrb[0].mxu0
      %v1921 = vpop.f32.mrb[0].mxu0
      %v1922 = vadd.f32 0.0, %v1921
      %v1923 = vpop.f32.mrb[0].mxu0
      %1924 = vmatprep.mubr.bf16.mxu0 %v793
      %1925 = vmatmul.mubr.bf16.gmra.mrb[0].mxu0 %v792
      %v1926 = vpop.f32.mrb[0].mxu0
      %v1927 = vadd.f32 0.0, %v1926
      %v1928 = vpop.f32.mrb[0].mxu0
      %v1929 = vpop.f32.mrb[0].mxu0
      %v1930 = vadd.f32 0.0, %v1929
      %v1931 = vpop.f32.mrb[0].mxu0
      %1932 = vmatprep.mubr.bf16.mxu0 %v796
      %1933 = vmatmul.mubr.bf16.gmra.mrb[0].mxu0 %v795
      %v1934 = vpop.f32.mrb[0].mxu0
      %v1935 = vadd.f32 0.0, %v1934
      %v1936 = vpop.f32.mrb[0].mxu0
      %v1937 = vpop.f32.mrb[0].mxu0
      %v1938 = vadd.f32 0.0, %v1937
      %v1939 = vpop.f32.mrb[0].mxu0
      %1940 = vdwg.mxu0
      %1941 = vmatprep.subr.bf16.mxu0 0
      %1942 = vmatpush1.bf16.msra.mxu0 %v1796
      %1943 = vmatprep.subr.bf16.mxu0 0
      %1944 = vmatpush1.bf16.msra.mxu0 %v1797
      %1945 = vmatprep.subr.bf16.mxu0 0
      %1946 = vmatpush1.bf16.msra.mxu0 %v1798
      %1947 = vmatprep.subr.bf16.mxu0 0
      %1948 = vmatpush1.bf16.msra.mxu0 %v1799
      %1949 = vmatprep.subr.bf16.mxu0 0
      %1950 = vmatpush1.bf16.msra.mxu0 %v1800
      %1951 = vmatprep.subr.bf16.mxu0 0
      %1952 = vmatpush1.bf16.msra.mxu0 %v1801
      %1953 = vmatprep.subr.bf16.mxu0 0
      %1954 = vmatpush1.bf16.msra.mxu0 %v1802
      %1955 = vmatprep.subr.bf16.mxu0 0
      %1956 = vmatpush1.bf16.msra.mxu0 %v1803
      %1957 = vmatprep.subr.bf16.mxu0 0
      %1958 = vmatpush1.bf16.msra.mxu0 0
      %1959 = vmatprep.subr.bf16.mxu0 0
      %1960 = vmatpush1.bf16.msra.mxu0 0
      %1961 = vmatprep.subr.bf16.mxu0 0
      %1962 = vmatpush1.bf16.msra.mxu0 0
      %1963 = vmatprep.subr.bf16.mxu0 0
      %1964 = vmatpush1.bf16.msra.mxu0 0
      %1965 = vmatprep.subr.bf16.mxu0 0
      %1966 = vmatpush1.bf16.msra.mxu0 0
      %1967 = vmatprep.subr.bf16.mxu0 0
      %1968 = vmatpush1.bf16.msra.mxu0 0
      %1969 = vmatprep.subr.bf16.mxu0 0
      %1970 = vmatpush1.bf16.msra.mxu0 0
      %1971 = vmatprep.subr.bf16.mxu0 0
      %1972 = vmatpush1.bf16.msra.mxu0 0
      %1973 = vmatprep.mubr.bf16.mxu0 0
      %1974 = vmatmul.mubr.bf16.gmra.mrb[0].mxu0 %v770
      %v1975 = vpop.f32.mrb[0].mxu0
      %v1976 = vadd.f32 %v1863, %v1975
      %v1977 = vpop.f32.mrb[0].mxu0
      %v1978 = vpop.f32.mrb[0].mxu0
      %v1979 = vadd.f32 %v1866, %v1978
      %v1980 = vpop.f32.mrb[0].mxu0
      %1981 = vmatprep.mubr.bf16.mxu0 0
      %1982 = vmatmul.mubr.bf16.gmra.mrb[0].mxu0 %v773
      %v1983 = vpop.f32.mrb[0].mxu0
      %v1984 = vadd.f32 %v1871, %v1983
      %v1985 = vpop.f32.mrb[0].mxu0
      %v1986 = vpop.f32.mrb[0].mxu0
      %v1987 = vadd.f32 %v1874, %v1986
      %v1988 = vpop.f32.mrb[0].mxu0
      %1989 = vmatprep.mubr.bf16.mxu0 0
      %1990 = vmatmul.mubr.bf16.gmra.mrb[0].mxu0 %v776
      %v1991 = vpop.f32.mrb[0].mxu0
      %v1992 = vadd.f32 %v1879, %v1991
      %v1993 = vpop.f32.mrb[0].mxu0
      %v1994 = vpop.f32.mrb[0].mxu0
      %v1995 = vadd.f32 %v1882, %v1994
      %v1996 = vpop.f32.mrb[0].mxu0
      %1997 = vmatprep.mubr.bf16.mxu0 0
      %1998 = vmatmul.mubr.bf16.gmra.mrb[0].mxu0 %v779
      %v1999 = vpop.f32.mrb[0].mxu0
      %v2000 = vadd.f32 %v1887, %v1999
      %v2001 = vpop.f32.mrb[0].mxu0
      %v2002 = vpop.f32.mrb[0].mxu0
      %v2003 = vadd.f32 %v1890, %v2002
      %v2004 = vpop.f32.mrb[0].mxu0
      %2005 = vmatprep.mubr.bf16.mxu0 0
      %2006 = vmatmul.mubr.bf16.gmra.mrb[0].mxu0 %v782
      %v2007 = vpop.f32.mrb[0].mxu0
      %v2008 = vadd.f32 %v1895, %v2007
      %v2009 = vpop.f32.mrb[0].mxu0
      %v2010 = vpop.f32.mrb[0].mxu0
      %v2011 = vadd.f32 %v1898, %v2010
      %v2012 = vpop.f32.mrb[0].mxu0
      %2013 = vmatprep.mubr.bf16.mxu0 0
      %2014 = vmatmul.mubr.bf16.gmra.mrb[0].mxu0 %v785
      %v2015 = vpop.f32.mrb[0].mxu0
      %v2016 = vadd.f32 %v1903, %v2015
      %v2017 = vpop.f32.mrb[0].mxu0
      %v2018 = vpop.f32.mrb[0].mxu0
      %v2019 = vadd.f32 %v1906, %v2018
      %v2020 = vpop.f32.mrb[0].mxu0
      %2021 = vmatprep.mubr.bf16.mxu0 0
      %2022 = vmatmul.mubr.bf16.gmra.mrb[0].mxu0 %v788
      %v2023 = vpop.f32.mrb[0].mxu0
      %v2024 = vadd.f32 %v1911, %v2023
      %v2025 = vpop.f32.mrb[0].mxu0
      %v2026 = vpop.f32.mrb[0].mxu0
      %v2027 = vadd.f32 %v1914, %v2026
      %v2028 = vpop.f32.mrb[0].mxu0
      %2029 = vmatprep.mubr.bf16.mxu0 0
      %2030 = vmatmul.mubr.bf16.gmra.mrb[0].mxu0 %v791
      %v2031 = vpop.f32.mrb[0].mxu0
      %v2032 = vadd.f32 %v1919, %v2031
      %v2033 = vpop.f32.mrb[0].mxu0
      %v2034 = vpop.f32.mrb[0].mxu0
      %v2035 = vadd.f32 %v1922, %v2034
      %v2036 = vpop.f32.mrb[0].mxu0
      %2037 = vmatprep.mubr.bf16.mxu0 0
      %2038 = vmatmul.mubr.bf16.gmra.mrb[0].mxu0 %v794
      %v2039 = vpop.f32.mrb[0].mxu0
      %v2040 = vadd.f32 %v1927, %v2039
      %v2041 = vpop.f32.mrb[0].mxu0
      %v2042 = vpop.f32.mrb[0].mxu0
      %v2043 = vadd.f32 %v1930, %v2042
      %v2044 = vpop.f32.mrb[0].mxu0
      %2045 = vmatprep.mubr.bf16.mxu0 0
      %2046 = vmatmul.mubr.bf16.gmra.mrb[0].mxu0 %v797
      %v2047 = vpop.f32.mrb[0].mxu0
      %v2048 = vadd.f32 %v1935, %v2047
      %v2049 = vpop.f32.mrb[0].mxu0
      %v2050 = vpop.f32.mrb[0].mxu0
      %v2051 = vadd.f32 %v1938, %v2050
      %v2052 = vpop.f32.mrb[0].mxu0
      %2053 = vdwg.mxu0
      %v2054 = vadd.f32 %v1557, %v1976
      %v2055 = vadd.f32 %v1560, %v1979
      %v2056 = vadd.f32 %v1565, %v1984
      %v2057 = vadd.f32 %v1568, %v1987
      %v2058 = vadd.f32 %v1573, %v1992
      %v2059 = vadd.f32 %v1576, %v1995
      %v2060 = vadd.f32 %v1581, %v2000
      %v2061 = vadd.f32 %v1584, %v2003
      %v2062 = vadd.f32 %v1589, %v2008
      %v2063 = vadd.f32 %v1592, %v2011
      %v2064 = vadd.f32 %v1597, %v2016
      %v2065 = vadd.f32 %v1600, %v2019
      %v2066 = vadd.f32 %v1605, %v2024
      %v2067 = vadd.f32 %v1608, %v2027
      %v2068 = vadd.f32 %v1613, %v2032
      %v2069 = vadd.f32 %v1616, %v2035
      %v2070 = vadd.f32 %v1621, %v2040
      %v2071 = vadd.f32 %v1624, %v2043
      %v2072 = vadd.f32 %v1629, %v2048
      %v2073 = vadd.f32 %v1632, %v2051
      %v2074 = vld [vmem:[%s4] sm:$0x1]
      %v2076 = vlaneseq
      %v2077 = vshrl.u32 %v2076, 7
      %v2078 = vsub.s32 0, %v2077
      %v2079 = vrot.slane %v2074, %v2078
      %v2081 = vmul.f32 %v2054, %v2079
      %v2082 = vmul.f32 %v2055, %v2079
      %v2083 = vmul.f32 %v2056, %v2079
      %v2084 = vmul.f32 %v2057, %v2079
      %v2085 = vmul.f32 %v2058, %v2079
      %v2086 = vmul.f32 %v2059, %v2079
      %v2087 = vmul.f32 %v2060, %v2079
      %v2088 = vmul.f32 %v2061, %v2079
      %v2089 = vmul.f32 %v2062, %v2079
      %v2090 = vmul.f32 %v2063, %v2079
      %v2091 = vmul.f32 %v2064, %v2079
      %v2092 = vmul.f32 %v2065, %v2079
      %v2093 = vmul.f32 %v2066, %v2079
      %v2094 = vmul.f32 %v2067, %v2079
      %v2095 = vmul.f32 %v2068, %v2079
      %v2096 = vmul.f32 %v2069, %v2079
      %v2097 = vmul.f32 %v2070, %v2079
      %v2098 = vmul.f32 %v2071, %v2079
      %v2099 = vmul.f32 %v2072, %v2079
      %v2100 = vmul.f32 %v2073, %v2079
      %v2101 = vld [vmem:[%s5] sm:$0x1]
      %v2103 = vlaneseq
      %v2104 = vshrl.u32 %v2103, 7
      %v2105 = vsub.s32 0, %v2104
      %v2106 = vrot.slane %v2101, %v2105
      %v2108 = vadd.f32 %v2081, %v2106
      %v2109 = vadd.f32 %v2082, %v2106
      %v2110 = vadd.f32 %v2083, %v2106
      %v2111 = vadd.f32 %v2084, %v2106
      %v2112 = vadd.f32 %v2085, %v2106
      %v2113 = vadd.f32 %v2086, %v2106
      %v2114 = vadd.f32 %v2087, %v2106
      %v2115 = vadd.f32 %v2088, %v2106
      %v2116 = vadd.f32 %v2089, %v2106
      %v2117 = vadd.f32 %v2090, %v2106
      %v2118 = vadd.f32 %v2091, %v2106
      %v2119 = vadd.f32 %v2092, %v2106
      %v2120 = vadd.f32 %v2093, %v2106
      %v2121 = vadd.f32 %v2094, %v2106
      %v2122 = vadd.f32 %v2095, %v2106
      %v2123 = vadd.f32 %v2096, %v2106
      %v2124 = vadd.f32 %v2097, %v2106
      %v2125 = vadd.f32 %v2098, %v2106
      %v2126 = vadd.f32 %v2099, %v2106
      %v2127 = vadd.f32 %v2100, %v2106
      %v2128 = vmax.f32 %v2108, 0.0
      %v2129 = vmax.f32 %v2109, 0.0
      %v2130 = vmax.f32 %v2110, 0.0
      %v2131 = vmax.f32 %v2111, 0.0
      %v2132 = vmax.f32 %v2112, 0.0
      %v2133 = vmax.f32 %v2113, 0.0
      %v2134 = vmax.f32 %v2114, 0.0
      %v2135 = vmax.f32 %v2115, 0.0
      %v2136 = vmax.f32 %v2116, 0.0
      %v2137 = vmax.f32 %v2117, 0.0
      %v2138 = vmax.f32 %v2118, 0.0
      %v2139 = vmax.f32 %v2119, 0.0
      %v2140 = vmax.f32 %v2120, 0.0
      %v2141 = vmax.f32 %v2121, 0.0
      %v2142 = vmax.f32 %v2122, 0.0
      %v2143 = vmax.f32 %v2123, 0.0
      %v2144 = vmax.f32 %v2124, 0.0
      %v2145 = vmax.f32 %v2125, 0.0
      %v2146 = vmax.f32 %v2126, 0.0
      %v2147 = vmax.f32 %v2127, 0.0
      %v2148 = vsel %vm540, 0.0, %v2128
      %v2149 = vsel %vm540, 0.0, %v2129
      %v2150 = vsel 0, 0.0, %v2130
      %v2151 = vsel 0, 0.0, %v2131
      %v2152 = vsel 0, 0.0, %v2132
      %v2153 = vsel 0, 0.0, %v2133
      %v2154 = vsel 0, 0.0, %v2134
      %v2155 = vsel 0, 0.0, %v2135
      %v2156 = vsel 0, 0.0, %v2136
      %v2157 = vsel 0, 0.0, %v2137
      %v2158 = vsel 0, 0.0, %v2138
      %v2159 = vsel 0, 0.0, %v2139
      %v2160 = vsel 0, 0.0, %v2140
      %v2161 = vsel 0, 0.0, %v2141
      %v2162 = vsel 0, 0.0, %v2142
      %v2163 = vsel 0, 0.0, %v2143
      %v2164 = vsel 0, 0.0, %v2144
      %v2165 = vsel 0, 0.0, %v2145
      %v2166 = vsel 0, 0.0, %v2146
      %v2167 = vsel 0, 0.0, %v2147
      %v2168 = vsel 0, 0.0, %v2148
      %v2169 = vsel 0, 0.0, %v2149
      %v2170 = vsel 0, 0.0, %v2150
      %v2171 = vsel 0, 0.0, %v2151
      %v2172 = vsel 0, 0.0, %v2152
      %v2173 = vsel 0, 0.0, %v2153
      %v2174 = vsel 0, 0.0, %v2154
      %v2175 = vsel 0, 0.0, %v2155
      %v2176 = vsel 0, 0.0, %v2156
      %v2177 = vsel 0, 0.0, %v2157
      %v2178 = vsel 0, 0.0, %v2158
      %v2179 = vsel 0, 0.0, %v2159
      %v2180 = vsel 0, 0.0, %v2160
      %v2181 = vsel 0, 0.0, %v2161
      %v2182 = vsel 0, 0.0, %v2162
      %v2183 = vsel 0, 0.0, %v2163
      %v2184 = vsel 0, 0.0, %v2164
      %v2185 = vsel 0, 0.0, %v2165
      %v2186 = vsel %vm567, 0.0, %v2166
      %v2187 = vsel %vm567, 0.0, %v2167
      %v2208 = vrot.slane %v2168, 7
      %v2209 = vrot.slane %v2169, 7
      %v2210 = vsel %vm616, %v2208, %v2209
      %v2211 = vrot.slane %v2170, 7
      %v2212 = vrot.slane %v2171, 7
      %v2213 = vsel %vm616, %v2211, %v2212
      %v2214 = vrot.slane %v2172, 7
      %v2215 = vrot.slane %v2173, 7
      %v2216 = vsel %vm616, %v2214, %v2215
      %v2217 = vrot.slane %v2174, 7
      %v2218 = vrot.slane %v2175, 7
      %v2219 = vsel %vm616, %v2217, %v2218
      %v2220 = vrot.slane %v2176, 7
      %v2221 = vrot.slane %v2177, 7
      %v2222 = vsel %vm616, %v2220, %v2221
      %v2223 = vrot.slane %v2178, 7
      %v2224 = vrot.slane %v2179, 7
      %v2225 = vsel %vm616, %v2223, %v2224
      %v2226 = vrot.slane %v2180, 7
      %v2227 = vrot.slane %v2181, 7
      %v2228 = vsel %vm616, %v2226, %v2227
      %v2229 = vrot.slane %v2182, 7
      %v2230 = vrot.slane %v2183, 7
      %v2231 = vsel %vm616, %v2229, %v2230
      %v2232 = vrot.slane %v2184, 7
      %v2233 = vrot.slane %v2185, 7
      %v2234 = vsel %vm616, %v2232, %v2233
      %v2235 = vrot.slane %v2186, 7
      %v2236 = vrot.slane %v2187, 7
      %v2237 = vsel %vm616, %v2235, %v2236
      %v2258 = vsel %vm616, 0.0, %v2208
      %v2259 = vsel %vm616, 0.0, %v2211
      %v2260 = vsel %vm616, 0.0, %v2214
      %v2261 = vsel %vm616, 0.0, %v2217
      %v2262 = vsel %vm616, 0.0, %v2220
      %v2263 = vsel %vm616, 0.0, %v2223
      %v2264 = vsel %vm616, 0.0, %v2226
      %v2265 = vsel %vm616, 0.0, %v2229
      %v2266 = vsel %vm616, 0.0, %v2232
      %v2267 = vsel %vm616, 0.0, %v2235
      %v2268 = vrot.slane %v2168, 1
      %v2269 = vrot.slane %v2169, 1
      %v2270 = vsel %vm689, %v2268, %v2269
      %v2271 = vrot.slane %v2170, 1
      %v2272 = vrot.slane %v2171, 1
      %v2273 = vsel %vm689, %v2271, %v2272
      %v2274 = vrot.slane %v2172, 1
      %v2275 = vrot.slane %v2173, 1
      %v2276 = vsel %vm689, %v2274, %v2275
      %v2277 = vrot.slane %v2174, 1
      %v2278 = vrot.slane %v2175, 1
      %v2279 = vsel %vm689, %v2277, %v2278
      %v2280 = vrot.slane %v2176, 1
      %v2281 = vrot.slane %v2177, 1
      %v2282 = vsel %vm689, %v2280, %v2281
      %v2283 = vrot.slane %v2178, 1
      %v2284 = vrot.slane %v2179, 1
      %v2285 = vsel %vm689, %v2283, %v2284
      %v2286 = vrot.slane %v2180, 1
      %v2287 = vrot.slane %v2181, 1
      %v2288 = vsel %vm689, %v2286, %v2287
      %v2289 = vrot.slane %v2182, 1
      %v2290 = vrot.slane %v2183, 1
      %v2291 = vsel %vm689, %v2289, %v2290
      %v2292 = vrot.slane %v2184, 1
      %v2293 = vrot.slane %v2185, 1
      %v2294 = vsel %vm689, %v2292, %v2293
      %v2295 = vrot.slane %v2186, 1
      %v2296 = vrot.slane %v2187, 1
      %v2297 = vsel %vm689, %v2295, %v2296
      %v2318 = vsel %vm689, %v2269, 0.0
      %v2319 = vsel %vm689, %v2272, 0.0
      %v2320 = vsel %vm689, %v2275, 0.0
      %v2321 = vsel %vm689, %v2278, 0.0
      %v2322 = vsel %vm689, %v2281, 0.0
      %v2323 = vsel %vm689, %v2284, 0.0
      %v2324 = vsel %vm689, %v2287, 0.0
      %v2325 = vsel %vm689, %v2290, 0.0
      %v2326 = vsel %vm689, %v2293, 0.0
      %v2327 = vsel %vm689, %v2296, 0.0
      %v2328 = vpack.c.bf16 %v2210, %v2258
      %v2329 = vpack.c.bf16 %v2169, %v2168
      %v2330 = vpack.c.bf16 %v2318, %v2270
      %v2331 = vpack.c.bf16 %v2213, %v2259
      %v2332 = vpack.c.bf16 %v2171, %v2170
      %v2333 = vpack.c.bf16 %v2319, %v2273
      %v2334 = vpack.c.bf16 %v2216, %v2260
      %v2335 = vpack.c.bf16 %v2173, %v2172
      %v2336 = vpack.c.bf16 %v2320, %v2276
      %v2337 = vpack.c.bf16 %v2219, %v2261
      %v2338 = vpack.c.bf16 %v2175, %v2174
      %v2339 = vpack.c.bf16 %v2321, %v2279
      %v2340 = vpack.c.bf16 %v2222, %v2262
      %v2341 = vpack.c.bf16 %v2177, %v2176
      %v2342 = vpack.c.bf16 %v2322, %v2282
      %v2343 = vpack.c.bf16 %v2225, %v2263
      %v2344 = vpack.c.bf16 %v2179, %v2178
      %v2345 = vpack.c.bf16 %v2323, %v2285
      %v2346 = vpack.c.bf16 %v2228, %v2264
      %v2347 = vpack.c.bf16 %v2181, %v2180
      %v2348 = vpack.c.bf16 %v2324, %v2288
      %v2349 = vpack.c.bf16 %v2231, %v2265
      %v2350 = vpack.c.bf16 %v2183, %v2182
      %v2351 = vpack.c.bf16 %v2325, %v2291
      %v2352 = vpack.c.bf16 %v2234, %v2266
      %v2353 = vpack.c.bf16 %v2185, %v2184
      %v2354 = vpack.c.bf16 %v2326, %v2294
      %v2355 = vpack.c.bf16 %v2237, %v2267
      %v2356 = vpack.c.bf16 %v2187, %v2186
      %v2357 = vpack.c.bf16 %v2327, %v2297
      %v2358 = vld [vmem:[%s6] sm:$0xf]
      %v2359 = vld [vmem:[%s6 + $0x4] sm:$0xf]
      %v2360 = vld [vmem:[%s6 + $0x8] sm:$0xf]
      %v2361 = vld [vmem:[%s6 + $0xc] sm:$0xf]
      %v2362 = vld [vmem:[%s6 + $0x10] sm:$0xf]
      %v2363 = vld [vmem:[%s6 + $0x14] sm:$0xf]
      %v2364 = vld [vmem:[%s6 + $0x18] sm:$0xf]
      %v2365 = vld [vmem:[%s6 + $0x1c] sm:$0xf]
      %v2366 = vld [vmem:[%s6 + $0x20] sm:$0xf]
      %v2367 = vld [vmem:[%s6 + $0x24] sm:$0xf]
      %v2368 = vld [vmem:[%s6 + $0x28] sm:$0xf]
      %v2369 = vld [vmem:[%s6 + $0x2c] sm:$0xf]
      %v2370 = vld [vmem:[%s6 + $0x30] sm:$0xf]
      %v2371 = vld [vmem:[%s6 + $0x34] sm:$0xf]
      %v2372 = vld [vmem:[%s6 + $0x38] sm:$0xf]
      %v2373 = vld [vmem:[%s6 + $0x3c] sm:$0xf]
      %v2374 = vld [vmem:[%s6 + $0x40] sm:$0xf]
      %v2375 = vld [vmem:[%s6 + $0x44] sm:$0xf]
      %v2376 = vld [vmem:[%s6 + $0x48] sm:$0xf]
      %v2377 = vld [vmem:[%s6 + $0x4c] sm:$0xf]
      %v2378 = vld [vmem:[%s6 + $0x50] sm:$0xf]
      %v2379 = vld [vmem:[%s6 + $0x54] sm:$0xf]
      %v2380 = vld [vmem:[%s6 + $0x58] sm:$0xf]
      %v2381 = vld [vmem:[%s6 + $0x5c] sm:$0xf]
      %v2382 = vld [vmem:[%s6 + $0x60] sm:$0xf]
      %v2383 = vld [vmem:[%s6 + $0x64] sm:$0xf]
      %v2384 = vld [vmem:[%s6 + $0x68] sm:$0xf]
      %v2385 = vld [vmem:[%s6 + $0x6c] sm:$0xf]
      %v2386 = vld [vmem:[%s6 + $0x70] sm:$0xf]
      %v2387 = vld [vmem:[%s6 + $0x74] sm:$0xf]
      %v2388 = vld [vmem:[%s6 + $0x78] sm:$0xf]
      %v2389 = vld [vmem:[%s6 + $0x7c] sm:$0xf]
      %v2390 = vld [vmem:[%s6 + $0x80] sm:$0xf]
      %v2391 = vld [vmem:[%s6 + $0x84] sm:$0xf]
      %v2392 = vld [vmem:[%s6 + $0x88] sm:$0xf]
      %v2393 = vld [vmem:[%s6 + $0x8c] sm:$0xf]
      %v2394 = vld [vmem:[%s6 + $0x90] sm:$0xf]
      %v2395 = vld [vmem:[%s6 + $0x94] sm:$0xf]
      %v2396 = vld [vmem:[%s6 + $0x98] sm:$0xf]
      %v2397 = vld [vmem:[%s6 + $0x9c] sm:$0xf]
      %v2398 = vld [vmem:[%s6 + $0xa0] sm:$0xf]
      %v2399 = vld [vmem:[%s6 + $0xa4] sm:$0xf]
      %v2400 = vld [vmem:[%s6 + $0xa8] sm:$0xf]
      %v2401 = vld [vmem:[%s6 + $0xac] sm:$0xf]
      %v2402 = vld [vmem:[%s6 + $0xb0] sm:$0xf]
      %v2403 = vld [vmem:[%s6 + $0xb4] sm:$0xf]
      %v2404 = vld [vmem:[%s6 + $0xb8] sm:$0xf]
      %v2405 = vld [vmem:[%s6 + $0xbc] sm:$0xf]
      %s2406 = scalar_lea.vmem %s6, 192
      %v2407 = vld [vmem:[%s2406] sm:$0xf]
      %v2408 = vld [vmem:[%s2406 + $0x4] sm:$0xf]
      %v2409 = vld [vmem:[%s2406 + $0x8] sm:$0xf]
      %v2410 = vld [vmem:[%s2406 + $0xc] sm:$0xf]
      %v2411 = vld [vmem:[%s2406 + $0x10] sm:$0xf]
      %v2412 = vld [vmem:[%s2406 + $0x14] sm:$0xf]
      %v2413 = vld [vmem:[%s2406 + $0x18] sm:$0xf]
      %v2414 = vld [vmem:[%s2406 + $0x1c] sm:$0xf]
      %v2415 = vld [vmem:[%s2406 + $0x20] sm:$0xf]
      %v2416 = vld [vmem:[%s2406 + $0x24] sm:$0xf]
      %v2417 = vld [vmem:[%s2406 + $0x28] sm:$0xf]
      %v2418 = vld [vmem:[%s2406 + $0x2c] sm:$0xf]
      %v2419 = vld [vmem:[%s2406 + $0x30] sm:$0xf]
      %v2420 = vld [vmem:[%s2406 + $0x34] sm:$0xf]
      %v2421 = vld [vmem:[%s2406 + $0x38] sm:$0xf]
      %v2422 = vld [vmem:[%s2406 + $0x3c] sm:$0xf]
      %v2423 = vld [vmem:[%s2406 + $0x40] sm:$0xf]
      %v2424 = vld [vmem:[%s2406 + $0x44] sm:$0xf]
      %v2425 = vld [vmem:[%s2406 + $0x48] sm:$0xf]
      %v2426 = vld [vmem:[%s2406 + $0x4c] sm:$0xf]
      %v2427 = vld [vmem:[%s2406 + $0x50] sm:$0xf]
      %v2428 = vld [vmem:[%s2406 + $0x54] sm:$0xf]
      %v2429 = vld [vmem:[%s2406 + $0x58] sm:$0xf]
      %v2430 = vld [vmem:[%s2406 + $0x5c] sm:$0xf]
      %v2431 = vld [vmem:[%s2406 + $0x60] sm:$0xf]
      %v2432 = vld [vmem:[%s2406 + $0x64] sm:$0xf]
      %v2433 = vld [vmem:[%s2406 + $0x68] sm:$0xf]
      %v2434 = vld [vmem:[%s2406 + $0x6c] sm:$0xf]
      %v2435 = vld [vmem:[%s2406 + $0x70] sm:$0xf]
      %v2436 = vld [vmem:[%s2406 + $0x74] sm:$0xf]
      %v2437 = vld [vmem:[%s2406 + $0x78] sm:$0xf]
      %v2438 = vld [vmem:[%s2406 + $0x7c] sm:$0xf]
      %v2439 = vld [vmem:[%s2406 + $0x80] sm:$0xf]
      %v2440 = vld [vmem:[%s2406 + $0x84] sm:$0xf]
      %v2441 = vld [vmem:[%s2406 + $0x88] sm:$0xf]
      %v2442 = vld [vmem:[%s2406 + $0x8c] sm:$0xf]
      %v2443 = vld [vmem:[%s2406 + $0x90] sm:$0xf]
      %v2444 = vld [vmem:[%s2406 + $0x94] sm:$0xf]
      %v2445 = vld [vmem:[%s2406 + $0x98] sm:$0xf]
      %v2446 = vld [vmem:[%s2406 + $0x9c] sm:$0xf]
      %v2447 = vld [vmem:[%s2406 + $0xa0] sm:$0xf]
      %v2448 = vld [vmem:[%s2406 + $0xa4] sm:$0xf]
      %v2449 = vld [vmem:[%s2406 + $0xa8] sm:$0xf]
      %v2450 = vld [vmem:[%s2406 + $0xac] sm:$0xf]
      %v2451 = vld [vmem:[%s2406 + $0xb0] sm:$0xf]
      %v2452 = vld [vmem:[%s2406 + $0xb4] sm:$0xf]
      %v2453 = vld [vmem:[%s2406 + $0xb8] sm:$0xf]
      %v2454 = vld [vmem:[%s2406 + $0xbc] sm:$0xf]
      %v2503 = vunpack.c.l.b16 %v2407
      %v2504 = vunpack.c.l.b16 %v2408
      %v2505 = vunpack.c.l.b16 %v2409
      %v2506 = vunpack.c.l.b16 %v2410
      %v2507 = vunpack.c.l.b16 %v2411
      %v2508 = vunpack.c.l.b16 %v2412
      %v2509 = vunpack.c.l.b16 %v2413
      %v2510 = vunpack.c.l.b16 %v2414
      %v2511 = vunpack.c.l.b16 %v2415
      %v2512 = vunpack.c.l.b16 %v2416
      %v2513 = vunpack.c.l.b16 %v2417
      %v2514 = vunpack.c.l.b16 %v2418
      %v2515 = vunpack.c.l.b16 %v2419
      %v2516 = vunpack.c.l.b16 %v2420
      %v2517 = vunpack.c.l.b16 %v2421
      %v2518 = vunpack.c.l.b16 %v2422
      %v2519 = vunpack.c.l.b16 %v2423
      %v2520 = vunpack.c.l.b16 %v2424
      %v2521 = vunpack.c.l.b16 %v2425
      %v2522 = vunpack.c.l.b16 %v2426
      %v2523 = vunpack.c.l.b16 %v2427
      %v2524 = vunpack.c.l.b16 %v2428
      %v2525 = vunpack.c.l.b16 %v2429
      %v2526 = vunpack.c.l.b16 %v2430
      %v2527 = vunpack.c.l.b16 %v2431
      %v2528 = vunpack.c.l.b16 %v2432
      %v2529 = vunpack.c.l.b16 %v2433
      %v2530 = vunpack.c.l.b16 %v2434
      %v2531 = vunpack.c.l.b16 %v2435
      %v2532 = vunpack.c.l.b16 %v2436
      %v2533 = vunpack.c.l.b16 %v2437
      %v2534 = vunpack.c.l.b16 %v2438
      %v2535 = vunpack.c.l.b16 %v2439
      %v2536 = vunpack.c.l.b16 %v2440
      %v2537 = vunpack.c.l.b16 %v2441
      %v2538 = vunpack.c.l.b16 %v2442
      %v2539 = vunpack.c.l.b16 %v2443
      %v2540 = vunpack.c.l.b16 %v2444
      %v2541 = vunpack.c.l.b16 %v2445
      %v2542 = vunpack.c.l.b16 %v2446
      %v2543 = vunpack.c.l.b16 %v2447
      %v2544 = vunpack.c.l.b16 %v2448
      %v2545 = vunpack.c.l.b16 %v2449
      %v2546 = vunpack.c.l.b16 %v2450
      %v2547 = vunpack.c.l.b16 %v2451
      %v2548 = vunpack.c.l.b16 %v2452
      %v2549 = vunpack.c.l.b16 %v2453
      %v2550 = vunpack.c.l.b16 %v2454
      %v2551 = vpack.c.b16 %v2504, %v2503
      %v2552 = vpack.c.b16 %v2506, %v2505
      %v2553 = vpack.c.b16 %v2508, %v2507
      %v2554 = vpack.c.b16 %v2510, %v2509
      %v2555 = vpack.c.b16 %v2512, %v2511
      %v2556 = vpack.c.b16 %v2514, %v2513
      %v2557 = vpack.c.b16 %v2516, %v2515
      %v2558 = vpack.c.b16 %v2518, %v2517
      %v2559 = vpack.c.b16 %v2520, %v2519
      %v2560 = vpack.c.b16 %v2522, %v2521
      %v2561 = vpack.c.b16 %v2524, %v2523
      %v2562 = vpack.c.b16 %v2526, %v2525
      %v2563 = vpack.c.b16 %v2528, %v2527
      %v2564 = vpack.c.b16 %v2530, %v2529
      %v2565 = vpack.c.b16 %v2532, %v2531
      %v2566 = vpack.c.b16 %v2534, %v2533
      %v2567 = vpack.c.b16 %v2536, %v2535
      %v2568 = vpack.c.b16 %v2538, %v2537
      %v2569 = vpack.c.b16 %v2540, %v2539
      %v2570 = vpack.c.b16 %v2542, %v2541
      %v2571 = vpack.c.b16 %v2544, %v2543
      %v2572 = vpack.c.b16 %v2546, %v2545
      %v2573 = vpack.c.b16 %v2548, %v2547
      %v2574 = vpack.c.b16 %v2550, %v2549
      %2599 = vmatprep.subr.bf16.mxu0 0
      %2600 = vmatpush1.bf16.msra.mxu0 %v2551
      %2601 = vmatprep.subr.bf16.mxu0 0
      %2602 = vmatpush1.bf16.msra.mxu0 %v2552
      %2603 = vmatprep.subr.bf16.mxu0 0
      %2604 = vmatpush1.bf16.msra.mxu0 %v2553
      %2605 = vmatprep.subr.bf16.mxu0 0
      %2606 = vmatpush1.bf16.msra.mxu0 %v2554
      %2607 = vmatprep.subr.bf16.mxu0 0
      %2608 = vmatpush1.bf16.msra.mxu0 %v2555
      %2609 = vmatprep.subr.bf16.mxu0 0
      %2610 = vmatpush1.bf16.msra.mxu0 %v2556
      %2611 = vmatprep.subr.bf16.mxu0 0
      %2612 = vmatpush1.bf16.msra.mxu0 %v2557
      %2613 = vmatprep.subr.bf16.mxu0 0
      %2614 = vmatpush1.bf16.msra.mxu0 %v2558
      %2615 = vmatprep.subr.bf16.mxu0 0
      %2616 = vmatpush1.bf16.msra.mxu0 %v2559
      %2617 = vmatprep.subr.bf16.mxu0 0
      %2618 = vmatpush1.bf16.msra.mxu0 %v2560
      %2619 = vmatprep.subr.bf16.mxu0 0
      %2620 = vmatpush1.bf16.msra.mxu0 %v2561
      %2621 = vmatprep.subr.bf16.mxu0 0
      %2622 = vmatpush1.bf16.msra.mxu0 %v2562
      %2623 = vmatprep.subr.bf16.mxu0 0
      %2624 = vmatpush1.bf16.msra.mxu0 %v2563
      %2625 = vmatprep.subr.bf16.mxu0 0
      %2626 = vmatpush1.bf16.msra.mxu0 %v2564
      %2627 = vmatprep.subr.bf16.mxu0 0
      %2628 = vmatpush1.bf16.msra.mxu0 %v2565
      %2629 = vmatprep.subr.bf16.mxu0 0
      %2630 = vmatpush1.bf16.msra.mxu0 %v2566
      %2631 = vmatprep.mubr.bf16.mxu0 %v2332
      %2632 = vmatmul.mubr.bf16.gmra.mrb[0].mxu0 %v2331
      %v2633 = vpop.f32.mrb[0].mxu0
      %v2634 = vadd.f32 0.0, %v2633
      %v2635 = vpop.f32.mrb[0].mxu0
      %v2636 = vpop.f32.mrb[0].mxu0
      %v2637 = vadd.f32 0.0, %v2636
      %v2638 = vpop.f32.mrb[0].mxu0
      %2639 = vmatprep.mubr.bf16.mxu0 %v2335
      %2640 = vmatmul.mubr.bf16.gmra.mrb[0].mxu0 %v2334
      %v2641 = vpop.f32.mrb[0].mxu0
      %v2642 = vadd.f32 0.0, %v2641
      %v2643 = vpop.f32.mrb[0].mxu0
      %v2644 = vpop.f32.mrb[0].mxu0
      %v2645 = vadd.f32 0.0, %v2644
      %v2646 = vpop.f32.mrb[0].mxu0
      %2647 = vmatprep.mubr.bf16.mxu0 %v2338
      %2648 = vmatmul.mubr.bf16.gmra.mrb[0].mxu0 %v2337
      %v2649 = vpop.f32.mrb[0].mxu0
      %v2650 = vadd.f32 0.0, %v2649
      %v2651 = vpop.f32.mrb[0].mxu0
      %v2652 = vpop.f32.mrb[0].mxu0
      %v2653 = vadd.f32 0.0, %v2652
      %v2654 = vpop.f32.mrb[0].mxu0
      %2655 = vmatprep.mubr.bf16.mxu0 %v2341
      %2656 = vmatmul.mubr.bf16.gmra.mrb[0].mxu0 %v2340
      %v2657 = vpop.f32.mrb[0].mxu0
      %v2658 = vadd.f32 0.0, %v2657
      %v2659 = vpop.f32.mrb[0].mxu0
      %v2660 = vpop.f32.mrb[0].mxu0
      %v2661 = vadd.f32 0.0, %v2660
      %v2662 = vpop.f32.mrb[0].mxu0
      %2663 = vmatprep.mubr.bf16.mxu0 %v2344
      %2664 = vmatmul.mubr.bf16.gmra.mrb[0].mxu0 %v2343
      %v2665 = vpop.f32.mrb[0].mxu0
      %v2666 = vadd.f32 0.0, %v2665
      %v2667 = vpop.f32.mrb[0].mxu0
      %v2668 = vpop.f32.mrb[0].mxu0
      %v2669 = vadd.f32 0.0, %v2668
      %v2670 = vpop.f32.mrb[0].mxu0
      %2671 = vmatprep.mubr.bf16.mxu0 %v2347
      %2672 = vmatmul.mubr.bf16.gmra.mrb[0].mxu0 %v2346
      %v2673 = vpop.f32.mrb[0].mxu0
      %v2674 = vadd.f32 0.0, %v2673
      %v2675 = vpop.f32.mrb[0].mxu0
      %v2676 = vpop.f32.mrb[0].mxu0
      %v2677 = vadd.f32 0.0, %v2676
      %v2678 = vpop.f32.mrb[0].mxu0
      %2679 = vmatprep.mubr.bf16.mxu0 %v2350
      %2680 = vmatmul.mubr.bf16.gmra.mrb[0].mxu0 %v2349
      %v2681 = vpop.f32.mrb[0].mxu0
      %v2682 = vadd.f32 0.0, %v2681
      %v2683 = vpop.f32.mrb[0].mxu0
      %v2684 = vpop.f32.mrb[0].mxu0
      %v2685 = vadd.f32 0.0, %v2684
      %v2686 = vpop.f32.mrb[0].mxu0
      %2687 = vmatprep.mubr.bf16.mxu0 %v2353
      %2688 = vmatmul.mubr.bf16.gmra.mrb[0].mxu0 %v2352
      %v2689 = vpop.f32.mrb[0].mxu0
      %v2690 = vadd.f32 0.0, %v2689
      %v2691 = vpop.f32.mrb[0].mxu0
      %v2692 = vpop.f32.mrb[0].mxu0
      %v2693 = vadd.f32 0.0, %v2692
      %v2694 = vpop.f32.mrb[0].mxu0
      %2695 = vdwg.mxu0
      %2696 = vmatprep.subr.bf16.mxu0 0
      %2697 = vmatpush1.bf16.msra.mxu0 %v2567
      %2698 = vmatprep.subr.bf16.mxu0 0
      %2699 = vmatpush1.bf16.msra.mxu0 %v2568
      %2700 = vmatprep.subr.bf16.mxu0 0
      %2701 = vmatpush1.bf16.msra.mxu0 %v2569
      %2702 = vmatprep.subr.bf16.mxu0 0
      %2703 = vmatpush1.bf16.msra.mxu0 %v2570
      %2704 = vmatprep.subr.bf16.mxu0 0
      %2705 = vmatpush1.bf16.msra.mxu0 %v2571
      %2706 = vmatprep.subr.bf16.mxu0 0
      %2707 = vmatpush1.bf16.msra.mxu0 %v2572
      %2708 = vmatprep.subr.bf16.mxu0 0
      %2709 = vmatpush1.bf16.msra.mxu0 %v2573
      %2710 = vmatprep.subr.bf16.mxu0 0
      %2711 = vmatpush1.bf16.msra.mxu0 %v2574
      %2712 = vmatprep.subr.bf16.mxu0 0
      %2713 = vmatpush1.bf16.msra.mxu0 0
      %2714 = vmatprep.subr.bf16.mxu0 0
      %2715 = vmatpush1.bf16.msra.mxu0 0
      %2716 = vmatprep.subr.bf16.mxu0 0
      %2717 = vmatpush1.bf16.msra.mxu0 0
      %2718 = vmatprep.subr.bf16.mxu0 0
      %2719 = vmatpush1.bf16.msra.mxu0 0
      %2720 = vmatprep.subr.bf16.mxu0 0
      %2721 = vmatpush1.bf16.msra.mxu0 0
      %2722 = vmatprep.subr.bf16.mxu0 0
      %2723 = vmatpush1.bf16.msra.mxu0 0
      %2724 = vmatprep.subr.bf16.mxu0 0
      %2725 = vmatpush1.bf16.msra.mxu0 0
      %2726 = vmatprep.subr.bf16.mxu0 0
      %2727 = vmatpush1.bf16.msra.mxu0 0
      %2728 = vmatprep.mubr.bf16.mxu0 0
      %2729 = vmatmul.mubr.bf16.gmra.mrb[0].mxu0 %v2333
      %v2730 = vpop.f32.mrb[0].mxu0
      %v2731 = vadd.f32 %v2634, %v2730
      %v2732 = vpop.f32.mrb[0].mxu0
      %v2733 = vpop.f32.mrb[0].mxu0
      %v2734 = vadd.f32 %v2637, %v2733
      %v2735 = vpop.f32.mrb[0].mxu0
      %2736 = vmatprep.mubr.bf16.mxu0 0
      %2737 = vmatmul.mubr.bf16.gmra.mrb[0].mxu0 %v2336
      %v2738 = vpop.f32.mrb[0].mxu0
      %v2739 = vadd.f32 %v2642, %v2738
      %v2740 = vpop.f32.mrb[0].mxu0
      %v2741 = vpop.f32.mrb[0].mxu0
      %v2742 = vadd.f32 %v2645, %v2741
      %v2743 = vpop.f32.mrb[0].mxu0
      %2744 = vmatprep.mubr.bf16.mxu0 0
      %2745 = vmatmul.mubr.bf16.gmra.mrb[0].mxu0 %v2339
      %v2746 = vpop.f32.mrb[0].mxu0
      %v2747 = vadd.f32 %v2650, %v2746
      %v2748 = vpop.f32.mrb[0].mxu0
      %v2749 = vpop.f32.mrb[0].mxu0
      %v2750 = vadd.f32 %v2653, %v2749
      %v2751 = vpop.f32.mrb[0].mxu0
      %2752 = vmatprep.mubr.bf16.mxu0 0
      %2753 = vmatmul.mubr.bf16.gmra.mrb[0].mxu0 %v2342
      %v2754 = vpop.f32.mrb[0].mxu0
      %v2755 = vadd.f32 %v2658, %v2754
      %v2756 = vpop.f32.mrb[0].mxu0
      %v2757 = vpop.f32.mrb[0].mxu0
      %v2758 = vadd.f32 %v2661, %v2757
      %v2759 = vpop.f32.mrb[0].mxu0
      %2760 = vmatprep.mubr.bf16.mxu0 0
      %2761 = vmatmul.mubr.bf16.gmra.mrb[0].mxu0 %v2345
      %v2762 = vpop.f32.mrb[0].mxu0
      %v2763 = vadd.f32 %v2666, %v2762
      %v2764 = vpop.f32.mrb[0].mxu0
      %v2765 = vpop.f32.mrb[0].mxu0
      %v2766 = vadd.f32 %v2669, %v2765
      %v2767 = vpop.f32.mrb[0].mxu0
      %2768 = vmatprep.mubr.bf16.mxu0 0
      %2769 = vmatmul.mubr.bf16.gmra.mrb[0].mxu0 %v2348
      %v2770 = vpop.f32.mrb[0].mxu0
      %v2771 = vadd.f32 %v2674, %v2770
      %v2772 = vpop.f32.mrb[0].mxu0
      %v2773 = vpop.f32.mrb[0].mxu0
      %v2774 = vadd.f32 %v2677, %v2773
      %v2775 = vpop.f32.mrb[0].mxu0
      %2776 = vmatprep.mubr.bf16.mxu0 0
      %2777 = vmatmul.mubr.bf16.gmra.mrb[0].mxu0 %v2351
      %v2778 = vpop.f32.mrb[0].mxu0
      %v2779 = vadd.f32 %v2682, %v2778
      %v2780 = vpop.f32.mrb[0].mxu0
      %v2781 = vpop.f32.mrb[0].mxu0
      %v2782 = vadd.f32 %v2685, %v2781
      %v2783 = vpop.f32.mrb[0].mxu0
      %2784 = vmatprep.mubr.bf16.mxu0 0
      %2785 = vmatmul.mubr.bf16.gmra.mrb[0].mxu0 %v2354
      %v2786 = vpop.f32.mrb[0].mxu0
      %v2787 = vadd.f32 %v2690, %v2786
      %v2788 = vpop.f32.mrb[0].mxu0
      %v2789 = vpop.f32.mrb[0].mxu0
      %v2790 = vadd.f32 %v2693, %v2789
      %v2791 = vpop.f32.mrb[0].mxu0
      %2792 = vdwg.mxu0
      %v2841 = vunpack.c.l.b16 %v2358
      %v2842 = vunpack.c.l.b16 %v2359
      %v2843 = vunpack.c.l.b16 %v2360
      %v2844 = vunpack.c.l.b16 %v2361
      %v2845 = vunpack.c.l.b16 %v2362
      %v2846 = vunpack.c.l.b16 %v2363
      %v2847 = vunpack.c.l.b16 %v2364
      %v2848 = vunpack.c.l.b16 %v2365
      %v2849 = vunpack.c.l.b16 %v2366
      %v2850 = vunpack.c.l.b16 %v2367
      %v2851 = vunpack.c.l.b16 %v2368
      %v2852 = vunpack.c.l.b16 %v2369
      %v2853 = vunpack.c.l.b16 %v2370
      %v2854 = vunpack.c.l.b16 %v2371
      %v2855 = vunpack.c.l.b16 %v2372
      %v2856 = vunpack.c.l.b16 %v2373
      %v2857 = vunpack.c.l.b16 %v2374
      %v2858 = vunpack.c.l.b16 %v2375
      %v2859 = vunpack.c.l.b16 %v2376
      %v2860 = vunpack.c.l.b16 %v2377
      %v2861 = vunpack.c.l.b16 %v2378
      %v2862 = vunpack.c.l.b16 %v2379
      %v2863 = vunpack.c.l.b16 %v2380
      %v2864 = vunpack.c.l.b16 %v2381
      %v2865 = vunpack.c.l.b16 %v2382
      %v2866 = vunpack.c.l.b16 %v2383
      %v2867 = vunpack.c.l.b16 %v2384
      %v2868 = vunpack.c.l.b16 %v2385
      %v2869 = vunpack.c.l.b16 %v2386
      %v2870 = vunpack.c.l.b16 %v2387
      %v2871 = vunpack.c.l.b16 %v2388
      %v2872 = vunpack.c.l.b16 %v2389
      %v2873 = vunpack.c.l.b16 %v2390
      %v2874 = vunpack.c.l.b16 %v2391
      %v2875 = vunpack.c.l.b16 %v2392
      %v2876 = vunpack.c.l.b16 %v2393
      %v2877 = vunpack.c.l.b16 %v2394
      %v2878 = vunpack.c.l.b16 %v2395
      %v2879 = vunpack.c.l.b16 %v2396
      %v2880 = vunpack.c.l.b16 %v2397
      %v2881 = vunpack.c.l.b16 %v2398
      %v2882 = vunpack.c.l.b16 %v2399
      %v2883 = vunpack.c.l.b16 %v2400
      %v2884 = vunpack.c.l.b16 %v2401
      %v2885 = vunpack.c.l.b16 %v2402
      %v2886 = vunpack.c.l.b16 %v2403
      %v2887 = vunpack.c.l.b16 %v2404
      %v2888 = vunpack.c.l.b16 %v2405
      %v2889 = vpack.c.b16 %v2842, %v2841
      %v2890 = vpack.c.b16 %v2844, %v2843
      %v2891 = vpack.c.b16 %v2846, %v2845
      %v2892 = vpack.c.b16 %v2848, %v2847
      %v2893 = vpack.c.b16 %v2850, %v2849
      %v2894 = vpack.c.b16 %v2852, %v2851
      %v2895 = vpack.c.b16 %v2854, %v2853
      %v2896 = vpack.c.b16 %v2856, %v2855
      %v2897 = vpack.c.b16 %v2858, %v2857
      %v2898 = vpack.c.b16 %v2860, %v2859
      %v2899 = vpack.c.b16 %v2862, %v2861
      %v2900 = vpack.c.b16 %v2864, %v2863
      %v2901 = vpack.c.b16 %v2866, %v2865
      %v2902 = vpack.c.b16 %v2868, %v2867
      %v2903 = vpack.c.b16 %v2870, %v2869
      %v2904 = vpack.c.b16 %v2872, %v2871
      %v2905 = vpack.c.b16 %v2874, %v2873
      %v2906 = vpack.c.b16 %v2876, %v2875
      %v2907 = vpack.c.b16 %v2878, %v2877
      %v2908 = vpack.c.b16 %v2880, %v2879
      %v2909 = vpack.c.b16 %v2882, %v2881
      %v2910 = vpack.c.b16 %v2884, %v2883
      %v2911 = vpack.c.b16 %v2886, %v2885
      %v2912 = vpack.c.b16 %v2888, %v2887
      %2937 = vmatprep.subr.bf16.mxu0 0
      %2938 = vmatpush1.bf16.msra.mxu0 %v2889
      %2939 = vmatprep.subr.bf16.mxu0 0
      %2940 = vmatpush1.bf16.msra.mxu0 %v2890
      %2941 = vmatprep.subr.bf16.mxu0 0
      %2942 = vmatpush1.bf16.msra.mxu0 %v2891
      %2943 = vmatprep.subr.bf16.mxu0 0
      %2944 = vmatpush1.bf16.msra.mxu0 %v2892
      %2945 = vmatprep.subr.bf16.mxu0 0
      %2946 = vmatpush1.bf16.msra.mxu0 %v2893
      %2947 = vmatprep.subr.bf16.mxu0 0
      %2948 = vmatpush1.bf16.msra.mxu0 %v2894
      %2949 = vmatprep.subr.bf16.mxu0 0
      %2950 = vmatpush1.bf16.msra.mxu0 %v2895
      %2951 = vmatprep.subr.bf16.mxu0 0
      %2952 = vmatpush1.bf16.msra.mxu0 %v2896
      %2953 = vmatprep.subr.bf16.mxu0 0
      %2954 = vmatpush1.bf16.msra.mxu0 %v2897
      %2955 = vmatprep.subr.bf16.mxu0 0
      %2956 = vmatpush1.bf16.msra.mxu0 %v2898
      %2957 = vmatprep.subr.bf16.mxu0 0
      %2958 = vmatpush1.bf16.msra.mxu0 %v2899
      %2959 = vmatprep.subr.bf16.mxu0 0
      %2960 = vmatpush1.bf16.msra.mxu0 %v2900
      %2961 = vmatprep.subr.bf16.mxu0 0
      %2962 = vmatpush1.bf16.msra.mxu0 %v2901
      %2963 = vmatprep.subr.bf16.mxu0 0
      %2964 = vmatpush1.bf16.msra.mxu0 %v2902
      %2965 = vmatprep.subr.bf16.mxu0 0
      %2966 = vmatpush1.bf16.msra.mxu0 %v2903
      %2967 = vmatprep.subr.bf16.mxu0 0
      %2968 = vmatpush1.bf16.msra.mxu0 %v2904
      %2969 = vmatprep.mubr.bf16.mxu0 %v2329
      %2970 = vmatmul.mubr.bf16.gmra.mrb[0].mxu0 %v2328
      %v2971 = vpop.f32.mrb[0].mxu0
      %v2972 = vadd.f32 %v2731, %v2971
      %v2973 = vpop.f32.mrb[0].mxu0
      %v2974 = vpop.f32.mrb[0].mxu0
      %v2975 = vadd.f32 %v2734, %v2974
      %v2976 = vpop.f32.mrb[0].mxu0
      %2977 = vmatprep.mubr.bf16.mxu0 %v2332
      %2978 = vmatmul.mubr.bf16.gmra.mrb[0].mxu0 %v2331
      %v2979 = vpop.f32.mrb[0].mxu0
      %v2980 = vadd.f32 %v2739, %v2979
      %v2981 = vpop.f32.mrb[0].mxu0
      %v2982 = vpop.f32.mrb[0].mxu0
      %v2983 = vadd.f32 %v2742, %v2982
      %v2984 = vpop.f32.mrb[0].mxu0
      %2985 = vmatprep.mubr.bf16.mxu0 %v2335
      %2986 = vmatmul.mubr.bf16.gmra.mrb[0].mxu0 %v2334
      %v2987 = vpop.f32.mrb[0].mxu0
      %v2988 = vadd.f32 %v2747, %v2987
      %v2989 = vpop.f32.mrb[0].mxu0
      %v2990 = vpop.f32.mrb[0].mxu0
      %v2991 = vadd.f32 %v2750, %v2990
      %v2992 = vpop.f32.mrb[0].mxu0
      %2993 = vmatprep.mubr.bf16.mxu0 %v2338
      %2994 = vmatmul.mubr.bf16.gmra.mrb[0].mxu0 %v2337
      %v2995 = vpop.f32.mrb[0].mxu0
      %v2996 = vadd.f32 %v2755, %v2995
      %v2997 = vpop.f32.mrb[0].mxu0
      %v2998 = vpop.f32.mrb[0].mxu0
      %v2999 = vadd.f32 %v2758, %v2998
      %v3000 = vpop.f32.mrb[0].mxu0
      %3001 = vmatprep.mubr.bf16.mxu0 %v2341
      %3002 = vmatmul.mubr.bf16.gmra.mrb[0].mxu0 %v2340
      %v3003 = vpop.f32.mrb[0].mxu0
      %v3004 = vadd.f32 %v2763, %v3003
      %v3005 = vpop.f32.mrb[0].mxu0
      %v3006 = vpop.f32.mrb[0].mxu0
      %v3007 = vadd.f32 %v2766, %v3006
      %v3008 = vpop.f32.mrb[0].mxu0
      %3009 = vmatprep.mubr.bf16.mxu0 %v2344
      %3010 = vmatmul.mubr.bf16.gmra.mrb[0].mxu0 %v2343
      %v3011 = vpop.f32.mrb[0].mxu0
      %v3012 = vadd.f32 %v2771, %v3011
      %v3013 = vpop.f32.mrb[0].mxu0
      %v3014 = vpop.f32.mrb[0].mxu0
      %v3015 = vadd.f32 %v2774, %v3014
      %v3016 = vpop.f32.mrb[0].mxu0
      %3017 = vmatprep.mubr.bf16.mxu0 %v2347
      %3018 = vmatmul.mubr.bf16.gmra.mrb[0].mxu0 %v2346
      %v3019 = vpop.f32.mrb[0].mxu0
      %v3020 = vadd.f32 %v2779, %v3019
      %v3021 = vpop.f32.mrb[0].mxu0
      %v3022 = vpop.f32.mrb[0].mxu0
      %v3023 = vadd.f32 %v2782, %v3022
      %v3024 = vpop.f32.mrb[0].mxu0
      %3025 = vmatprep.mubr.bf16.mxu0 %v2350
      %3026 = vmatmul.mubr.bf16.gmra.mrb[0].mxu0 %v2349
      %v3027 = vpop.f32.mrb[0].mxu0
      %v3028 = vadd.f32 %v2787, %v3027
      %v3029 = vpop.f32.mrb[0].mxu0
      %v3030 = vpop.f32.mrb[0].mxu0
      %v3031 = vadd.f32 %v2790, %v3030
      %v3032 = vpop.f32.mrb[0].mxu0
      %3033 = vdwg.mxu0
      %3034 = vmatprep.subr.bf16.mxu0 0
      %3035 = vmatpush1.bf16.msra.mxu0 %v2905
      %3036 = vmatprep.subr.bf16.mxu0 0
      %3037 = vmatpush1.bf16.msra.mxu0 %v2906
      %3038 = vmatprep.subr.bf16.mxu0 0
      %3039 = vmatpush1.bf16.msra.mxu0 %v2907
      %3040 = vmatprep.subr.bf16.mxu0 0
      %3041 = vmatpush1.bf16.msra.mxu0 %v2908
      %3042 = vmatprep.subr.bf16.mxu0 0
      %3043 = vmatpush1.bf16.msra.mxu0 %v2909
      %3044 = vmatprep.subr.bf16.mxu0 0
      %3045 = vmatpush1.bf16.msra.mxu0 %v2910
      %3046 = vmatprep.subr.bf16.mxu0 0
      %3047 = vmatpush1.bf16.msra.mxu0 %v2911
      %3048 = vmatprep.subr.bf16.mxu0 0
      %3049 = vmatpush1.bf16.msra.mxu0 %v2912
      %3050 = vmatprep.subr.bf16.mxu0 0
      %3051 = vmatpush1.bf16.msra.mxu0 0
      %3052 = vmatprep.subr.bf16.mxu0 0
      %3053 = vmatpush1.bf16.msra.mxu0 0
      %3054 = vmatprep.subr.bf16.mxu0 0
      %3055 = vmatpush1.bf16.msra.mxu0 0
      %3056 = vmatprep.subr.bf16.mxu0 0
      %3057 = vmatpush1.bf16.msra.mxu0 0
      %3058 = vmatprep.subr.bf16.mxu0 0
      %3059 = vmatpush1.bf16.msra.mxu0 0
      %3060 = vmatprep.subr.bf16.mxu0 0
      %3061 = vmatpush1.bf16.msra.mxu0 0
      %3062 = vmatprep.subr.bf16.mxu0 0
      %3063 = vmatpush1.bf16.msra.mxu0 0
      %3064 = vmatprep.subr.bf16.mxu0 0
      %3065 = vmatpush1.bf16.msra.mxu0 0
      %3066 = vmatprep.mubr.bf16.mxu0 0
      %3067 = vmatmul.mubr.bf16.gmra.mrb[0].mxu0 %v2330
      %v3068 = vpop.f32.mrb[0].mxu0
      %v3069 = vadd.f32 %v2972, %v3068
      %v3070 = vpop.f32.mrb[0].mxu0
      %v3071 = vpop.f32.mrb[0].mxu0
      %v3072 = vadd.f32 %v2975, %v3071
      %v3073 = vpop.f32.mrb[0].mxu0
      %3074 = vmatprep.mubr.bf16.mxu0 0
      %3075 = vmatmul.mubr.bf16.gmra.mrb[0].mxu0 %v2333
      %v3076 = vpop.f32.mrb[0].mxu0
      %v3077 = vadd.f32 %v2980, %v3076
      %v3078 = vpop.f32.mrb[0].mxu0
      %v3079 = vpop.f32.mrb[0].mxu0
      %v3080 = vadd.f32 %v2983, %v3079
      %v3081 = vpop.f32.mrb[0].mxu0
      %3082 = vmatprep.mubr.bf16.mxu0 0
      %3083 = vmatmul.mubr.bf16.gmra.mrb[0].mxu0 %v2336
      %v3084 = vpop.f32.mrb[0].mxu0
      %v3085 = vadd.f32 %v2988, %v3084
      %v3086 = vpop.f32.mrb[0].mxu0
      %v3087 = vpop.f32.mrb[0].mxu0
      %v3088 = vadd.f32 %v2991, %v3087
      %v3089 = vpop.f32.mrb[0].mxu0
      %3090 = vmatprep.mubr.bf16.mxu0 0
      %3091 = vmatmul.mubr.bf16.gmra.mrb[0].mxu0 %v2339
      %v3092 = vpop.f32.mrb[0].mxu0
      %v3093 = vadd.f32 %v2996, %v3092
      %v3094 = vpop.f32.mrb[0].mxu0
      %v3095 = vpop.f32.mrb[0].mxu0
      %v3096 = vadd.f32 %v2999, %v3095
      %v3097 = vpop.f32.mrb[0].mxu0
      %3098 = vmatprep.mubr.bf16.mxu0 0
      %3099 = vmatmul.mubr.bf16.gmra.mrb[0].mxu0 %v2342
      %v3100 = vpop.f32.mrb[0].mxu0
      %v3101 = vadd.f32 %v3004, %v3100
      %v3102 = vpop.f32.mrb[0].mxu0
      %v3103 = vpop.f32.mrb[0].mxu0
      %v3104 = vadd.f32 %v3007, %v3103
      %v3105 = vpop.f32.mrb[0].mxu0
      %3106 = vmatprep.mubr.bf16.mxu0 0
      %3107 = vmatmul.mubr.bf16.gmra.mrb[0].mxu0 %v2345
      %v3108 = vpop.f32.mrb[0].mxu0
      %v3109 = vadd.f32 %v3012, %v3108
      %v3110 = vpop.f32.mrb[0].mxu0
      %v3111 = vpop.f32.mrb[0].mxu0
      %v3112 = vadd.f32 %v3015, %v3111
      %v3113 = vpop.f32.mrb[0].mxu0
      %3114 = vmatprep.mubr.bf16.mxu0 0
      %3115 = vmatmul.mubr.bf16.gmra.mrb[0].mxu0 %v2348
      %v3116 = vpop.f32.mrb[0].mxu0
      %v3117 = vadd.f32 %v3020, %v3116
      %v3118 = vpop.f32.mrb[0].mxu0
      %v3119 = vpop.f32.mrb[0].mxu0
      %v3120 = vadd.f32 %v3023, %v3119
      %v3121 = vpop.f32.mrb[0].mxu0
      %3122 = vmatprep.mubr.bf16.mxu0 0
      %3123 = vmatmul.mubr.bf16.gmra.mrb[0].mxu0 %v2351
      %v3124 = vpop.f32.mrb[0].mxu0
      %v3125 = vadd.f32 %v3028, %v3124
      %v3126 = vpop.f32.mrb[0].mxu0
      %v3127 = vpop.f32.mrb[0].mxu0
      %v3128 = vadd.f32 %v3031, %v3127
      %v3129 = vpop.f32.mrb[0].mxu0
      %3130 = vdwg.mxu0
      %s3131 = scalar_lea.vmem %s6, 384
      %v3132 = vld [vmem:[%s3131] sm:$0xf]
      %v3133 = vld [vmem:[%s3131 + $0x4] sm:$0xf]
      %v3134 = vld [vmem:[%s3131 + $0x8] sm:$0xf]
      %v3135 = vld [vmem:[%s3131 + $0xc] sm:$0xf]
      %v3136 = vld [vmem:[%s3131 + $0x10] sm:$0xf]
      %v3137 = vld [vmem:[%s3131 + $0x14] sm:$0xf]
      %v3138 = vld [vmem:[%s3131 + $0x18] sm:$0xf]
      %v3139 = vld [vmem:[%s3131 + $0x1c] sm:$0xf]
      %v3140 = vld [vmem:[%s3131 + $0x20] sm:$0xf]
      %v3141 = vld [vmem:[%s3131 + $0x24] sm:$0xf]
      %v3142 = vld [vmem:[%s3131 + $0x28] sm:$0xf]
      %v3143 = vld [vmem:[%s3131 + $0x2c] sm:$0xf]
      %v3144 = vld [vmem:[%s3131 + $0x30] sm:$0xf]
      %v3145 = vld [vmem:[%s3131 + $0x34] sm:$0xf]
      %v3146 = vld [vmem:[%s3131 + $0x38] sm:$0xf]
      %v3147 = vld [vmem:[%s3131 + $0x3c] sm:$0xf]
      %v3148 = vld [vmem:[%s3131 + $0x40] sm:$0xf]
      %v3149 = vld [vmem:[%s3131 + $0x44] sm:$0xf]
      %v3150 = vld [vmem:[%s3131 + $0x48] sm:$0xf]
      %v3151 = vld [vmem:[%s3131 + $0x4c] sm:$0xf]
      %v3152 = vld [vmem:[%s3131 + $0x50] sm:$0xf]
      %v3153 = vld [vmem:[%s3131 + $0x54] sm:$0xf]
      %v3154 = vld [vmem:[%s3131 + $0x58] sm:$0xf]
      %v3155 = vld [vmem:[%s3131 + $0x5c] sm:$0xf]
      %v3156 = vld [vmem:[%s3131 + $0x60] sm:$0xf]
      %v3157 = vld [vmem:[%s3131 + $0x64] sm:$0xf]
      %v3158 = vld [vmem:[%s3131 + $0x68] sm:$0xf]
      %v3159 = vld [vmem:[%s3131 + $0x6c] sm:$0xf]
      %v3160 = vld [vmem:[%s3131 + $0x70] sm:$0xf]
      %v3161 = vld [vmem:[%s3131 + $0x74] sm:$0xf]
      %v3162 = vld [vmem:[%s3131 + $0x78] sm:$0xf]
      %v3163 = vld [vmem:[%s3131 + $0x7c] sm:$0xf]
      %v3164 = vld [vmem:[%s3131 + $0x80] sm:$0xf]
      %v3165 = vld [vmem:[%s3131 + $0x84] sm:$0xf]
      %v3166 = vld [vmem:[%s3131 + $0x88] sm:$0xf]
      %v3167 = vld [vmem:[%s3131 + $0x8c] sm:$0xf]
      %v3168 = vld [vmem:[%s3131 + $0x90] sm:$0xf]
      %v3169 = vld [vmem:[%s3131 + $0x94] sm:$0xf]
      %v3170 = vld [vmem:[%s3131 + $0x98] sm:$0xf]
      %v3171 = vld [vmem:[%s3131 + $0x9c] sm:$0xf]
      %v3172 = vld [vmem:[%s3131 + $0xa0] sm:$0xf]
      %v3173 = vld [vmem:[%s3131 + $0xa4] sm:$0xf]
      %v3174 = vld [vmem:[%s3131 + $0xa8] sm:$0xf]
      %v3175 = vld [vmem:[%s3131 + $0xac] sm:$0xf]
      %v3176 = vld [vmem:[%s3131 + $0xb0] sm:$0xf]
      %v3177 = vld [vmem:[%s3131 + $0xb4] sm:$0xf]
      %v3178 = vld [vmem:[%s3131 + $0xb8] sm:$0xf]
      %v3179 = vld [vmem:[%s3131 + $0xbc] sm:$0xf]
      %v3228 = vunpack.c.l.b16 %v3132
      %v3229 = vunpack.c.l.b16 %v3133
      %v3230 = vunpack.c.l.b16 %v3134
      %v3231 = vunpack.c.l.b16 %v3135
      %v3232 = vunpack.c.l.b16 %v3136
      %v3233 = vunpack.c.l.b16 %v3137
      %v3234 = vunpack.c.l.b16 %v3138
      %v3235 = vunpack.c.l.b16 %v3139
      %v3236 = vunpack.c.l.b16 %v3140
      %v3237 = vunpack.c.l.b16 %v3141
      %v3238 = vunpack.c.l.b16 %v3142
      %v3239 = vunpack.c.l.b16 %v3143
      %v3240 = vunpack.c.l.b16 %v3144
      %v3241 = vunpack.c.l.b16 %v3145
      %v3242 = vunpack.c.l.b16 %v3146
      %v3243 = vunpack.c.l.b16 %v3147
      %v3244 = vunpack.c.l.b16 %v3148
      %v3245 = vunpack.c.l.b16 %v3149
      %v3246 = vunpack.c.l.b16 %v3150
      %v3247 = vunpack.c.l.b16 %v3151
      %v3248 = vunpack.c.l.b16 %v3152
      %v3249 = vunpack.c.l.b16 %v3153
      %v3250 = vunpack.c.l.b16 %v3154
      %v3251 = vunpack.c.l.b16 %v3155
      %v3252 = vunpack.c.l.b16 %v3156
      %v3253 = vunpack.c.l.b16 %v3157
      %v3254 = vunpack.c.l.b16 %v3158
      %v3255 = vunpack.c.l.b16 %v3159
      %v3256 = vunpack.c.l.b16 %v3160
      %v3257 = vunpack.c.l.b16 %v3161
      %v3258 = vunpack.c.l.b16 %v3162
      %v3259 = vunpack.c.l.b16 %v3163
      %v3260 = vunpack.c.l.b16 %v3164
      %v3261 = vunpack.c.l.b16 %v3165
      %v3262 = vunpack.c.l.b16 %v3166
      %v3263 = vunpack.c.l.b16 %v3167
      %v3264 = vunpack.c.l.b16 %v3168
      %v3265 = vunpack.c.l.b16 %v3169
      %v3266 = vunpack.c.l.b16 %v3170
      %v3267 = vunpack.c.l.b16 %v3171
      %v3268 = vunpack.c.l.b16 %v3172
      %v3269 = vunpack.c.l.b16 %v3173
      %v3270 = vunpack.c.l.b16 %v3174
      %v3271 = vunpack.c.l.b16 %v3175
      %v3272 = vunpack.c.l.b16 %v3176
      %v3273 = vunpack.c.l.b16 %v3177
      %v3274 = vunpack.c.l.b16 %v3178
      %v3275 = vunpack.c.l.b16 %v3179
      %v3276 = vpack.c.b16 %v3229, %v3228
      %v3277 = vpack.c.b16 %v3231, %v3230
      %v3278 = vpack.c.b16 %v3233, %v3232
      %v3279 = vpack.c.b16 %v3235, %v3234
      %v3280 = vpack.c.b16 %v3237, %v3236
      %v3281 = vpack.c.b16 %v3239, %v3238
      %v3282 = vpack.c.b16 %v3241, %v3240
      %v3283 = vpack.c.b16 %v3243, %v3242
      %v3284 = vpack.c.b16 %v3245, %v3244
      %v3285 = vpack.c.b16 %v3247, %v3246
      %v3286 = vpack.c.b16 %v3249, %v3248
      %v3287 = vpack.c.b16 %v3251, %v3250
      %v3288 = vpack.c.b16 %v3253, %v3252
      %v3289 = vpack.c.b16 %v3255, %v3254
      %v3290 = vpack.c.b16 %v3257, %v3256
      %v3291 = vpack.c.b16 %v3259, %v3258
      %v3292 = vpack.c.b16 %v3261, %v3260
      %v3293 = vpack.c.b16 %v3263, %v3262
      %v3294 = vpack.c.b16 %v3265, %v3264
      %v3295 = vpack.c.b16 %v3267, %v3266
      %v3296 = vpack.c.b16 %v3269, %v3268
      %v3297 = vpack.c.b16 %v3271, %v3270
      %v3298 = vpack.c.b16 %v3273, %v3272
      %v3299 = vpack.c.b16 %v3275, %v3274
      %3324 = vmatprep.subr.bf16.mxu0 0
      %3325 = vmatpush1.bf16.msra.mxu0 %v3276
      %3326 = vmatprep.subr.bf16.mxu0 0
      %3327 = vmatpush1.bf16.msra.mxu0 %v3277
      %3328 = vmatprep.subr.bf16.mxu0 0
      %3329 = vmatpush1.bf16.msra.mxu0 %v3278
      %3330 = vmatprep.subr.bf16.mxu0 0
      %3331 = vmatpush1.bf16.msra.mxu0 %v3279
      %3332 = vmatprep.subr.bf16.mxu0 0
      %3333 = vmatpush1.bf16.msra.mxu0 %v3280
      %3334 = vmatprep.subr.bf16.mxu0 0
      %3335 = vmatpush1.bf16.msra.mxu0 %v3281
      %3336 = vmatprep.subr.bf16.mxu0 0
      %3337 = vmatpush1.bf16.msra.mxu0 %v3282
      %3338 = vmatprep.subr.bf16.mxu0 0
      %3339 = vmatpush1.bf16.msra.mxu0 %v3283
      %3340 = vmatprep.subr.bf16.mxu0 0
      %3341 = vmatpush1.bf16.msra.mxu0 %v3284
      %3342 = vmatprep.subr.bf16.mxu0 0
      %3343 = vmatpush1.bf16.msra.mxu0 %v3285
      %3344 = vmatprep.subr.bf16.mxu0 0
      %3345 = vmatpush1.bf16.msra.mxu0 %v3286
      %3346 = vmatprep.subr.bf16.mxu0 0
      %3347 = vmatpush1.bf16.msra.mxu0 %v3287
      %3348 = vmatprep.subr.bf16.mxu0 0
      %3349 = vmatpush1.bf16.msra.mxu0 %v3288
      %3350 = vmatprep.subr.bf16.mxu0 0
      %3351 = vmatpush1.bf16.msra.mxu0 %v3289
      %3352 = vmatprep.subr.bf16.mxu0 0
      %3353 = vmatpush1.bf16.msra.mxu0 %v3290
      %3354 = vmatprep.subr.bf16.mxu0 0
      %3355 = vmatpush1.bf16.msra.mxu0 %v3291
      %3356 = vmatprep.mubr.bf16.mxu0 %v2335
      %3357 = vmatmul.mubr.bf16.gmra.mrb[0].mxu0 %v2334
      %v3358 = vpop.f32.mrb[0].mxu0
      %v3359 = vadd.f32 0.0, %v3358
      %v3360 = vpop.f32.mrb[0].mxu0
      %v3361 = vpop.f32.mrb[0].mxu0
      %v3362 = vadd.f32 0.0, %v3361
      %v3363 = vpop.f32.mrb[0].mxu0
      %3364 = vmatprep.mubr.bf16.mxu0 %v2338
      %3365 = vmatmul.mubr.bf16.gmra.mrb[0].mxu0 %v2337
      %v3366 = vpop.f32.mrb[0].mxu0
      %v3367 = vadd.f32 0.0, %v3366
      %v3368 = vpop.f32.mrb[0].mxu0
      %v3369 = vpop.f32.mrb[0].mxu0
      %v3370 = vadd.f32 0.0, %v3369
      %v3371 = vpop.f32.mrb[0].mxu0
      %3372 = vmatprep.mubr.bf16.mxu0 %v2341
      %3373 = vmatmul.mubr.bf16.gmra.mrb[0].mxu0 %v2340
      %v3374 = vpop.f32.mrb[0].mxu0
      %v3375 = vadd.f32 0.0, %v3374
      %v3376 = vpop.f32.mrb[0].mxu0
      %v3377 = vpop.f32.mrb[0].mxu0
      %v3378 = vadd.f32 0.0, %v3377
      %v3379 = vpop.f32.mrb[0].mxu0
      %3380 = vmatprep.mubr.bf16.mxu0 %v2344
      %3381 = vmatmul.mubr.bf16.gmra.mrb[0].mxu0 %v2343
      %v3382 = vpop.f32.mrb[0].mxu0
      %v3383 = vadd.f32 0.0, %v3382
      %v3384 = vpop.f32.mrb[0].mxu0
      %v3385 = vpop.f32.mrb[0].mxu0
      %v3386 = vadd.f32 0.0, %v3385
      %v3387 = vpop.f32.mrb[0].mxu0
      %3388 = vmatprep.mubr.bf16.mxu0 %v2347
      %3389 = vmatmul.mubr.bf16.gmra.mrb[0].mxu0 %v2346
      %v3390 = vpop.f32.mrb[0].mxu0
      %v3391 = vadd.f32 0.0, %v3390
      %v3392 = vpop.f32.mrb[0].mxu0
      %v3393 = vpop.f32.mrb[0].mxu0
      %v3394 = vadd.f32 0.0, %v3393
      %v3395 = vpop.f32.mrb[0].mxu0
      %3396 = vmatprep.mubr.bf16.mxu0 %v2350
      %3397 = vmatmul.mubr.bf16.gmra.mrb[0].mxu0 %v2349
      %v3398 = vpop.f32.mrb[0].mxu0
      %v3399 = vadd.f32 0.0, %v3398
      %v3400 = vpop.f32.mrb[0].mxu0
      %v3401 = vpop.f32.mrb[0].mxu0
      %v3402 = vadd.f32 0.0, %v3401
      %v3403 = vpop.f32.mrb[0].mxu0
      %3404 = vmatprep.mubr.bf16.mxu0 %v2353
      %3405 = vmatmul.mubr.bf16.gmra.mrb[0].mxu0 %v2352
      %v3406 = vpop.f32.mrb[0].mxu0
      %v3407 = vadd.f32 0.0, %v3406
      %v3408 = vpop.f32.mrb[0].mxu0
      %v3409 = vpop.f32.mrb[0].mxu0
      %v3410 = vadd.f32 0.0, %v3409
      %v3411 = vpop.f32.mrb[0].mxu0
      %3412 = vmatprep.mubr.bf16.mxu0 %v2356
      %3413 = vmatmul.mubr.bf16.gmra.mrb[0].mxu0 %v2355
      %v3414 = vpop.f32.mrb[0].mxu0
      %v3415 = vadd.f32 0.0, %v3414
      %v3416 = vpop.f32.mrb[0].mxu0
      %v3417 = vpop.f32.mrb[0].mxu0
      %v3418 = vadd.f32 0.0, %v3417
      %v3419 = vpop.f32.mrb[0].mxu0
      %3420 = vdwg.mxu0
      %3421 = vmatprep.subr.bf16.mxu0 0
      %3422 = vmatpush1.bf16.msra.mxu0 %v3292
      %3423 = vmatprep.subr.bf16.mxu0 0
      %3424 = vmatpush1.bf16.msra.mxu0 %v3293
      %3425 = vmatprep.subr.bf16.mxu0 0
      %3426 = vmatpush1.bf16.msra.mxu0 %v3294
      %3427 = vmatprep.subr.bf16.mxu0 0
      %3428 = vmatpush1.bf16.msra.mxu0 %v3295
      %3429 = vmatprep.subr.bf16.mxu0 0
      %3430 = vmatpush1.bf16.msra.mxu0 %v3296
      %3431 = vmatprep.subr.bf16.mxu0 0
      %3432 = vmatpush1.bf16.msra.mxu0 %v3297
      %3433 = vmatprep.subr.bf16.mxu0 0
      %3434 = vmatpush1.bf16.msra.mxu0 %v3298
      %3435 = vmatprep.subr.bf16.mxu0 0
      %3436 = vmatpush1.bf16.msra.mxu0 %v3299
      %3437 = vmatprep.subr.bf16.mxu0 0
      %3438 = vmatpush1.bf16.msra.mxu0 0
      %3439 = vmatprep.subr.bf16.mxu0 0
      %3440 = vmatpush1.bf16.msra.mxu0 0
      %3441 = vmatprep.subr.bf16.mxu0 0
      %3442 = vmatpush1.bf16.msra.mxu0 0
      %3443 = vmatprep.subr.bf16.mxu0 0
      %3444 = vmatpush1.bf16.msra.mxu0 0
      %3445 = vmatprep.subr.bf16.mxu0 0
      %3446 = vmatpush1.bf16.msra.mxu0 0
      %3447 = vmatprep.subr.bf16.mxu0 0
      %3448 = vmatpush1.bf16.msra.mxu0 0
      %3449 = vmatprep.subr.bf16.mxu0 0
      %3450 = vmatpush1.bf16.msra.mxu0 0
      %3451 = vmatprep.subr.bf16.mxu0 0
      %3452 = vmatpush1.bf16.msra.mxu0 0
      %3453 = vmatprep.mubr.bf16.mxu0 0
      %3454 = vmatmul.mubr.bf16.gmra.mrb[0].mxu0 %v2336
      %v3455 = vpop.f32.mrb[0].mxu0
      %v3456 = vadd.f32 %v3359, %v3455
      %v3457 = vpop.f32.mrb[0].mxu0
      %v3458 = vpop.f32.mrb[0].mxu0
      %v3459 = vadd.f32 %v3362, %v3458
      %v3460 = vpop.f32.mrb[0].mxu0
      %3461 = vmatprep.mubr.bf16.mxu0 0
      %3462 = vmatmul.mubr.bf16.gmra.mrb[0].mxu0 %v2339
      %v3463 = vpop.f32.mrb[0].mxu0
      %v3464 = vadd.f32 %v3367, %v3463
      %v3465 = vpop.f32.mrb[0].mxu0
      %v3466 = vpop.f32.mrb[0].mxu0
      %v3467 = vadd.f32 %v3370, %v3466
      %v3468 = vpop.f32.mrb[0].mxu0
      %3469 = vmatprep.mubr.bf16.mxu0 0
      %3470 = vmatmul.mubr.bf16.gmra.mrb[0].mxu0 %v2342
      %v3471 = vpop.f32.mrb[0].mxu0
      %v3472 = vadd.f32 %v3375, %v3471
      %v3473 = vpop.f32.mrb[0].mxu0
      %v3474 = vpop.f32.mrb[0].mxu0
      %v3475 = vadd.f32 %v3378, %v3474
      %v3476 = vpop.f32.mrb[0].mxu0
      %3477 = vmatprep.mubr.bf16.mxu0 0
      %3478 = vmatmul.mubr.bf16.gmra.mrb[0].mxu0 %v2345
      %v3479 = vpop.f32.mrb[0].mxu0
      %v3480 = vadd.f32 %v3383, %v3479
      %v3481 = vpop.f32.mrb[0].mxu0
      %v3482 = vpop.f32.mrb[0].mxu0
      %v3483 = vadd.f32 %v3386, %v3482
      %v3484 = vpop.f32.mrb[0].mxu0
      %3485 = vmatprep.mubr.bf16.mxu0 0
      %3486 = vmatmul.mubr.bf16.gmra.mrb[0].mxu0 %v2348
      %v3487 = vpop.f32.mrb[0].mxu0
      %v3488 = vadd.f32 %v3391, %v3487
      %v3489 = vpop.f32.mrb[0].mxu0
      %v3490 = vpop.f32.mrb[0].mxu0
      %v3491 = vadd.f32 %v3394, %v3490
      %v3492 = vpop.f32.mrb[0].mxu0
      %3493 = vmatprep.mubr.bf16.mxu0 0
      %3494 = vmatmul.mubr.bf16.gmra.mrb[0].mxu0 %v2351
      %v3495 = vpop.f32.mrb[0].mxu0
      %v3496 = vadd.f32 %v3399, %v3495
      %v3497 = vpop.f32.mrb[0].mxu0
      %v3498 = vpop.f32.mrb[0].mxu0
      %v3499 = vadd.f32 %v3402, %v3498
      %v3500 = vpop.f32.mrb[0].mxu0
      %3501 = vmatprep.mubr.bf16.mxu0 0
      %3502 = vmatmul.mubr.bf16.gmra.mrb[0].mxu0 %v2354
      %v3503 = vpop.f32.mrb[0].mxu0
      %v3504 = vadd.f32 %v3407, %v3503
      %v3505 = vpop.f32.mrb[0].mxu0
      %v3506 = vpop.f32.mrb[0].mxu0
      %v3507 = vadd.f32 %v3410, %v3506
      %v3508 = vpop.f32.mrb[0].mxu0
      %3509 = vmatprep.mubr.bf16.mxu0 0
      %3510 = vmatmul.mubr.bf16.gmra.mrb[0].mxu0 %v2357
      %v3511 = vpop.f32.mrb[0].mxu0
      %v3512 = vadd.f32 %v3415, %v3511
      %v3513 = vpop.f32.mrb[0].mxu0
      %v3514 = vpop.f32.mrb[0].mxu0
      %v3515 = vadd.f32 %v3418, %v3514
      %v3516 = vpop.f32.mrb[0].mxu0
      %3517 = vdwg.mxu0
      %v3518 = vadd.f32 %v3069, %v3456
      %v3519 = vadd.f32 %v3072, %v3459
      %v3520 = vadd.f32 %v3077, %v3464
      %v3521 = vadd.f32 %v3080, %v3467
      %v3522 = vadd.f32 %v3085, %v3472
      %v3523 = vadd.f32 %v3088, %v3475
      %v3524 = vadd.f32 %v3093, %v3480
      %v3525 = vadd.f32 %v3096, %v3483
      %v3526 = vadd.f32 %v3101, %v3488
      %v3527 = vadd.f32 %v3104, %v3491
      %v3528 = vadd.f32 %v3109, %v3496
      %v3529 = vadd.f32 %v3112, %v3499
      %v3530 = vadd.f32 %v3117, %v3504
      %v3531 = vadd.f32 %v3120, %v3507
      %v3532 = vadd.f32 %v3125, %v3512
      %v3533 = vadd.f32 %v3128, %v3515
      %v3534 = vld [vmem:[%s7] sm:$0x1]
      %v3536 = vlaneseq
      %v3537 = vshrl.u32 %v3536, 7
      %v3538 = vsub.s32 0, %v3537
      %v3539 = vrot.slane %v3534, %v3538
      %v3541 = vmul.f32 %v3518, %v3539
      %v3542 = vmul.f32 %v3519, %v3539
      %v3543 = vmul.f32 %v3520, %v3539
      %v3544 = vmul.f32 %v3521, %v3539
      %v3545 = vmul.f32 %v3522, %v3539
      %v3546 = vmul.f32 %v3523, %v3539
      %v3547 = vmul.f32 %v3524, %v3539
      %v3548 = vmul.f32 %v3525, %v3539
      %v3549 = vmul.f32 %v3526, %v3539
      %v3550 = vmul.f32 %v3527, %v3539
      %v3551 = vmul.f32 %v3528, %v3539
      %v3552 = vmul.f32 %v3529, %v3539
      %v3553 = vmul.f32 %v3530, %v3539
      %v3554 = vmul.f32 %v3531, %v3539
      %v3555 = vmul.f32 %v3532, %v3539
      %v3556 = vmul.f32 %v3533, %v3539
      %v3557 = vld [vmem:[%s8] sm:$0x1]
      %v3559 = vlaneseq
      %v3560 = vshrl.u32 %v3559, 7
      %v3561 = vsub.s32 0, %v3560
      %v3562 = vrot.slane %v3557, %v3561
      %v3564 = vadd.f32 %v3541, %v3562
      %v3565 = vadd.f32 %v3542, %v3562
      %v3566 = vadd.f32 %v3543, %v3562
      %v3567 = vadd.f32 %v3544, %v3562
      %v3568 = vadd.f32 %v3545, %v3562
      %v3569 = vadd.f32 %v3546, %v3562
      %v3570 = vadd.f32 %v3547, %v3562
      %v3571 = vadd.f32 %v3548, %v3562
      %v3572 = vadd.f32 %v3549, %v3562
      %v3573 = vadd.f32 %v3550, %v3562
      %v3574 = vadd.f32 %v3551, %v3562
      %v3575 = vadd.f32 %v3552, %v3562
      %v3576 = vadd.f32 %v3553, %v3562
      %v3577 = vadd.f32 %v3554, %v3562
      %v3578 = vadd.f32 %v3555, %v3562
      %v3579 = vadd.f32 %v3556, %v3562
      %v3580 = vmax.f32 %v3564, 0.0
      %v3581 = vmax.f32 %v3565, 0.0
      %v3582 = vmax.f32 %v3566, 0.0
      %v3583 = vmax.f32 %v3567, 0.0
      %v3584 = vmax.f32 %v3568, 0.0
      %v3585 = vmax.f32 %v3569, 0.0
      %v3586 = vmax.f32 %v3570, 0.0
      %v3587 = vmax.f32 %v3571, 0.0
      %v3588 = vmax.f32 %v3572, 0.0
      %v3589 = vmax.f32 %v3573, 0.0
      %v3590 = vmax.f32 %v3574, 0.0
      %v3591 = vmax.f32 %v3575, 0.0
      %v3592 = vmax.f32 %v3576, 0.0
      %v3593 = vmax.f32 %v3577, 0.0
      %v3594 = vmax.f32 %v3578, 0.0
      %v3595 = vmax.f32 %v3579, 0.0
      %3596 = vst [vmem:[%s509] sm:$0xff] %v3580
      %3597 = vst [vmem:[%s509 + $0x8] sm:$0xff] %v3581
      %3598 = vst [vmem:[%s509 + $0x10] sm:$0xff] %v3582
      %3599 = vst [vmem:[%s509 + $0x18] sm:$0xff] %v3583
      %3600 = vst [vmem:[%s509 + $0x20] sm:$0xff] %v3584
      %3601 = vst [vmem:[%s509 + $0x28] sm:$0xff] %v3585
      %3602 = vst [vmem:[%s509 + $0x30] sm:$0xff] %v3586
      %3603 = vst [vmem:[%s509 + $0x38] sm:$0xff] %v3587
      %3604 = vst [vmem:[%s509 + $0x40] sm:$0xff] %v3588
      %3605 = vst [vmem:[%s509 + $0x48] sm:$0xff] %v3589
      %3606 = vst [vmem:[%s509 + $0x50] sm:$0xff] %v3590
      %3607 = vst [vmem:[%s509 + $0x58] sm:$0xff] %v3591
      %3608 = vst [vmem:[%s509 + $0x60] sm:$0xff] %v3592
      %3609 = vst [vmem:[%s509 + $0x68] sm:$0xff] %v3593
      %3610 = vst [vmem:[%s509 + $0x70] sm:$0xff] %v3594
      %3611 = vst [vmem:[%s509 + $0x78] sm:$0xff] %v3595
      %s3612 = smul.u32 8, %s25
      %p3613 = scmp.lt.s32.totalorder %s24, 1
      %s3614 = scalar_select %p3613, %s24, 1
      %p3615 = scmp.lt.s32.totalorder %s3612, 15
      %s3616 = scalar_select %p3615, %s3612, 15
      %s3617 = smul.addr %s3616, 2
      %s3618 = smul.addr %s3614, 32
      %s3619 = sadd.s32 %s3617, %s3618
      %s3620 = smul.addr %s3619, 8
      %s3621 = scalar_lea.vmem %s9, %s3620
      // Predicated region
      $region57: #{double_conv_pallas.1} parent=55 // pred_check
        %p3622 = pneg %p278
      $region58: #{double_conv_pallas.1} parent=55 // pred_check_branch
        %3624 = sbr.rel (%p3622) target = $region60
      $region59: #{double_conv_pallas.1} parent=55 // pred_region
        %s3625 = smul.u32 8, %s25
      $region60: #{double_conv_pallas.1} parent=55 // pred_fallthru
        _
    $region56: #{double_conv_pallas.1} parent=5 // pred_fallthru
      _
    %p3626 = scmp.le.s32.totalorder 2, %s15
    // Predicated region
    $region61: #{double_conv_pallas.1} parent=5 // pred_check
      %p3627 = pneg %p3626
    $region62: #{double_conv_pallas.1} parent=5 // pred_check_branch
      %3629 = sbr.rel (%p3627) target = $region64
    $region63: #{double_conv_pallas.1} parent=5 // pred_region
      %s3630 = ssub.s32 %s15, 2
      // Predicated region
      $region65: #{double_conv_pallas.1} parent=63 // pred_check
        %p3631 = pneg %p284
      $region66: #{double_conv_pallas.1} parent=63 // pred_check_branch
        %3633 = sbr.rel (%p3631) target = $region68
      $region67: #{double_conv_pallas.1} parent=63 // pred_region
        %s3634 = smul.u32 8, %s27
        %p3635 = scmp.lt.s32.totalorder %s26, 1
        %s3636 = scalar_select %p3635, %s26, 1
        %p3637 = scmp.lt.s32.totalorder %s3634, 15
        %s3638 = scalar_select %p3637, %s3634, 15
        %s3639 = smul.addr %s3638, 2
        %s3640 = smul.addr %s3636, 32
        %s3641 = sadd.s32 %s3639, %s3640
        %s3642 = smul.addr %s3641, 8
        %s3643 = scalar_lea.vmem %s9, %s3642
      $region68: #{double_conv_pallas.1} parent=63 // pred_fallthru
        _
    $region64: #{double_conv_pallas.1} parent=5 // pred_fallthru
      _
  $region6: #{double_conv_pallas.1} parent=0 // loop_footer
    %s19 = sadd.s32 1, %s15
  $region7: #{double_conv_pallas.1} parent=0 // loop_footer_branch
    %14 = sbr.rel target = $region3
  $region8: #{double_conv_pallas.1} parent=0 // loop_exit
    _

</llo_original>
